<compile_context>
chip_gen: v5e
topology: v5e:2x2
jax: 0.10.0
libtpu: 0.0.40
codegen_flags: <defaults>
</compile_context>

<pallas_src>
import functools

import jax
import jax.numpy as jnp
from jax import lax
from jax.experimental import pallas as pl
from jax.experimental.pallas import tpu as pltpu


def _dcgru_seq_kernel(x_ref, adj_ref, wxr_ref, whr_ref, wxu_ref, whu_ref,
                      wcx_ref, wch_ref, wd_ref, br_ref, bu_ref, bc_ref,
                      o_ref, h_ref, *, n_nodes, batch_tile, hidden_dim,
                      max_step, t_tile, compute_dtype):
    """One grid point = (batch block b, time block t) covering t_tile timesteps.

    x_ref   : (t_tile, rows, D_in)  inputs for this time block (batch-major tokens)
    adj_ref : (N, N) f32            adjacency (resident, chain kept in f32)
    wxr/whr/wxu/whu                 gate weights split into x/h rows and r/u columns
    wcx/wch                         candidate weights split into x / (r*conv) rows
    wd_ref  : (K+1, H, H)           diffusion weights
    br/bu/bc: (1, H) f32            biases
    o_ref   : (t_tile, rows, H)     hidden-state outputs for this time block
    h_ref   : (rows, H) f32         recurrent hidden state scratch, carried across t
    """
    rows = batch_tile * n_nodes

    @pl.when(pl.program_id(1) == 0)
    def _init():
        h_ref[...] = jnp.zeros_like(h_ref)

    # Resident operands: read once per grid step, reused across the t_tile inner steps
    # (hoisted so no per-timestep broadcast / reload).
    adj = adj_ref[...]                                          # (N, N) f32
    adj_b = jnp.broadcast_to(adj, (batch_tile, n_nodes, n_nodes))
    wxr, whr = wxr_ref[...], whr_ref[...]
    wxu, whu = wxu_ref[...], whu_ref[...]
    wcx, wch = wcx_ref[...], wch_ref[...]
    wd = [wd_ref[k] for k in range(max_step + 1)]               # static index reads
    br, bu, bc = br_ref[...], bu_ref[...], bc_ref[...]          # f32 (1, H)

    def step(tt, carry):
        h32 = h_ref[...]                                        # (rows, H) f32 state
        h_c = h32.astype(compute_dtype)                         # MXU operand only
        x_c = x_ref[tt]                                         # (rows, D_in)

        # ---- gates: split weights -> no concat, no lane slicing -------------------
        r = jax.nn.sigmoid(
            jnp.dot(x_c, wxr, preferred_element_type=jnp.float32)
            + jnp.dot(h_c, whr, preferred_element_type=jnp.float32) + br)
        u = jax.nn.sigmoid(
            jnp.dot(x_c, wxu, preferred_element_type=jnp.float32)
            + jnp.dot(h_c, whu, preferred_element_type=jnp.float32) + bu)

        # ---- diffusion conv: sum_k (A^k h) @ W_k, A^0 = I --------------------------
        # k = 0 term: one big lane-dense (rows, H) @ (H, H) matmul.
        conv = jnp.dot(h_c, wd[0], preferred_element_type=jnp.float32)
        # A-chain in f32; each hop is a single batched contraction over the batch tile.
        p = h32.reshape(batch_tile, n_nodes, hidden_dim)
        for k in range(1, max_step + 1):
            p = jnp.einsum("bnm,bmh->bnh", adj_b, p,
                           preferred_element_type=jnp.float32)
            conv = conv + jnp.dot(
                p.reshape(rows, hidden_dim).astype(compute_dtype),
                wd[k], preferred_element_type=jnp.float32)

        # ---- candidate + GRU state update ------------------------------------------
        c = jnp.tanh(
            jnp.dot(x_c, wcx, preferred_element_type=jnp.float32)
            + jnp.dot((r * conv).astype(compute_dtype), wch,
                      preferred_element_type=jnp.float32) + bc)
        h_new = u * h32 + (1.0 - u) * c                         # f32
        h_ref[...] = h_new
        o_ref[tt] = h_new.astype(o_ref.dtype)
        return carry

    lax.fori_loop(0, t_tile, step, None, unroll=True)


def spatio_temporal_block(x_seq, adj, params, *, max_step, batch_tile=None,
                          t_tile=None, compute_dtype=jnp.float32,
                          out_dtype=jnp.float32, vmem_limit_bytes=None):
    """DCGRU SpatioTemporalBlock forward.

    x_seq : (T, B, N, D_in), adj : (N, N) static adjacency.
    params: w_gate (D_in+H, 2H), b_gate (2H,), w_cand (D_in+H, H), b_cand (H,),
            w_diff (K+1, H, H).
    Returns (T, B, N, H).

    compute_dtype=jnp.bfloat16 enables the bf16 MXU operand path on ALL generations
    (v5e's MXU is natively bf16 too); the recurrent state, accumulation, diffusion
    A-chain and elementwise math stay f32.  out_dtype=jnp.bfloat16 halves output HBM
    traffic (useful on v5e's lower HBM bandwidth).
    """
    T, B, N, D_in = x_seq.shape
    H = params["w_cand"].shape[1]

    if batch_tile is None:
        batch_tile = B           # single-TC chips (v5e/v6e): biggest matmul M = B*N
        try:
            kind = jax.devices()[0].device_kind.lower()
            # v7x: split batch so the "parallel" grid axis uses both TensorCores.
            if "v7" in kind and B % 2 == 0 and ((B // 2) * N) % 16 == 0:
                batch_tile = B // 2
        except Exception:
            pass
    assert B % batch_tile == 0, "batch_tile must divide B"
    nb = B // batch_tile
    rows = batch_tile * N
    sub = 8 if (jnp.dtype(compute_dtype).itemsize == 4
                and jnp.dtype(out_dtype).itemsize == 4) else 16
    assert batch_tile == B or rows % sub == 0, \
        "batch block rows must be sublane-tile aligned for the chosen dtypes"

    if t_tile is None:  # time-block the grid to amortize per-step pipeline overhead
        t_tile = next(d for d in range(min(T, 8), 0, -1) if T % d == 0)
    assert T % t_tile == 0
    nt = T // t_tile

    # ---- split / cast operands once in the wrapper (keeps MXU operands lane-dense) --
    cdt = compute_dtype
    w_gate, w_cand = params["w_gate"], params["w_cand"]
    wx_r = w_gate[:D_in, :H].astype(cdt)
    wx_u = w_gate[:D_in, H:].astype(cdt)
    wh_r = w_gate[D_in:, :H].astype(cdt)
    wh_u = w_gate[D_in:, H:].astype(cdt)
    b_r = params["b_gate"][:H].reshape(1, H).astype(jnp.float32)
    b_u = params["b_gate"][H:].reshape(1, H).astype(jnp.float32)
    wc_x = w_cand[:D_in, :].astype(cdt)
    wc_h = w_cand[D_in:, :].astype(cdt)
    b_c = params["b_cand"].reshape(1, H).astype(jnp.float32)
    w_diff = params["w_diff"].astype(cdt)                    # (K+1, H, H)
    adj_f32 = adj.astype(jnp.float32)                        # A-chain stays f32
    x_tok = x_seq.reshape(T, B * N, D_in).astype(cdt)        # batch-major tokens

    # ---- explicit VMEM budget (v5e default scoped limit 16 MiB; v7x physical 64 MiB)
    cs, osz = jnp.dtype(cdt).itemsize, jnp.dtype(out_dtype).itemsize
    needed = (2 * t_tile * rows * D_in * cs                  # x block (double-buffered)
              + 2 * t_tile * rows * H * osz                  # out block
              + 2 * N * N * 4                                # adjacency
              + 2 * (2 * D_in * H + 2 * H * H) * cs          # gate weights
              + 2 * (D_in * H + H * H) * cs                  # candidate weights
              + 2 * (max_step + 1) * H * H * cs              # diffusion weights
              + 2 * 3 * H * 4                                # biases
              + rows * H * 4)                                # h scratch
    if vmem_limit_bytes is None:
        vmem_limit_bytes = int(min(64 * 1024 * 1024,
                                   max(2 * needed, 32 * 1024 * 1024)))

    kernel = functools.partial(
        _dcgru_seq_kernel, n_nodes=N, batch_tile=batch_tile, hidden_dim=H,
        max_step=max_step, t_tile=t_tile, compute_dtype=cdt)

    const2 = lambda b, t: (0, 0)
    const3 = lambda b, t: (0, 0, 0)

    out = pl.pallas_call(
        kernel,
        out_shape=jax.ShapeDtypeStruct((T, B * N, H), out_dtype),
        grid_spec=pltpu.PrefetchScalarGridSpec(
            num_scalar_prefetch=0,
            grid=(nb, nt),   # batch blocks (parallel) x time blocks (recurrence)
            in_specs=[
                pl.BlockSpec((t_tile, rows, D_in), lambda b, t: (t, b, 0)),   # x
                pl.BlockSpec((N, N), const2),                                 # adj (f32)
                pl.BlockSpec((D_in, H), const2),                              # Wx_r
                pl.BlockSpec((H, H), const2),                                 # Wh_r
                pl.BlockSpec((D_in, H), const2),                              # Wx_u
                pl.BlockSpec((H, H), const2),                                 # Wh_u
                pl.BlockSpec((D_in, H), const2),                              # Wc_x
                pl.BlockSpec((H, H), const2),                                 # Wc_h
                pl.BlockSpec((max_step + 1, H, H), const3),                   # W_diff
                pl.BlockSpec((1, H), const2),                                 # b_r
                pl.BlockSpec((1, H), const2),                                 # b_u
                pl.BlockSpec((1, H), const2),                                 # b_c
            ],
            out_specs=pl.BlockSpec((t_tile, rows, H), lambda b, t: (t, b, 0)),
            scratch_shapes=[pltpu.VMEM((rows, H), jnp.float32)],              # h state
        ),
        compiler_params=pltpu.CompilerParams(
            dimension_semantics=("parallel", "arbitrary"),
            vmem_limit_bytes=vmem_limit_bytes,
        ),
    )(x_tok, adj_f32, wx_r, wh_r, wx_u, wh_u, wc_x, wc_h, w_diff, b_r, b_u, b_c)

    return out.reshape(T, B, N, H)


def reference_forward(x_seq, adj, params, max_step):
    """Pure-JAX mirror of the PyTorch SpatioTemporalBlock forward (f32)."""
    T, B, N, _ = x_seq.shape
    H = params["w_cand"].shape[1]
    hp = jax.lax.Precision.HIGHEST
    powers = [jnp.eye(N, dtype=adj.dtype)]
    for _ in range(max_step):
        powers.append(jnp.matmul(powers[-1], adj, precision=hp))
    h = jnp.zeros((B, N, H), dtype=jnp.float32)
    outs = []
    for t in range(T):
        x_t = x_seq[t]
        combined = jnp.concatenate([x_t, h], axis=-1)
        g_pre = jnp.matmul(combined, params["w_gate"], precision=hp) + params["b_gate"]
        gates = 1.0 / (1.0 + jnp.exp(-g_pre))
        r, u = gates[..., :H], gates[..., H:]
        conv = jnp.zeros_like(h)
        for k in range(max_step + 1):
            x_trans = jnp.einsum("nm,bmh->bnh", powers[k], h, precision=hp)
            conv = conv + jnp.matmul(x_trans, params["w_diff"][k], precision=hp)
        cand_in = jnp.concatenate([x_t, r * conv], axis=-1)
        c = jnp.tanh(jnp.matmul(cand_in, params["w_cand"], precision=hp)
                     + params["b_cand"])
        h = u * h + (1.0 - u) * c
        outs.append(h)
    return jnp.stack(outs, axis=0)


if __name__ == "__main__":
    # Small, module-consistent shapes: (T, B, N, D_in), hidden H, K diffusion steps.
    T, B, N = 8, 2, 16
    input_dim, hidden_dim, diffusion_steps = 4, 32, 2

    key = jax.random.PRNGKey(0)
    kx, kadj, kg, kbg, kc, kbc, kd = jax.random.split(key, 7)

    x_seq = jax.random.normal(kx, (T, B, N, input_dim), dtype=jnp.float32)
    adj = jax.random.uniform(kadj, (N, N), dtype=jnp.float32)
    adj = adj / jnp.sum(adj, axis=1, keepdims=True)      # row-normalized random walk

    def xavier(k, shape):
        bound = (6.0 / (shape[-2] + shape[-1])) ** 0.5
        return jax.random.uniform(k, shape, jnp.float32, minval=-bound, maxval=bound)

    params = {
        "w_gate": xavier(kg, (input_dim + hidden_dim, 2 * hidden_dim)),
        "b_gate": jax.random.uniform(kbg, (2 * hidden_dim,), jnp.float32, -0.1, 0.1),
        "w_cand": xavier(kc, (input_dim + hidden_dim, hidden_dim)),
        "b_cand": jax.random.uniform(kbc, (hidden_dim,), jnp.float32, -0.1, 0.1),
        "w_diff": xavier(kd, (diffusion_steps + 1, hidden_dim, hidden_dim)),
    }

    ref = reference_forward(x_seq, adj, params, diffusion_steps)

    # f32 run — tolerance covers MXU f32 pass decomposition / accumulation order
    # (kernel chains A@(A@h) while the reference uses precomputed powers).
    out = spatio_temporal_block(x_seq, adj, params, max_step=diffusion_steps,
                                compute_dtype=jnp.float32)
    out = jax.block_until_ready(out)
    assert out.shape == (T, B, N, hidden_dim)
    assert jnp.allclose(out, ref, atol=5e-3, rtol=5e-3), "f32 kernel mismatch vs reference"

    # bf16 MXU-operand run (valid on v5e/v6e/v7x) — A-chain/state stay f32, so drift
    # stays bounded; loose sanity check vs the f32 reference.
    out_bf16 = spatio_temporal_block(x_seq, adj, params, max_step=diffusion_steps,
                                     compute_dtype=jnp.bfloat16,
                                     out_dtype=jnp.bfloat16)
    out_bf16 = jax.block_until_ready(out_bf16)
    assert jnp.allclose(out_bf16.astype(jnp.float32), ref, atol=1e-1, rtol=1e-1), \
        "bf16 kernel drifted vs reference"

    print("KERNEL_OK")
</pallas_src>

<mosaic_0001>
module attributes {stable_mosaic.version = 11 : i64} {
  func.func @_dcgru_seq_kernel(%arg0: i32, %arg1: i32, %arg2: memref<8x32x4xf32, #tpu.memory_space<vmem>>, %arg3: memref<16x16xf32, #tpu.memory_space<vmem>>, %arg4: memref<4x32xf32, #tpu.memory_space<vmem>>, %arg5: memref<32x32xf32, #tpu.memory_space<vmem>>, %arg6: memref<4x32xf32, #tpu.memory_space<vmem>>, %arg7: memref<32x32xf32, #tpu.memory_space<vmem>>, %arg8: memref<4x32xf32, #tpu.memory_space<vmem>>, %arg9: memref<32x32xf32, #tpu.memory_space<vmem>>, %arg10: memref<3x32x32xf32, #tpu.memory_space<vmem>>, %arg11: memref<1x32xf32, #tpu.memory_space<vmem>>, %arg12: memref<1x32xf32, #tpu.memory_space<vmem>>, %arg13: memref<1x32xf32, #tpu.memory_space<vmem>>, %arg14: memref<8x32x32xf32, #tpu.memory_space<vmem>>, %arg15: memref<32x32xf32, #tpu.memory_space<vmem>>) attributes {dimension_semantics = [#tpu.dimension_semantics<parallel>, #tpu.dimension_semantics<arbitrary>], iteration_bounds = array<i64: 1, 1>, scalar_prefetch = 0 : i64, scratch_operands = 1 : i64, tpu.core_type = #tpu.core_type<tc>, window_params = [{transform_indices = @transform_0, window_bounds = array<i64: 8, 32, 4>}, {pipeline_mode = #tpu.pipeline_mode<synchronous>, transform_indices = @transform_1, window_bounds = array<i64: 16, 16>}, {pipeline_mode = #tpu.pipeline_mode<synchronous>, transform_indices = @transform_2, window_bounds = array<i64: 4, 32>}, {pipeline_mode = #tpu.pipeline_mode<synchronous>, transform_indices = @transform_3, window_bounds = array<i64: 32, 32>}, {pipeline_mode = #tpu.pipeline_mode<synchronous>, transform_indices = @transform_4, window_bounds = array<i64: 4, 32>}, {pipeline_mode = #tpu.pipeline_mode<synchronous>, transform_indices = @transform_5, window_bounds = array<i64: 32, 32>}, {pipeline_mode = #tpu.pipeline_mode<synchronous>, transform_indices = @transform_6, window_bounds = array<i64: 4, 32>}, {pipeline_mode = #tpu.pipeline_mode<synchronous>, transform_indices = @transform_7, window_bounds = array<i64: 32, 32>}, {pipeline_mode = #tpu.pipeline_mode<synchronous>, transform_indices = @transform_8, window_bounds = array<i64: 3, 32, 32>}, {pipeline_mode = #tpu.pipeline_mode<synchronous>, transform_indices = @transform_9, window_bounds = array<i64: 1, 32>}, {pipeline_mode = #tpu.pipeline_mode<synchronous>, transform_indices = @transform_10, window_bounds = array<i64: 1, 32>}, {pipeline_mode = #tpu.pipeline_mode<synchronous>, transform_indices = @transform_11, window_bounds = array<i64: 1, 32>}, {transform_indices = @transform_12, window_bounds = array<i64: 8, 32, 32>}]} {
    %c0_i32 = arith.constant 0 : i32
    %0 = arith.cmpi eq, %arg1, %c0_i32 : i32
    %1 = arith.extui %0 : i1 to i32
    %c0_i32_0 = arith.constant 0 : i32
    %2 = arith.cmpi ne, %1, %c0_i32_0 : i32
    scf.if %2 {
      %cst_203 = arith.constant 0.000000e+00 : f32
      %429 = vector.broadcast %cst_203 : f32 to vector<32x32xf32>
      %c0_204 = arith.constant 0 : index
      %c0_205 = arith.constant 0 : index
      %430 = vector.load %arg15[%c0_204, %c0_205] : memref<32x32xf32, #tpu.memory_space<vmem>>, vector<32x32xf32>
      tpu.vector_store %arg15[%c0_204, %c0_205], %429 {strides = array<i32>} : memref<32x32xf32, #tpu.memory_space<vmem>>, vector<32x32xf32>,
    } else {
    }
    %c0 = arith.constant 0 : index
    %c0_1 = arith.constant 0 : index
    %3 = vector.load %arg3[%c0, %c0_1] : memref<16x16xf32, #tpu.memory_space<vmem>>, vector<16x16xf32>
    %4 = vector.shape_cast %3 : vector<16x16xf32> to vector<1x16x16xf32>
    %5 = vector.broadcast %4 : vector<1x16x16xf32> to vector<2x16x16xf32>
    %c0_2 = arith.constant 0 : index
    %c0_3 = arith.constant 0 : index
    %6 = vector.load %arg4[%c0_2, %c0_3] : memref<4x32xf32, #tpu.memory_space<vmem>>, vector<4x32xf32>
    %c0_4 = arith.constant 0 : index
    %c0_5 = arith.constant 0 : index
    %7 = vector.load %arg5[%c0_4, %c0_5] : memref<32x32xf32, #tpu.memory_space<vmem>>, vector<32x32xf32>
    %c0_6 = arith.constant 0 : index
    %c0_7 = arith.constant 0 : index
    %8 = vector.load %arg6[%c0_6, %c0_7] : memref<4x32xf32, #tpu.memory_space<vmem>>, vector<4x32xf32>
    %c0_8 = arith.constant 0 : index
    %c0_9 = arith.constant 0 : index
    %9 = vector.load %arg7[%c0_8, %c0_9] : memref<32x32xf32, #tpu.memory_space<vmem>>, vector<32x32xf32>
    %c0_10 = arith.constant 0 : index
    %c0_11 = arith.constant 0 : index
    %10 = vector.load %arg8[%c0_10, %c0_11] : memref<4x32xf32, #tpu.memory_space<vmem>>, vector<4x32xf32>
    %c0_12 = arith.constant 0 : index
    %c0_13 = arith.constant 0 : index
    %11 = vector.load %arg9[%c0_12, %c0_13] : memref<32x32xf32, #tpu.memory_space<vmem>>, vector<32x32xf32>
    %c0_14 = arith.constant 0 : index
    %c0_15 = arith.constant 0 : index
    %c0_16 = arith.constant 0 : index
    %12 = vector.load %arg10[%c0_14, %c0_15, %c0_16] : memref<3x32x32xf32, #tpu.memory_space<vmem>>, vector<1x32x32xf32>
    %13 = vector.shape_cast %12 : vector<1x32x32xf32> to vector<32x32xf32>
    %c1 = arith.constant 1 : index
    %c0_17 = arith.constant 0 : index
    %c0_18 = arith.constant 0 : index
    %14 = vector.load %arg10[%c1, %c0_17, %c0_18] : memref<3x32x32xf32, #tpu.memory_space<vmem>>, vector<1x32x32xf32>
    %15 = vector.shape_cast %14 : vector<1x32x32xf32> to vector<32x32xf32>
    %c2 = arith.constant 2 : index
    %c0_19 = arith.constant 0 : index
    %c0_20 = arith.constant 0 : index
    %16 = vector.load %arg10[%c2, %c0_19, %c0_20] : memref<3x32x32xf32, #tpu.memory_space<vmem>>, vector<1x32x32xf32>
    %17 = vector.shape_cast %16 : vector<1x32x32xf32> to vector<32x32xf32>
    %c0_21 = arith.constant 0 : index
    %c0_22 = arith.constant 0 : index
    %18 = vector.load %arg11[%c0_21, %c0_22] : memref<1x32xf32, #tpu.memory_space<vmem>>, vector<1x32xf32>
    %c0_23 = arith.constant 0 : index
    %c0_24 = arith.constant 0 : index
    %19 = vector.load %arg12[%c0_23, %c0_24] : memref<1x32xf32, #tpu.memory_space<vmem>>, vector<1x32xf32>
    %c0_25 = arith.constant 0 : index
    %c0_26 = arith.constant 0 : index
    %20 = vector.load %arg13[%c0_25, %c0_26] : memref<1x32xf32, #tpu.memory_space<vmem>>, vector<1x32xf32>
    %c0_i32_27 = arith.constant 0 : i32
    %c0_28 = arith.constant 0 : index
    %c0_29 = arith.constant 0 : index
    %21 = vector.load %arg15[%c0_28, %c0_29] : memref<32x32xf32, #tpu.memory_space<vmem>>, vector<32x32xf32>
    %22 = arith.index_cast %c0_i32_27 : i32 to index
    %c0_30 = arith.constant 0 : index
    %c0_31 = arith.constant 0 : index
    %23 = vector.load %arg2[%22, %c0_30, %c0_31] : memref<8x32x4xf32, #tpu.memory_space<vmem>>, vector<1x32x4xf32>
    %24 = vector.shape_cast %23 : vector<1x32x4xf32> to vector<32x4xf32>
    %cst = arith.constant dense<0.000000e+00> : vector<32x32xf32>
    %25 = tpu.matmul %24, %6, %cst {dimension_numbers = #tpu.dot_dimension_numbers<[1], [0], [0], [1], [0, 0, 1, 1], [], []>} : vector<32x4xf32>, vector<4x32xf32>, vector<32x32xf32> -> vector<32x32xf32>
    %cst_32 = arith.constant dense<0.000000e+00> : vector<32x32xf32>
    %26 = tpu.matmul %21, %7, %cst_32 {dimension_numbers = #tpu.dot_dimension_numbers<[1], [0], [0], [1], [0, 0, 1, 1], [], []>} : vector<32x32xf32>, vector<32x32xf32>, vector<32x32xf32> -> vector<32x32xf32>
    %27 = arith.addf %25, %26 : vector<32x32xf32>
    %28 = vector.broadcast %18 : vector<1x32xf32> to vector<32x32xf32>
    %29 = arith.addf %27, %28 : vector<32x32xf32>
    %30 = arith.negf %29 : vector<32x32xf32>
    %31 = math.exp %30 : vector<32x32xf32>
    %cst_33 = arith.constant 1.000000e+00 : f32
    %32 = vector.broadcast %cst_33 : f32 to vector<32x32xf32>
    %33 = arith.addf %32, %31 : vector<32x32xf32>
    %34 = arith.divf %32, %33 : vector<32x32xf32>
    %cst_34 = arith.constant dense<0.000000e+00> : vector<32x32xf32>
    %35 = tpu.matmul %24, %8, %cst_34 {dimension_numbers = #tpu.dot_dimension_numbers<[1], [0], [0], [1], [0, 0, 1, 1], [], []>} : vector<32x4xf32>, vector<4x32xf32>, vector<32x32xf32> -> vector<32x32xf32>
    %cst_35 = arith.constant dense<0.000000e+00> : vector<32x32xf32>
    %36 = tpu.matmul %21, %9, %cst_35 {dimension_numbers = #tpu.dot_dimension_numbers<[1], [0], [0], [1], [0, 0, 1, 1], [], []>} : vector<32x32xf32>, vector<32x32xf32>, vector<32x32xf32> -> vector<32x32xf32>
    %37 = arith.addf %35, %36 : vector<32x32xf32>
    %38 = vector.broadcast %19 : vector<1x32xf32> to vector<32x32xf32>
    %39 = arith.addf %37, %38 : vector<32x32xf32>
    %40 = arith.negf %39 : vector<32x32xf32>
    %41 = math.exp %40 : vector<32x32xf32>
    %cst_36 = arith.constant 1.000000e+00 : f32
    %42 = vector.broadcast %cst_36 : f32 to vector<32x32xf32>
    %43 = arith.addf %42, %41 : vector<32x32xf32>
    %44 = arith.divf %42, %43 : vector<32x32xf32>
    %cst_37 = arith.constant dense<0.000000e+00> : vector<32x32xf32>
    %45 = tpu.matmul %21, %13, %cst_37 {dimension_numbers = #tpu.dot_dimension_numbers<[1], [0], [0], [1], [0, 0, 1, 1], [], []>} : vector<32x32xf32>, vector<32x32xf32>, vector<32x32xf32> -> vector<32x32xf32>
    %46 = vector.shape_cast %21 : vector<32x32xf32> to vector<2x16x32xf32>
    "tpu.trace_start"() <{level = 10 : i32, message = "bnm,bmh->bnh"}> : () -> ()
    %cst_38 = arith.constant dense<0.000000e+00> : vector<2x16x32xf32>
    %47 = tpu.matmul %5, %46, %cst_38 {dimension_numbers = #tpu.dot_dimension_numbers<[2], [1], [1], [2], [0, 0, 0, 1, 1, 2], [0], [0]>} : vector<2x16x16xf32>, vector<2x16x32xf32>, vector<2x16x32xf32> -> vector<2x16x32xf32>
    "tpu.trace_stop"() : () -> ()
    %48 = vector.shape_cast %47 : vector<2x16x32xf32> to vector<32x32xf32>
    %cst_39 = arith.constant dense<0.000000e+00> : vector<32x32xf32>
    %49 = tpu.matmul %48, %15, %cst_39 {dimension_numbers = #tpu.dot_dimension_numbers<[1], [0], [0], [1], [0, 0, 1, 1], [], []>} : vector<32x32xf32>, vector<32x32xf32>, vector<32x32xf32> -> vector<32x32xf32>
    %50 = arith.addf %45, %49 : vector<32x32xf32>
    "tpu.trace_start"() <{level = 10 : i32, message = "bnm,bmh->bnh"}> : () -> ()
    %cst_40 = arith.constant dense<0.000000e+00> : vector<2x16x32xf32>
    %51 = tpu.matmul %5, %47, %cst_40 {dimension_numbers = #tpu.dot_dimension_numbers<[2], [1], [1], [2], [0, 0, 0, 1, 1, 2], [0], [0]>} : vector<2x16x16xf32>, vector<2x16x32xf32>, vector<2x16x32xf32> -> vector<2x16x32xf32>
    "tpu.trace_stop"() : () -> ()
    %52 = vector.shape_cast %51 : vector<2x16x32xf32> to vector<32x32xf32>
    %cst_41 = arith.constant dense<0.000000e+00> : vector<32x32xf32>
    %53 = tpu.matmul %52, %17, %cst_41 {dimension_numbers = #tpu.dot_dimension_numbers<[1], [0], [0], [1], [0, 0, 1, 1], [], []>} : vector<32x32xf32>, vector<32x32xf32>, vector<32x32xf32> -> vector<32x32xf32>
    %54 = arith.addf %50, %53 : vector<32x32xf32>
    %cst_42 = arith.constant dense<0.000000e+00> : vector<32x32xf32>
    %55 = tpu.matmul %24, %10, %cst_42 {dimension_numbers = #tpu.dot_dimension_numbers<[1], [0], [0], [1], [0, 0, 1, 1], [], []>} : vector<32x4xf32>, vector<4x32xf32>, vector<32x32xf32> -> vector<32x32xf32>
    %56 = arith.mulf %34, %54 : vector<32x32xf32>
    %cst_43 = arith.constant dense<0.000000e+00> : vector<32x32xf32>
    %57 = tpu.matmul %56, %11, %cst_43 {dimension_numbers = #tpu.dot_dimension_numbers<[1], [0], [0], [1], [0, 0, 1, 1], [], []>} : vector<32x32xf32>, vector<32x32xf32>, vector<32x32xf32> -> vector<32x32xf32>
    %58 = arith.addf %55, %57 : vector<32x32xf32>
    %59 = vector.broadcast %20 : vector<1x32xf32> to vector<32x32xf32>
    %60 = arith.addf %58, %59 : vector<32x32xf32>
    %61 = math.tanh %60 : vector<32x32xf32>
    %62 = arith.mulf %44, %21 : vector<32x32xf32>
    %cst_44 = arith.constant 1.000000e+00 : f32
    %63 = vector.broadcast %cst_44 : f32 to vector<32x32xf32>
    %64 = arith.subf %63, %44 : vector<32x32xf32>
    %65 = arith.mulf %64, %61 : vector<32x32xf32>
    %66 = arith.addf %62, %65 : vector<32x32xf32>
    %c0_45 = arith.constant 0 : index
    %c0_46 = arith.constant 0 : index
    %67 = vector.load %arg15[%c0_45, %c0_46] : memref<32x32xf32, #tpu.memory_space<vmem>>, vector<32x32xf32>
    tpu.vector_store %arg15[%c0_45, %c0_46], %66 {strides = array<i32>} : memref<32x32xf32, #tpu.memory_space<vmem>>, vector<32x32xf32>,
    %68 = arith.index_cast %c0_i32_27 : i32 to index
    %c0_47 = arith.constant 0 : index
    %c0_48 = arith.constant 0 : index
    %69 = vector.load %arg14[%68, %c0_47, %c0_48] : memref<8x32x32xf32, #tpu.memory_space<vmem>>, vector<1x32x32xf32>
    %70 = vector.shape_cast %69 : vector<1x32x32xf32> to vector<32x32xf32>
    %71 = vector.shape_cast %66 : vector<32x32xf32> to vector<1x32x32xf32>
    tpu.vector_store %arg14[%68, %c0_47, %c0_48], %71 {strides = array<i32>} : memref<8x32x32xf32, #tpu.memory_space<vmem>>, vector<1x32x32xf32>,
    %c1_i32 = arith.constant 1 : i32
    %c0_49 = arith.constant 0 : index
    %c0_50 = arith.constant 0 : index
    %72 = vector.load %arg15[%c0_49, %c0_50] : memref<32x32xf32, #tpu.memory_space<vmem>>, vector<32x32xf32>
    %73 = arith.index_cast %c1_i32 : i32 to index
    %c0_51 = arith.constant 0 : index
    %c0_52 = arith.constant 0 : index
    %74 = vector.load %arg2[%73, %c0_51, %c0_52] : memref<8x32x4xf32, #tpu.memory_space<vmem>>, vector<1x32x4xf32>
    %75 = vector.shape_cast %74 : vector<1x32x4xf32> to vector<32x4xf32>
    %cst_53 = arith.constant dense<0.000000e+00> : vector<32x32xf32>
    %76 = tpu.matmul %75, %6, %cst_53 {dimension_numbers = #tpu.dot_dimension_numbers<[1], [0], [0], [1], [0, 0, 1, 1], [], []>} : vector<32x4xf32>, vector<4x32xf32>, vector<32x32xf32> -> vector<32x32xf32>
    %cst_54 = arith.constant dense<0.000000e+00> : vector<32x32xf32>
    %77 = tpu.matmul %72, %7, %cst_54 {dimension_numbers = #tpu.dot_dimension_numbers<[1], [0], [0], [1], [0, 0, 1, 1], [], []>} : vector<32x32xf32>, vector<32x32xf32>, vector<32x32xf32> -> vector<32x32xf32>
    %78 = arith.addf %76, %77 : vector<32x32xf32>
    %79 = vector.broadcast %18 : vector<1x32xf32> to vector<32x32xf32>
    %80 = arith.addf %78, %79 : vector<32x32xf32>
    %81 = arith.negf %80 : vector<32x32xf32>
    %82 = math.exp %81 : vector<32x32xf32>
    %cst_55 = arith.constant 1.000000e+00 : f32
    %83 = vector.broadcast %cst_55 : f32 to vector<32x32xf32>
    %84 = arith.addf %83, %82 : vector<32x32xf32>
    %85 = arith.divf %83, %84 : vector<32x32xf32>
    %cst_56 = arith.constant dense<0.000000e+00> : vector<32x32xf32>
    %86 = tpu.matmul %75, %8, %cst_56 {dimension_numbers = #tpu.dot_dimension_numbers<[1], [0], [0], [1], [0, 0, 1, 1], [], []>} : vector<32x4xf32>, vector<4x32xf32>, vector<32x32xf32> -> vector<32x32xf32>
    %cst_57 = arith.constant dense<0.000000e+00> : vector<32x32xf32>
    %87 = tpu.matmul %72, %9, %cst_57 {dimension_numbers = #tpu.dot_dimension_numbers<[1], [0], [0], [1], [0, 0, 1, 1], [], []>} : vector<32x32xf32>, vector<32x32xf32>, vector<32x32xf32> -> vector<32x32xf32>
    %88 = arith.addf %86, %87 : vector<32x32xf32>
    %89 = vector.broadcast %19 : vector<1x32xf32> to vector<32x32xf32>
    %90 = arith.addf %88, %89 : vector<32x32xf32>
    %91 = arith.negf %90 : vector<32x32xf32>
    %92 = math.exp %91 : vector<32x32xf32>
    %cst_58 = arith.constant 1.000000e+00 : f32
    %93 = vector.broadcast %cst_58 : f32 to vector<32x32xf32>
    %94 = arith.addf %93, %92 : vector<32x32xf32>
    %95 = arith.divf %93, %94 : vector<32x32xf32>
    %cst_59 = arith.constant dense<0.000000e+00> : vector<32x32xf32>
    %96 = tpu.matmul %72, %13, %cst_59 {dimension_numbers = #tpu.dot_dimension_numbers<[1], [0], [0], [1], [0, 0, 1, 1], [], []>} : vector<32x32xf32>, vector<32x32xf32>, vector<32x32xf32> -> vector<32x32xf32>
    %97 = vector.shape_cast %72 : vector<32x32xf32> to vector<2x16x32xf32>
    "tpu.trace_start"() <{level = 10 : i32, message = "bnm,bmh->bnh"}> : () -> ()
    %cst_60 = arith.constant dense<0.000000e+00> : vector<2x16x32xf32>
    %98 = tpu.matmul %5, %97, %cst_60 {dimension_numbers = #tpu.dot_dimension_numbers<[2], [1], [1], [2], [0, 0, 0, 1, 1, 2], [0], [0]>} : vector<2x16x16xf32>, vector<2x16x32xf32>, vector<2x16x32xf32> -> vector<2x16x32xf32>
    "tpu.trace_stop"() : () -> ()
    %99 = vector.shape_cast %98 : vector<2x16x32xf32> to vector<32x32xf32>
    %cst_61 = arith.constant dense<0.000000e+00> : vector<32x32xf32>
    %100 = tpu.matmul %99, %15, %cst_61 {dimension_numbers = #tpu.dot_dimension_numbers<[1], [0], [0], [1], [0, 0, 1, 1], [], []>} : vector<32x32xf32>, vector<32x32xf32>, vector<32x32xf32> -> vector<32x32xf32>
    %101 = arith.addf %96, %100 : vector<32x32xf32>
    "tpu.trace_start"() <{level = 10 : i32, message = "bnm,bmh->bnh"}> : () -> ()
    %cst_62 = arith.constant dense<0.000000e+00> : vector<2x16x32xf32>
    %102 = tpu.matmul %5, %98, %cst_62 {dimension_numbers = #tpu.dot_dimension_numbers<[2], [1], [1], [2], [0, 0, 0, 1, 1, 2], [0], [0]>} : vector<2x16x16xf32>, vector<2x16x32xf32>, vector<2x16x32xf32> -> vector<2x16x32xf32>
    "tpu.trace_stop"() : () -> ()
    %103 = vector.shape_cast %102 : vector<2x16x32xf32> to vector<32x32xf32>
    %cst_63 = arith.constant dense<0.000000e+00> : vector<32x32xf32>
    %104 = tpu.matmul %103, %17, %cst_63 {dimension_numbers = #tpu.dot_dimension_numbers<[1], [0], [0], [1], [0, 0, 1, 1], [], []>} : vector<32x32xf32>, vector<32x32xf32>, vector<32x32xf32> -> vector<32x32xf32>
    %105 = arith.addf %101, %104 : vector<32x32xf32>
    %cst_64 = arith.constant dense<0.000000e+00> : vector<32x32xf32>
    %106 = tpu.matmul %75, %10, %cst_64 {dimension_numbers = #tpu.dot_dimension_numbers<[1], [0], [0], [1], [0, 0, 1, 1], [], []>} : vector<32x4xf32>, vector<4x32xf32>, vector<32x32xf32> -> vector<32x32xf32>
    %107 = arith.mulf %85, %105 : vector<32x32xf32>
    %cst_65 = arith.constant dense<0.000000e+00> : vector<32x32xf32>
    %108 = tpu.matmul %107, %11, %cst_65 {dimension_numbers = #tpu.dot_dimension_numbers<[1], [0], [0], [1], [0, 0, 1, 1], [], []>} : vector<32x32xf32>, vector<32x32xf32>, vector<32x32xf32> -> vector<32x32xf32>
    %109 = arith.addf %106, %108 : vector<32x32xf32>
    %110 = vector.broadcast %20 : vector<1x32xf32> to vector<32x32xf32>
    %111 = arith.addf %109, %110 : vector<32x32xf32>
    %112 = math.tanh %111 : vector<32x32xf32>
    %113 = arith.mulf %95, %72 : vector<32x32xf32>
    %cst_66 = arith.constant 1.000000e+00 : f32
    %114 = vector.broadcast %cst_66 : f32 to vector<32x32xf32>
    %115 = arith.subf %114, %95 : vector<32x32xf32>
    %116 = arith.mulf %115, %112 : vector<32x32xf32>
    %117 = arith.addf %113, %116 : vector<32x32xf32>
    %c0_67 = arith.constant 0 : index
    %c0_68 = arith.constant 0 : index
    %118 = vector.load %arg15[%c0_67, %c0_68] : memref<32x32xf32, #tpu.memory_space<vmem>>, vector<32x32xf32>
    tpu.vector_store %arg15[%c0_67, %c0_68], %117 {strides = array<i32>} : memref<32x32xf32, #tpu.memory_space<vmem>>, vector<32x32xf32>,
    %119 = arith.index_cast %c1_i32 : i32 to index
    %c0_69 = arith.constant 0 : index
    %c0_70 = arith.constant 0 : index
    %120 = vector.load %arg14[%119, %c0_69, %c0_70] : memref<8x32x32xf32, #tpu.memory_space<vmem>>, vector<1x32x32xf32>
    %121 = vector.shape_cast %120 : vector<1x32x32xf32> to vector<32x32xf32>
    %122 = vector.shape_cast %117 : vector<32x32xf32> to vector<1x32x32xf32>
    tpu.vector_store %arg14[%119, %c0_69, %c0_70], %122 {strides = array<i32>} : memref<8x32x32xf32, #tpu.memory_space<vmem>>, vector<1x32x32xf32>,
    %c2_i32 = arith.constant 2 : i32
    %c0_71 = arith.constant 0 : index
    %c0_72 = arith.constant 0 : index
    %123 = vector.load %arg15[%c0_71, %c0_72] : memref<32x32xf32, #tpu.memory_space<vmem>>, vector<32x32xf32>
    %124 = arith.index_cast %c2_i32 : i32 to index
    %c0_73 = arith.constant 0 : index
    %c0_74 = arith.constant 0 : index
    %125 = vector.load %arg2[%124, %c0_73, %c0_74] : memref<8x32x4xf32, #tpu.memory_space<vmem>>, vector<1x32x4xf32>
    %126 = vector.shape_cast %125 : vector<1x32x4xf32> to vector<32x4xf32>
    %cst_75 = arith.constant dense<0.000000e+00> : vector<32x32xf32>
    %127 = tpu.matmul %126, %6, %cst_75 {dimension_numbers = #tpu.dot_dimension_numbers<[1], [0], [0], [1], [0, 0, 1, 1], [], []>} : vector<32x4xf32>, vector<4x32xf32>, vector<32x32xf32> -> vector<32x32xf32>
    %cst_76 = arith.constant dense<0.000000e+00> : vector<32x32xf32>
    %128 = tpu.matmul %123, %7, %cst_76 {dimension_numbers = #tpu.dot_dimension_numbers<[1], [0], [0], [1], [0, 0, 1, 1], [], []>} : vector<32x32xf32>, vector<32x32xf32>, vector<32x32xf32> -> vector<32x32xf32>
    %129 = arith.addf %127, %128 : vector<32x32xf32>
    %130 = vector.broadcast %18 : vector<1x32xf32> to vector<32x32xf32>
    %131 = arith.addf %129, %130 : vector<32x32xf32>
    %132 = arith.negf %131 : vector<32x32xf32>
    %133 = math.exp %132 : vector<32x32xf32>
    %cst_77 = arith.constant 1.000000e+00 : f32
    %134 = vector.broadcast %cst_77 : f32 to vector<32x32xf32>
    %135 = arith.addf %134, %133 : vector<32x32xf32>
    %136 = arith.divf %134, %135 : vector<32x32xf32>
    %cst_78 = arith.constant dense<0.000000e+00> : vector<32x32xf32>
    %137 = tpu.matmul %126, %8, %cst_78 {dimension_numbers = #tpu.dot_dimension_numbers<[1], [0], [0], [1], [0, 0, 1, 1], [], []>} : vector<32x4xf32>, vector<4x32xf32>, vector<32x32xf32> -> vector<32x32xf32>
    %cst_79 = arith.constant dense<0.000000e+00> : vector<32x32xf32>
    %138 = tpu.matmul %123, %9, %cst_79 {dimension_numbers = #tpu.dot_dimension_numbers<[1], [0], [0], [1], [0, 0, 1, 1], [], []>} : vector<32x32xf32>, vector<32x32xf32>, vector<32x32xf32> -> vector<32x32xf32>
    %139 = arith.addf %137, %138 : vector<32x32xf32>
    %140 = vector.broadcast %19 : vector<1x32xf32> to vector<32x32xf32>
    %141 = arith.addf %139, %140 : vector<32x32xf32>
    %142 = arith.negf %141 : vector<32x32xf32>
    %143 = math.exp %142 : vector<32x32xf32>
    %cst_80 = arith.constant 1.000000e+00 : f32
    %144 = vector.broadcast %cst_80 : f32 to vector<32x32xf32>
    %145 = arith.addf %144, %143 : vector<32x32xf32>
    %146 = arith.divf %144, %145 : vector<32x32xf32>
    %cst_81 = arith.constant dense<0.000000e+00> : vector<32x32xf32>
    %147 = tpu.matmul %123, %13, %cst_81 {dimension_numbers = #tpu.dot_dimension_numbers<[1], [0], [0], [1], [0, 0, 1, 1], [], []>} : vector<32x32xf32>, vector<32x32xf32>, vector<32x32xf32> -> vector<32x32xf32>
    %148 = vector.shape_cast %123 : vector<32x32xf32> to vector<2x16x32xf32>
    "tpu.trace_start"() <{level = 10 : i32, message = "bnm,bmh->bnh"}> : () -> ()
    %cst_82 = arith.constant dense<0.000000e+00> : vector<2x16x32xf32>
    %149 = tpu.matmul %5, %148, %cst_82 {dimension_numbers = #tpu.dot_dimension_numbers<[2], [1], [1], [2], [0, 0, 0, 1, 1, 2], [0], [0]>} : vector<2x16x16xf32>, vector<2x16x32xf32>, vector<2x16x32xf32> -> vector<2x16x32xf32>
    "tpu.trace_stop"() : () -> ()
    %150 = vector.shape_cast %149 : vector<2x16x32xf32> to vector<32x32xf32>
    %cst_83 = arith.constant dense<0.000000e+00> : vector<32x32xf32>
    %151 = tpu.matmul %150, %15, %cst_83 {dimension_numbers = #tpu.dot_dimension_numbers<[1], [0], [0], [1], [0, 0, 1, 1], [], []>} : vector<32x32xf32>, vector<32x32xf32>, vector<32x32xf32> -> vector<32x32xf32>
    %152 = arith.addf %147, %151 : vector<32x32xf32>
    "tpu.trace_start"() <{level = 10 : i32, message = "bnm,bmh->bnh"}> : () -> ()
    %cst_84 = arith.constant dense<0.000000e+00> : vector<2x16x32xf32>
    %153 = tpu.matmul %5, %149, %cst_84 {dimension_numbers = #tpu.dot_dimension_numbers<[2], [1], [1], [2], [0, 0, 0, 1, 1, 2], [0], [0]>} : vector<2x16x16xf32>, vector<2x16x32xf32>, vector<2x16x32xf32> -> vector<2x16x32xf32>
    "tpu.trace_stop"() : () -> ()
    %154 = vector.shape_cast %153 : vector<2x16x32xf32> to vector<32x32xf32>
    %cst_85 = arith.constant dense<0.000000e+00> : vector<32x32xf32>
    %155 = tpu.matmul %154, %17, %cst_85 {dimension_numbers = #tpu.dot_dimension_numbers<[1], [0], [0], [1], [0, 0, 1, 1], [], []>} : vector<32x32xf32>, vector<32x32xf32>, vector<32x32xf32> -> vector<32x32xf32>
    %156 = arith.addf %152, %155 : vector<32x32xf32>
    %cst_86 = arith.constant dense<0.000000e+00> : vector<32x32xf32>
    %157 = tpu.matmul %126, %10, %cst_86 {dimension_numbers = #tpu.dot_dimension_numbers<[1], [0], [0], [1], [0, 0, 1, 1], [], []>} : vector<32x4xf32>, vector<4x32xf32>, vector<32x32xf32> -> vector<32x32xf32>
    %158 = arith.mulf %136, %156 : vector<32x32xf32>
    %cst_87 = arith.constant dense<0.000000e+00> : vector<32x32xf32>
    %159 = tpu.matmul %158, %11, %cst_87 {dimension_numbers = #tpu.dot_dimension_numbers<[1], [0], [0], [1], [0, 0, 1, 1], [], []>} : vector<32x32xf32>, vector<32x32xf32>, vector<32x32xf32> -> vector<32x32xf32>
    %160 = arith.addf %157, %159 : vector<32x32xf32>
    %161 = vector.broadcast %20 : vector<1x32xf32> to vector<32x32xf32>
    %162 = arith.addf %160, %161 : vector<32x32xf32>
    %163 = math.tanh %162 : vector<32x32xf32>
    %164 = arith.mulf %146, %123 : vector<32x32xf32>
    %cst_88 = arith.constant 1.000000e+00 : f32
    %165 = vector.broadcast %cst_88 : f32 to vector<32x32xf32>
    %166 = arith.subf %165, %146 : vector<32x32xf32>
    %167 = arith.mulf %166, %163 : vector<32x32xf32>
    %168 = arith.addf %164, %167 : vector<32x32xf32>
    %c0_89 = arith.constant 0 : index
    %c0_90 = arith.constant 0 : index
    %169 = vector.load %arg15[%c0_89, %c0_90] : memref<32x32xf32, #tpu.memory_space<vmem>>, vector<32x32xf32>
    tpu.vector_store %arg15[%c0_89, %c0_90], %168 {strides = array<i32>} : memref<32x32xf32, #tpu.memory_space<vmem>>, vector<32x32xf32>,
    %170 = arith.index_cast %c2_i32 : i32 to index
    %c0_91 = arith.constant 0 : index
    %c0_92 = arith.constant 0 : index
    %171 = vector.load %arg14[%170, %c0_91, %c0_92] : memref<8x32x32xf32, #tpu.memory_space<vmem>>, vector<1x32x32xf32>
    %172 = vector.shape_cast %171 : vector<1x32x32xf32> to vector<32x32xf32>
    %173 = vector.shape_cast %168 : vector<32x32xf32> to vector<1x32x32xf32>
    tpu.vector_store %arg14[%170, %c0_91, %c0_92], %173 {strides = array<i32>} : memref<8x32x32xf32, #tpu.memory_space<vmem>>, vector<1x32x32xf32>,
    %c3_i32 = arith.constant 3 : i32
    %c0_93 = arith.constant 0 : index
    %c0_94 = arith.constant 0 : index
    %174 = vector.load %arg15[%c0_93, %c0_94] : memref<32x32xf32, #tpu.memory_space<vmem>>, vector<32x32xf32>
    %175 = arith.index_cast %c3_i32 : i32 to index
    %c0_95 = arith.constant 0 : index
    %c0_96 = arith.constant 0 : index
    %176 = vector.load %arg2[%175, %c0_95, %c0_96] : memref<8x32x4xf32, #tpu.memory_space<vmem>>, vector<1x32x4xf32>
    %177 = vector.shape_cast %176 : vector<1x32x4xf32> to vector<32x4xf32>
    %cst_97 = arith.constant dense<0.000000e+00> : vector<32x32xf32>
    %178 = tpu.matmul %177, %6, %cst_97 {dimension_numbers = #tpu.dot_dimension_numbers<[1], [0], [0], [1], [0, 0, 1, 1], [], []>} : vector<32x4xf32>, vector<4x32xf32>, vector<32x32xf32> -> vector<32x32xf32>
    %cst_98 = arith.constant dense<0.000000e+00> : vector<32x32xf32>
    %179 = tpu.matmul %174, %7, %cst_98 {dimension_numbers = #tpu.dot_dimension_numbers<[1], [0], [0], [1], [0, 0, 1, 1], [], []>} : vector<32x32xf32>, vector<32x32xf32>, vector<32x32xf32> -> vector<32x32xf32>
    %180 = arith.addf %178, %179 : vector<32x32xf32>
    %181 = vector.broadcast %18 : vector<1x32xf32> to vector<32x32xf32>
    %182 = arith.addf %180, %181 : vector<32x32xf32>
    %183 = arith.negf %182 : vector<32x32xf32>
    %184 = math.exp %183 : vector<32x32xf32>
    %cst_99 = arith.constant 1.000000e+00 : f32
    %185 = vector.broadcast %cst_99 : f32 to vector<32x32xf32>
    %186 = arith.addf %185, %184 : vector<32x32xf32>
    %187 = arith.divf %185, %186 : vector<32x32xf32>
    %cst_100 = arith.constant dense<0.000000e+00> : vector<32x32xf32>
    %188 = tpu.matmul %177, %8, %cst_100 {dimension_numbers = #tpu.dot_dimension_numbers<[1], [0], [0], [1], [0, 0, 1, 1], [], []>} : vector<32x4xf32>, vector<4x32xf32>, vector<32x32xf32> -> vector<32x32xf32>
    %cst_101 = arith.constant dense<0.000000e+00> : vector<32x32xf32>
    %189 = tpu.matmul %174, %9, %cst_101 {dimension_numbers = #tpu.dot_dimension_numbers<[1], [0], [0], [1], [0, 0, 1, 1], [], []>} : vector<32x32xf32>, vector<32x32xf32>, vector<32x32xf32> -> vector<32x32xf32>
    %190 = arith.addf %188, %189 : vector<32x32xf32>
    %191 = vector.broadcast %19 : vector<1x32xf32> to vector<32x32xf32>
    %192 = arith.addf %190, %191 : vector<32x32xf32>
    %193 = arith.negf %192 : vector<32x32xf32>
    %194 = math.exp %193 : vector<32x32xf32>
    %cst_102 = arith.constant 1.000000e+00 : f32
    %195 = vector.broadcast %cst_102 : f32 to vector<32x32xf32>
    %196 = arith.addf %195, %194 : vector<32x32xf32>
    %197 = arith.divf %195, %196 : vector<32x32xf32>
    %cst_103 = arith.constant dense<0.000000e+00> : vector<32x32xf32>
    %198 = tpu.matmul %174, %13, %cst_103 {dimension_numbers = #tpu.dot_dimension_numbers<[1], [0], [0], [1], [0, 0, 1, 1], [], []>} : vector<32x32xf32>, vector<32x32xf32>, vector<32x32xf32> -> vector<32x32xf32>
    %199 = vector.shape_cast %174 : vector<32x32xf32> to vector<2x16x32xf32>
    "tpu.trace_start"() <{level = 10 : i32, message = "bnm,bmh->bnh"}> : () -> ()
    %cst_104 = arith.constant dense<0.000000e+00> : vector<2x16x32xf32>
    %200 = tpu.matmul %5, %199, %cst_104 {dimension_numbers = #tpu.dot_dimension_numbers<[2], [1], [1], [2], [0, 0, 0, 1, 1, 2], [0], [0]>} : vector<2x16x16xf32>, vector<2x16x32xf32>, vector<2x16x32xf32> -> vector<2x16x32xf32>
    "tpu.trace_stop"() : () -> ()
    %201 = vector.shape_cast %200 : vector<2x16x32xf32> to vector<32x32xf32>
    %cst_105 = arith.constant dense<0.000000e+00> : vector<32x32xf32>
    %202 = tpu.matmul %201, %15, %cst_105 {dimension_numbers = #tpu.dot_dimension_numbers<[1], [0], [0], [1], [0, 0, 1, 1], [], []>} : vector<32x32xf32>, vector<32x32xf32>, vector<32x32xf32> -> vector<32x32xf32>
    %203 = arith.addf %198, %202 : vector<32x32xf32>
    "tpu.trace_start"() <{level = 10 : i32, message = "bnm,bmh->bnh"}> : () -> ()
    %cst_106 = arith.constant dense<0.000000e+00> : vector<2x16x32xf32>
    %204 = tpu.matmul %5, %200, %cst_106 {dimension_numbers = #tpu.dot_dimension_numbers<[2], [1], [1], [2], [0, 0, 0, 1, 1, 2], [0], [0]>} : vector<2x16x16xf32>, vector<2x16x32xf32>, vector<2x16x32xf32> -> vector<2x16x32xf32>
    "tpu.trace_stop"() : () -> ()
    %205 = vector.shape_cast %204 : vector<2x16x32xf32> to vector<32x32xf32>
    %cst_107 = arith.constant dense<0.000000e+00> : vector<32x32xf32>
    %206 = tpu.matmul %205, %17, %cst_107 {dimension_numbers = #tpu.dot_dimension_numbers<[1], [0], [0], [1], [0, 0, 1, 1], [], []>} : vector<32x32xf32>, vector<32x32xf32>, vector<32x32xf32> -> vector<32x32xf32>
    %207 = arith.addf %203, %206 : vector<32x32xf32>
    %cst_108 = arith.constant dense<0.000000e+00> : vector<32x32xf32>
    %208 = tpu.matmul %177, %10, %cst_108 {dimension_numbers = #tpu.dot_dimension_numbers<[1], [0], [0], [1], [0, 0, 1, 1], [], []>} : vector<32x4xf32>, vector<4x32xf32>, vector<32x32xf32> -> vector<32x32xf32>
    %209 = arith.mulf %187, %207 : vector<32x32xf32>
    %cst_109 = arith.constant dense<0.000000e+00> : vector<32x32xf32>
    %210 = tpu.matmul %209, %11, %cst_109 {dimension_numbers = #tpu.dot_dimension_numbers<[1], [0], [0], [1], [0, 0, 1, 1], [], []>} : vector<32x32xf32>, vector<32x32xf32>, vector<32x32xf32> -> vector<32x32xf32>
    %211 = arith.addf %208, %210 : vector<32x32xf32>
    %212 = vector.broadcast %20 : vector<1x32xf32> to vector<32x32xf32>
    %213 = arith.addf %211, %212 : vector<32x32xf32>
    %214 = math.tanh %213 : vector<32x32xf32>
    %215 = arith.mulf %197, %174 : vector<32x32xf32>
    %cst_110 = arith.constant 1.000000e+00 : f32
    %216 = vector.broadcast %cst_110 : f32 to vector<32x32xf32>
    %217 = arith.subf %216, %197 : vector<32x32xf32>
    %218 = arith.mulf %217, %214 : vector<32x32xf32>
    %219 = arith.addf %215, %218 : vector<32x32xf32>
    %c0_111 = arith.constant 0 : index
    %c0_112 = arith.constant 0 : index
    %220 = vector.load %arg15[%c0_111, %c0_112] : memref<32x32xf32, #tpu.memory_space<vmem>>, vector<32x32xf32>
    tpu.vector_store %arg15[%c0_111, %c0_112], %219 {strides = array<i32>} : memref<32x32xf32, #tpu.memory_space<vmem>>, vector<32x32xf32>,
    %221 = arith.index_cast %c3_i32 : i32 to index
    %c0_113 = arith.constant 0 : index
    %c0_114 = arith.constant 0 : index
    %222 = vector.load %arg14[%221, %c0_113, %c0_114] : memref<8x32x32xf32, #tpu.memory_space<vmem>>, vector<1x32x32xf32>
    %223 = vector.shape_cast %222 : vector<1x32x32xf32> to vector<32x32xf32>
    %224 = vector.shape_cast %219 : vector<32x32xf32> to vector<1x32x32xf32>
    tpu.vector_store %arg14[%221, %c0_113, %c0_114], %224 {strides = array<i32>} : memref<8x32x32xf32, #tpu.memory_space<vmem>>, vector<1x32x32xf32>,
    %c4_i32 = arith.constant 4 : i32
    %c0_115 = arith.constant 0 : index
    %c0_116 = arith.constant 0 : index
    %225 = vector.load %arg15[%c0_115, %c0_116] : memref<32x32xf32, #tpu.memory_space<vmem>>, vector<32x32xf32>
    %226 = arith.index_cast %c4_i32 : i32 to index
    %c0_117 = arith.constant 0 : index
    %c0_118 = arith.constant 0 : index
    %227 = vector.load %arg2[%226, %c0_117, %c0_118] : memref<8x32x4xf32, #tpu.memory_space<vmem>>, vector<1x32x4xf32>
    %228 = vector.shape_cast %227 : vector<1x32x4xf32> to vector<32x4xf32>
    %cst_119 = arith.constant dense<0.000000e+00> : vector<32x32xf32>
    %229 = tpu.matmul %228, %6, %cst_119 {dimension_numbers = #tpu.dot_dimension_numbers<[1], [0], [0], [1], [0, 0, 1, 1], [], []>} : vector<32x4xf32>, vector<4x32xf32>, vector<32x32xf32> -> vector<32x32xf32>
    %cst_120 = arith.constant dense<0.000000e+00> : vector<32x32xf32>
    %230 = tpu.matmul %225, %7, %cst_120 {dimension_numbers = #tpu.dot_dimension_numbers<[1], [0], [0], [1], [0, 0, 1, 1], [], []>} : vector<32x32xf32>, vector<32x32xf32>, vector<32x32xf32> -> vector<32x32xf32>
    %231 = arith.addf %229, %230 : vector<32x32xf32>
    %232 = vector.broadcast %18 : vector<1x32xf32> to vector<32x32xf32>
    %233 = arith.addf %231, %232 : vector<32x32xf32>
    %234 = arith.negf %233 : vector<32x32xf32>
    %235 = math.exp %234 : vector<32x32xf32>
    %cst_121 = arith.constant 1.000000e+00 : f32
    %236 = vector.broadcast %cst_121 : f32 to vector<32x32xf32>
    %237 = arith.addf %236, %235 : vector<32x32xf32>
    %238 = arith.divf %236, %237 : vector<32x32xf32>
    %cst_122 = arith.constant dense<0.000000e+00> : vector<32x32xf32>
    %239 = tpu.matmul %228, %8, %cst_122 {dimension_numbers = #tpu.dot_dimension_numbers<[1], [0], [0], [1], [0, 0, 1, 1], [], []>} : vector<32x4xf32>, vector<4x32xf32>, vector<32x32xf32> -> vector<32x32xf32>
    %cst_123 = arith.constant dense<0.000000e+00> : vector<32x32xf32>
    %240 = tpu.matmul %225, %9, %cst_123 {dimension_numbers = #tpu.dot_dimension_numbers<[1], [0], [0], [1], [0, 0, 1, 1], [], []>} : vector<32x32xf32>, vector<32x32xf32>, vector<32x32xf32> -> vector<32x32xf32>
    %241 = arith.addf %239, %240 : vector<32x32xf32>
    %242 = vector.broadcast %19 : vector<1x32xf32> to vector<32x32xf32>
    %243 = arith.addf %241, %242 : vector<32x32xf32>
    %244 = arith.negf %243 : vector<32x32xf32>
    %245 = math.exp %244 : vector<32x32xf32>
    %cst_124 = arith.constant 1.000000e+00 : f32
    %246 = vector.broadcast %cst_124 : f32 to vector<32x32xf32>
    %247 = arith.addf %246, %245 : vector<32x32xf32>
    %248 = arith.divf %246, %247 : vector<32x32xf32>
    %cst_125 = arith.constant dense<0.000000e+00> : vector<32x32xf32>
    %249 = tpu.matmul %225, %13, %cst_125 {dimension_numbers = #tpu.dot_dimension_numbers<[1], [0], [0], [1], [0, 0, 1, 1], [], []>} : vector<32x32xf32>, vector<32x32xf32>, vector<32x32xf32> -> vector<32x32xf32>
    %250 = vector.shape_cast %225 : vector<32x32xf32> to vector<2x16x32xf32>
    "tpu.trace_start"() <{level = 10 : i32, message = "bnm,bmh->bnh"}> : () -> ()
    %cst_126 = arith.constant dense<0.000000e+00> : vector<2x16x32xf32>
    %251 = tpu.matmul %5, %250, %cst_126 {dimension_numbers = #tpu.dot_dimension_numbers<[2], [1], [1], [2], [0, 0, 0, 1, 1, 2], [0], [0]>} : vector<2x16x16xf32>, vector<2x16x32xf32>, vector<2x16x32xf32> -> vector<2x16x32xf32>
    "tpu.trace_stop"() : () -> ()
    %252 = vector.shape_cast %251 : vector<2x16x32xf32> to vector<32x32xf32>
    %cst_127 = arith.constant dense<0.000000e+00> : vector<32x32xf32>
    %253 = tpu.matmul %252, %15, %cst_127 {dimension_numbers = #tpu.dot_dimension_numbers<[1], [0], [0], [1], [0, 0, 1, 1], [], []>} : vector<32x32xf32>, vector<32x32xf32>, vector<32x32xf32> -> vector<32x32xf32>
    %254 = arith.addf %249, %253 : vector<32x32xf32>
    "tpu.trace_start"() <{level = 10 : i32, message = "bnm,bmh->bnh"}> : () -> ()
    %cst_128 = arith.constant dense<0.000000e+00> : vector<2x16x32xf32>
    %255 = tpu.matmul %5, %251, %cst_128 {dimension_numbers = #tpu.dot_dimension_numbers<[2], [1], [1], [2], [0, 0, 0, 1, 1, 2], [0], [0]>} : vector<2x16x16xf32>, vector<2x16x32xf32>, vector<2x16x32xf32> -> vector<2x16x32xf32>
    "tpu.trace_stop"() : () -> ()
    %256 = vector.shape_cast %255 : vector<2x16x32xf32> to vector<32x32xf32>
    %cst_129 = arith.constant dense<0.000000e+00> : vector<32x32xf32>
    %257 = tpu.matmul %256, %17, %cst_129 {dimension_numbers = #tpu.dot_dimension_numbers<[1], [0], [0], [1], [0, 0, 1, 1], [], []>} : vector<32x32xf32>, vector<32x32xf32>, vector<32x32xf32> -> vector<32x32xf32>
    %258 = arith.addf %254, %257 : vector<32x32xf32>
    %cst_130 = arith.constant dense<0.000000e+00> : vector<32x32xf32>
    %259 = tpu.matmul %228, %10, %cst_130 {dimension_numbers = #tpu.dot_dimension_numbers<[1], [0], [0], [1], [0, 0, 1, 1], [], []>} : vector<32x4xf32>, vector<4x32xf32>, vector<32x32xf32> -> vector<32x32xf32>
    %260 = arith.mulf %238, %258 : vector<32x32xf32>
    %cst_131 = arith.constant dense<0.000000e+00> : vector<32x32xf32>
    %261 = tpu.matmul %260, %11, %cst_131 {dimension_numbers = #tpu.dot_dimension_numbers<[1], [0], [0], [1], [0, 0, 1, 1], [], []>} : vector<32x32xf32>, vector<32x32xf32>, vector<32x32xf32> -> vector<32x32xf32>
    %262 = arith.addf %259, %261 : vector<32x32xf32>
    %263 = vector.broadcast %20 : vector<1x32xf32> to vector<32x32xf32>
    %264 = arith.addf %262, %263 : vector<32x32xf32>
    %265 = math.tanh %264 : vector<32x32xf32>
    %266 = arith.mulf %248, %225 : vector<32x32xf32>
    %cst_132 = arith.constant 1.000000e+00 : f32
    %267 = vector.broadcast %cst_132 : f32 to vector<32x32xf32>
    %268 = arith.subf %267, %248 : vector<32x32xf32>
    %269 = arith.mulf %268, %265 : vector<32x32xf32>
    %270 = arith.addf %266, %269 : vector<32x32xf32>
    %c0_133 = arith.constant 0 : index
    %c0_134 = arith.constant 0 : index
    %271 = vector.load %arg15[%c0_133, %c0_134] : memref<32x32xf32, #tpu.memory_space<vmem>>, vector<32x32xf32>
    tpu.vector_store %arg15[%c0_133, %c0_134], %270 {strides = array<i32>} : memref<32x32xf32, #tpu.memory_space<vmem>>, vector<32x32xf32>,
    %272 = arith.index_cast %c4_i32 : i32 to index
    %c0_135 = arith.constant 0 : index
    %c0_136 = arith.constant 0 : index
    %273 = vector.load %arg14[%272, %c0_135, %c0_136] : memref<8x32x32xf32, #tpu.memory_space<vmem>>, vector<1x32x32xf32>
    %274 = vector.shape_cast %273 : vector<1x32x32xf32> to vector<32x32xf32>
    %275 = vector.shape_cast %270 : vector<32x32xf32> to vector<1x32x32xf32>
    tpu.vector_store %arg14[%272, %c0_135, %c0_136], %275 {strides = array<i32>} : memref<8x32x32xf32, #tpu.memory_space<vmem>>, vector<1x32x32xf32>,
    %c5_i32 = arith.constant 5 : i32
    %c0_137 = arith.constant 0 : index
    %c0_138 = arith.constant 0 : index
    %276 = vector.load %arg15[%c0_137, %c0_138] : memref<32x32xf32, #tpu.memory_space<vmem>>, vector<32x32xf32>
    %277 = arith.index_cast %c5_i32 : i32 to index
    %c0_139 = arith.constant 0 : index
    %c0_140 = arith.constant 0 : index
    %278 = vector.load %arg2[%277, %c0_139, %c0_140] : memref<8x32x4xf32, #tpu.memory_space<vmem>>, vector<1x32x4xf32>
    %279 = vector.shape_cast %278 : vector<1x32x4xf32> to vector<32x4xf32>
    %cst_141 = arith.constant dense<0.000000e+00> : vector<32x32xf32>
    %280 = tpu.matmul %279, %6, %cst_141 {dimension_numbers = #tpu.dot_dimension_numbers<[1], [0], [0], [1], [0, 0, 1, 1], [], []>} : vector<32x4xf32>, vector<4x32xf32>, vector<32x32xf32> -> vector<32x32xf32>
    %cst_142 = arith.constant dense<0.000000e+00> : vector<32x32xf32>
    %281 = tpu.matmul %276, %7, %cst_142 {dimension_numbers = #tpu.dot_dimension_numbers<[1], [0], [0], [1], [0, 0, 1, 1], [], []>} : vector<32x32xf32>, vector<32x32xf32>, vector<32x32xf32> -> vector<32x32xf32>
    %282 = arith.addf %280, %281 : vector<32x32xf32>
    %283 = vector.broadcast %18 : vector<1x32xf32> to vector<32x32xf32>
    %284 = arith.addf %282, %283 : vector<32x32xf32>
    %285 = arith.negf %284 : vector<32x32xf32>
    %286 = math.exp %285 : vector<32x32xf32>
    %cst_143 = arith.constant 1.000000e+00 : f32
    %287 = vector.broadcast %cst_143 : f32 to vector<32x32xf32>
    %288 = arith.addf %287, %286 : vector<32x32xf32>
    %289 = arith.divf %287, %288 : vector<32x32xf32>
    %cst_144 = arith.constant dense<0.000000e+00> : vector<32x32xf32>
    %290 = tpu.matmul %279, %8, %cst_144 {dimension_numbers = #tpu.dot_dimension_numbers<[1], [0], [0], [1], [0, 0, 1, 1], [], []>} : vector<32x4xf32>, vector<4x32xf32>, vector<32x32xf32> -> vector<32x32xf32>
    %cst_145 = arith.constant dense<0.000000e+00> : vector<32x32xf32>
    %291 = tpu.matmul %276, %9, %cst_145 {dimension_numbers = #tpu.dot_dimension_numbers<[1], [0], [0], [1], [0, 0, 1, 1], [], []>} : vector<32x32xf32>, vector<32x32xf32>, vector<32x32xf32> -> vector<32x32xf32>
    %292 = arith.addf %290, %291 : vector<32x32xf32>
    %293 = vector.broadcast %19 : vector<1x32xf32> to vector<32x32xf32>
    %294 = arith.addf %292, %293 : vector<32x32xf32>
    %295 = arith.negf %294 : vector<32x32xf32>
    %296 = math.exp %295 : vector<32x32xf32>
    %cst_146 = arith.constant 1.000000e+00 : f32
    %297 = vector.broadcast %cst_146 : f32 to vector<32x32xf32>
    %298 = arith.addf %297, %296 : vector<32x32xf32>
    %299 = arith.divf %297, %298 : vector<32x32xf32>
    %cst_147 = arith.constant dense<0.000000e+00> : vector<32x32xf32>
    %300 = tpu.matmul %276, %13, %cst_147 {dimension_numbers = #tpu.dot_dimension_numbers<[1], [0], [0], [1], [0, 0, 1, 1], [], []>} : vector<32x32xf32>, vector<32x32xf32>, vector<32x32xf32> -> vector<32x32xf32>
    %301 = vector.shape_cast %276 : vector<32x32xf32> to vector<2x16x32xf32>
    "tpu.trace_start"() <{level = 10 : i32, message = "bnm,bmh->bnh"}> : () -> ()
    %cst_148 = arith.constant dense<0.000000e+00> : vector<2x16x32xf32>
    %302 = tpu.matmul %5, %301, %cst_148 {dimension_numbers = #tpu.dot_dimension_numbers<[2], [1], [1], [2], [0, 0, 0, 1, 1, 2], [0], [0]>} : vector<2x16x16xf32>, vector<2x16x32xf32>, vector<2x16x32xf32> -> vector<2x16x32xf32>
    "tpu.trace_stop"() : () -> ()
    %303 = vector.shape_cast %302 : vector<2x16x32xf32> to vector<32x32xf32>
    %cst_149 = arith.constant dense<0.000000e+00> : vector<32x32xf32>
    %304 = tpu.matmul %303, %15, %cst_149 {dimension_numbers = #tpu.dot_dimension_numbers<[1], [0], [0], [1], [0, 0, 1, 1], [], []>} : vector<32x32xf32>, vector<32x32xf32>, vector<32x32xf32> -> vector<32x32xf32>
    %305 = arith.addf %300, %304 : vector<32x32xf32>
    "tpu.trace_start"() <{level = 10 : i32, message = "bnm,bmh->bnh"}> : () -> ()
    %cst_150 = arith.constant dense<0.000000e+00> : vector<2x16x32xf32>
    %306 = tpu.matmul %5, %302, %cst_150 {dimension_numbers = #tpu.dot_dimension_numbers<[2], [1], [1], [2], [0, 0, 0, 1, 1, 2], [0], [0]>} : vector<2x16x16xf32>, vector<2x16x32xf32>, vector<2x16x32xf32> -> vector<2x16x32xf32>
    "tpu.trace_stop"() : () -> ()
    %307 = vector.shape_cast %306 : vector<2x16x32xf32> to vector<32x32xf32>
    %cst_151 = arith.constant dense<0.000000e+00> : vector<32x32xf32>
    %308 = tpu.matmul %307, %17, %cst_151 {dimension_numbers = #tpu.dot_dimension_numbers<[1], [0], [0], [1], [0, 0, 1, 1], [], []>} : vector<32x32xf32>, vector<32x32xf32>, vector<32x32xf32> -> vector<32x32xf32>
    %309 = arith.addf %305, %308 : vector<32x32xf32>
    %cst_152 = arith.constant dense<0.000000e+00> : vector<32x32xf32>
    %310 = tpu.matmul %279, %10, %cst_152 {dimension_numbers = #tpu.dot_dimension_numbers<[1], [0], [0], [1], [0, 0, 1, 1], [], []>} : vector<32x4xf32>, vector<4x32xf32>, vector<32x32xf32> -> vector<32x32xf32>
    %311 = arith.mulf %289, %309 : vector<32x32xf32>
    %cst_153 = arith.constant dense<0.000000e+00> : vector<32x32xf32>
    %312 = tpu.matmul %311, %11, %cst_153 {dimension_numbers = #tpu.dot_dimension_numbers<[1], [0], [0], [1], [0, 0, 1, 1], [], []>} : vector<32x32xf32>, vector<32x32xf32>, vector<32x32xf32> -> vector<32x32xf32>
    %313 = arith.addf %310, %312 : vector<32x32xf32>
    %314 = vector.broadcast %20 : vector<1x32xf32> to vector<32x32xf32>
    %315 = arith.addf %313, %314 : vector<32x32xf32>
    %316 = math.tanh %315 : vector<32x32xf32>
    %317 = arith.mulf %299, %276 : vector<32x32xf32>
    %cst_154 = arith.constant 1.000000e+00 : f32
    %318 = vector.broadcast %cst_154 : f32 to vector<32x32xf32>
    %319 = arith.subf %318, %299 : vector<32x32xf32>
    %320 = arith.mulf %319, %316 : vector<32x32xf32>
    %321 = arith.addf %317, %320 : vector<32x32xf32>
    %c0_155 = arith.constant 0 : index
    %c0_156 = arith.constant 0 : index
    %322 = vector.load %arg15[%c0_155, %c0_156] : memref<32x32xf32, #tpu.memory_space<vmem>>, vector<32x32xf32>
    tpu.vector_store %arg15[%c0_155, %c0_156], %321 {strides = array<i32>} : memref<32x32xf32, #tpu.memory_space<vmem>>, vector<32x32xf32>,
    %323 = arith.index_cast %c5_i32 : i32 to index
    %c0_157 = arith.constant 0 : index
    %c0_158 = arith.constant 0 : index
    %324 = vector.load %arg14[%323, %c0_157, %c0_158] : memref<8x32x32xf32, #tpu.memory_space<vmem>>, vector<1x32x32xf32>
    %325 = vector.shape_cast %324 : vector<1x32x32xf32> to vector<32x32xf32>
    %326 = vector.shape_cast %321 : vector<32x32xf32> to vector<1x32x32xf32>
    tpu.vector_store %arg14[%323, %c0_157, %c0_158], %326 {strides = array<i32>} : memref<8x32x32xf32, #tpu.memory_space<vmem>>, vector<1x32x32xf32>,
    %c6_i32 = arith.constant 6 : i32
    %c0_159 = arith.constant 0 : index
    %c0_160 = arith.constant 0 : index
    %327 = vector.load %arg15[%c0_159, %c0_160] : memref<32x32xf32, #tpu.memory_space<vmem>>, vector<32x32xf32>
    %328 = arith.index_cast %c6_i32 : i32 to index
    %c0_161 = arith.constant 0 : index
    %c0_162 = arith.constant 0 : index
    %329 = vector.load %arg2[%328, %c0_161, %c0_162] : memref<8x32x4xf32, #tpu.memory_space<vmem>>, vector<1x32x4xf32>
    %330 = vector.shape_cast %329 : vector<1x32x4xf32> to vector<32x4xf32>
    %cst_163 = arith.constant dense<0.000000e+00> : vector<32x32xf32>
    %331 = tpu.matmul %330, %6, %cst_163 {dimension_numbers = #tpu.dot_dimension_numbers<[1], [0], [0], [1], [0, 0, 1, 1], [], []>} : vector<32x4xf32>, vector<4x32xf32>, vector<32x32xf32> -> vector<32x32xf32>
    %cst_164 = arith.constant dense<0.000000e+00> : vector<32x32xf32>
    %332 = tpu.matmul %327, %7, %cst_164 {dimension_numbers = #tpu.dot_dimension_numbers<[1], [0], [0], [1], [0, 0, 1, 1], [], []>} : vector<32x32xf32>, vector<32x32xf32>, vector<32x32xf32> -> vector<32x32xf32>
    %333 = arith.addf %331, %332 : vector<32x32xf32>
    %334 = vector.broadcast %18 : vector<1x32xf32> to vector<32x32xf32>
    %335 = arith.addf %333, %334 : vector<32x32xf32>
    %336 = arith.negf %335 : vector<32x32xf32>
    %337 = math.exp %336 : vector<32x32xf32>
    %cst_165 = arith.constant 1.000000e+00 : f32
    %338 = vector.broadcast %cst_165 : f32 to vector<32x32xf32>
    %339 = arith.addf %338, %337 : vector<32x32xf32>
    %340 = arith.divf %338, %339 : vector<32x32xf32>
    %cst_166 = arith.constant dense<0.000000e+00> : vector<32x32xf32>
    %341 = tpu.matmul %330, %8, %cst_166 {dimension_numbers = #tpu.dot_dimension_numbers<[1], [0], [0], [1], [0, 0, 1, 1], [], []>} : vector<32x4xf32>, vector<4x32xf32>, vector<32x32xf32> -> vector<32x32xf32>
    %cst_167 = arith.constant dense<0.000000e+00> : vector<32x32xf32>
    %342 = tpu.matmul %327, %9, %cst_167 {dimension_numbers = #tpu.dot_dimension_numbers<[1], [0], [0], [1], [0, 0, 1, 1], [], []>} : vector<32x32xf32>, vector<32x32xf32>, vector<32x32xf32> -> vector<32x32xf32>
    %343 = arith.addf %341, %342 : vector<32x32xf32>
    %344 = vector.broadcast %19 : vector<1x32xf32> to vector<32x32xf32>
    %345 = arith.addf %343, %344 : vector<32x32xf32>
    %346 = arith.negf %345 : vector<32x32xf32>
    %347 = math.exp %346 : vector<32x32xf32>
    %cst_168 = arith.constant 1.000000e+00 : f32
    %348 = vector.broadcast %cst_168 : f32 to vector<32x32xf32>
    %349 = arith.addf %348, %347 : vector<32x32xf32>
    %350 = arith.divf %348, %349 : vector<32x32xf32>
    %cst_169 = arith.constant dense<0.000000e+00> : vector<32x32xf32>
    %351 = tpu.matmul %327, %13, %cst_169 {dimension_numbers = #tpu.dot_dimension_numbers<[1], [0], [0], [1], [0, 0, 1, 1], [], []>} : vector<32x32xf32>, vector<32x32xf32>, vector<32x32xf32> -> vector<32x32xf32>
    %352 = vector.shape_cast %327 : vector<32x32xf32> to vector<2x16x32xf32>
    "tpu.trace_start"() <{level = 10 : i32, message = "bnm,bmh->bnh"}> : () -> ()
    %cst_170 = arith.constant dense<0.000000e+00> : vector<2x16x32xf32>
    %353 = tpu.matmul %5, %352, %cst_170 {dimension_numbers = #tpu.dot_dimension_numbers<[2], [1], [1], [2], [0, 0, 0, 1, 1, 2], [0], [0]>} : vector<2x16x16xf32>, vector<2x16x32xf32>, vector<2x16x32xf32> -> vector<2x16x32xf32>
    "tpu.trace_stop"() : () -> ()
    %354 = vector.shape_cast %353 : vector<2x16x32xf32> to vector<32x32xf32>
    %cst_171 = arith.constant dense<0.000000e+00> : vector<32x32xf32>
    %355 = tpu.matmul %354, %15, %cst_171 {dimension_numbers = #tpu.dot_dimension_numbers<[1], [0], [0], [1], [0, 0, 1, 1], [], []>} : vector<32x32xf32>, vector<32x32xf32>, vector<32x32xf32> -> vector<32x32xf32>
    %356 = arith.addf %351, %355 : vector<32x32xf32>
    "tpu.trace_start"() <{level = 10 : i32, message = "bnm,bmh->bnh"}> : () -> ()
    %cst_172 = arith.constant dense<0.000000e+00> : vector<2x16x32xf32>
    %357 = tpu.matmul %5, %353, %cst_172 {dimension_numbers = #tpu.dot_dimension_numbers<[2], [1], [1], [2], [0, 0, 0, 1, 1, 2], [0], [0]>} : vector<2x16x16xf32>, vector<2x16x32xf32>, vector<2x16x32xf32> -> vector<2x16x32xf32>
    "tpu.trace_stop"() : () -> ()
    %358 = vector.shape_cast %357 : vector<2x16x32xf32> to vector<32x32xf32>
    %cst_173 = arith.constant dense<0.000000e+00> : vector<32x32xf32>
    %359 = tpu.matmul %358, %17, %cst_173 {dimension_numbers = #tpu.dot_dimension_numbers<[1], [0], [0], [1], [0, 0, 1, 1], [], []>} : vector<32x32xf32>, vector<32x32xf32>, vector<32x32xf32> -> vector<32x32xf32>
    %360 = arith.addf %356, %359 : vector<32x32xf32>
    %cst_174 = arith.constant dense<0.000000e+00> : vector<32x32xf32>
    %361 = tpu.matmul %330, %10, %cst_174 {dimension_numbers = #tpu.dot_dimension_numbers<[1], [0], [0], [1], [0, 0, 1, 1], [], []>} : vector<32x4xf32>, vector<4x32xf32>, vector<32x32xf32> -> vector<32x32xf32>
    %362 = arith.mulf %340, %360 : vector<32x32xf32>
    %cst_175 = arith.constant dense<0.000000e+00> : vector<32x32xf32>
    %363 = tpu.matmul %362, %11, %cst_175 {dimension_numbers = #tpu.dot_dimension_numbers<[1], [0], [0], [1], [0, 0, 1, 1], [], []>} : vector<32x32xf32>, vector<32x32xf32>, vector<32x32xf32> -> vector<32x32xf32>
    %364 = arith.addf %361, %363 : vector<32x32xf32>
    %365 = vector.broadcast %20 : vector<1x32xf32> to vector<32x32xf32>
    %366 = arith.addf %364, %365 : vector<32x32xf32>
    %367 = math.tanh %366 : vector<32x32xf32>
    %368 = arith.mulf %350, %327 : vector<32x32xf32>
    %cst_176 = arith.constant 1.000000e+00 : f32
    %369 = vector.broadcast %cst_176 : f32 to vector<32x32xf32>
    %370 = arith.subf %369, %350 : vector<32x32xf32>
    %371 = arith.mulf %370, %367 : vector<32x32xf32>
    %372 = arith.addf %368, %371 : vector<32x32xf32>
    %c0_177 = arith.constant 0 : index
    %c0_178 = arith.constant 0 : index
    %373 = vector.load %arg15[%c0_177, %c0_178] : memref<32x32xf32, #tpu.memory_space<vmem>>, vector<32x32xf32>
    tpu.vector_store %arg15[%c0_177, %c0_178], %372 {strides = array<i32>} : memref<32x32xf32, #tpu.memory_space<vmem>>, vector<32x32xf32>,
    %374 = arith.index_cast %c6_i32 : i32 to index
    %c0_179 = arith.constant 0 : index
    %c0_180 = arith.constant 0 : index
    %375 = vector.load %arg14[%374, %c0_179, %c0_180] : memref<8x32x32xf32, #tpu.memory_space<vmem>>, vector<1x32x32xf32>
    %376 = vector.shape_cast %375 : vector<1x32x32xf32> to vector<32x32xf32>
    %377 = vector.shape_cast %372 : vector<32x32xf32> to vector<1x32x32xf32>
    tpu.vector_store %arg14[%374, %c0_179, %c0_180], %377 {strides = array<i32>} : memref<8x32x32xf32, #tpu.memory_space<vmem>>, vector<1x32x32xf32>,
    %c7_i32 = arith.constant 7 : i32
    %c0_181 = arith.constant 0 : index
    %c0_182 = arith.constant 0 : index
    %378 = vector.load %arg15[%c0_181, %c0_182] : memref<32x32xf32, #tpu.memory_space<vmem>>, vector<32x32xf32>
    %379 = arith.index_cast %c7_i32 : i32 to index
    %c0_183 = arith.constant 0 : index
    %c0_184 = arith.constant 0 : index
    %380 = vector.load %arg2[%379, %c0_183, %c0_184] : memref<8x32x4xf32, #tpu.memory_space<vmem>>, vector<1x32x4xf32>
    %381 = vector.shape_cast %380 : vector<1x32x4xf32> to vector<32x4xf32>
    %cst_185 = arith.constant dense<0.000000e+00> : vector<32x32xf32>
    %382 = tpu.matmul %381, %6, %cst_185 {dimension_numbers = #tpu.dot_dimension_numbers<[1], [0], [0], [1], [0, 0, 1, 1], [], []>} : vector<32x4xf32>, vector<4x32xf32>, vector<32x32xf32> -> vector<32x32xf32>
    %cst_186 = arith.constant dense<0.000000e+00> : vector<32x32xf32>
    %383 = tpu.matmul %378, %7, %cst_186 {dimension_numbers = #tpu.dot_dimension_numbers<[1], [0], [0], [1], [0, 0, 1, 1], [], []>} : vector<32x32xf32>, vector<32x32xf32>, vector<32x32xf32> -> vector<32x32xf32>
    %384 = arith.addf %382, %383 : vector<32x32xf32>
    %385 = vector.broadcast %18 : vector<1x32xf32> to vector<32x32xf32>
    %386 = arith.addf %384, %385 : vector<32x32xf32>
    %387 = arith.negf %386 : vector<32x32xf32>
    %388 = math.exp %387 : vector<32x32xf32>
    %cst_187 = arith.constant 1.000000e+00 : f32
    %389 = vector.broadcast %cst_187 : f32 to vector<32x32xf32>
    %390 = arith.addf %389, %388 : vector<32x32xf32>
    %391 = arith.divf %389, %390 : vector<32x32xf32>
    %cst_188 = arith.constant dense<0.000000e+00> : vector<32x32xf32>
    %392 = tpu.matmul %381, %8, %cst_188 {dimension_numbers = #tpu.dot_dimension_numbers<[1], [0], [0], [1], [0, 0, 1, 1], [], []>} : vector<32x4xf32>, vector<4x32xf32>, vector<32x32xf32> -> vector<32x32xf32>
    %cst_189 = arith.constant dense<0.000000e+00> : vector<32x32xf32>
    %393 = tpu.matmul %378, %9, %cst_189 {dimension_numbers = #tpu.dot_dimension_numbers<[1], [0], [0], [1], [0, 0, 1, 1], [], []>} : vector<32x32xf32>, vector<32x32xf32>, vector<32x32xf32> -> vector<32x32xf32>
    %394 = arith.addf %392, %393 : vector<32x32xf32>
    %395 = vector.broadcast %19 : vector<1x32xf32> to vector<32x32xf32>
    %396 = arith.addf %394, %395 : vector<32x32xf32>
    %397 = arith.negf %396 : vector<32x32xf32>
    %398 = math.exp %397 : vector<32x32xf32>
    %cst_190 = arith.constant 1.000000e+00 : f32
    %399 = vector.broadcast %cst_190 : f32 to vector<32x32xf32>
    %400 = arith.addf %399, %398 : vector<32x32xf32>
    %401 = arith.divf %399, %400 : vector<32x32xf32>
    %cst_191 = arith.constant dense<0.000000e+00> : vector<32x32xf32>
    %402 = tpu.matmul %378, %13, %cst_191 {dimension_numbers = #tpu.dot_dimension_numbers<[1], [0], [0], [1], [0, 0, 1, 1], [], []>} : vector<32x32xf32>, vector<32x32xf32>, vector<32x32xf32> -> vector<32x32xf32>
    %403 = vector.shape_cast %378 : vector<32x32xf32> to vector<2x16x32xf32>
    "tpu.trace_start"() <{level = 10 : i32, message = "bnm,bmh->bnh"}> : () -> ()
    %cst_192 = arith.constant dense<0.000000e+00> : vector<2x16x32xf32>
    %404 = tpu.matmul %5, %403, %cst_192 {dimension_numbers = #tpu.dot_dimension_numbers<[2], [1], [1], [2], [0, 0, 0, 1, 1, 2], [0], [0]>} : vector<2x16x16xf32>, vector<2x16x32xf32>, vector<2x16x32xf32> -> vector<2x16x32xf32>
    "tpu.trace_stop"() : () -> ()
    %405 = vector.shape_cast %404 : vector<2x16x32xf32> to vector<32x32xf32>
    %cst_193 = arith.constant dense<0.000000e+00> : vector<32x32xf32>
    %406 = tpu.matmul %405, %15, %cst_193 {dimension_numbers = #tpu.dot_dimension_numbers<[1], [0], [0], [1], [0, 0, 1, 1], [], []>} : vector<32x32xf32>, vector<32x32xf32>, vector<32x32xf32> -> vector<32x32xf32>
    %407 = arith.addf %402, %406 : vector<32x32xf32>
    "tpu.trace_start"() <{level = 10 : i32, message = "bnm,bmh->bnh"}> : () -> ()
    %cst_194 = arith.constant dense<0.000000e+00> : vector<2x16x32xf32>
    %408 = tpu.matmul %5, %404, %cst_194 {dimension_numbers = #tpu.dot_dimension_numbers<[2], [1], [1], [2], [0, 0, 0, 1, 1, 2], [0], [0]>} : vector<2x16x16xf32>, vector<2x16x32xf32>, vector<2x16x32xf32> -> vector<2x16x32xf32>
    "tpu.trace_stop"() : () -> ()
    %409 = vector.shape_cast %408 : vector<2x16x32xf32> to vector<32x32xf32>
    %cst_195 = arith.constant dense<0.000000e+00> : vector<32x32xf32>
    %410 = tpu.matmul %409, %17, %cst_195 {dimension_numbers = #tpu.dot_dimension_numbers<[1], [0], [0], [1], [0, 0, 1, 1], [], []>} : vector<32x32xf32>, vector<32x32xf32>, vector<32x32xf32> -> vector<32x32xf32>
    %411 = arith.addf %407, %410 : vector<32x32xf32>
    %cst_196 = arith.constant dense<0.000000e+00> : vector<32x32xf32>
    %412 = tpu.matmul %381, %10, %cst_196 {dimension_numbers = #tpu.dot_dimension_numbers<[1], [0], [0], [1], [0, 0, 1, 1], [], []>} : vector<32x4xf32>, vector<4x32xf32>, vector<32x32xf32> -> vector<32x32xf32>
    %413 = arith.mulf %391, %411 : vector<32x32xf32>
    %cst_197 = arith.constant dense<0.000000e+00> : vector<32x32xf32>
    %414 = tpu.matmul %413, %11, %cst_197 {dimension_numbers = #tpu.dot_dimension_numbers<[1], [0], [0], [1], [0, 0, 1, 1], [], []>} : vector<32x32xf32>, vector<32x32xf32>, vector<32x32xf32> -> vector<32x32xf32>
    %415 = arith.addf %412, %414 : vector<32x32xf32>
    %416 = vector.broadcast %20 : vector<1x32xf32> to vector<32x32xf32>
    %417 = arith.addf %415, %416 : vector<32x32xf32>
    %418 = math.tanh %417 : vector<32x32xf32>
    %419 = arith.mulf %401, %378 : vector<32x32xf32>
    %cst_198 = arith.constant 1.000000e+00 : f32
    %420 = vector.broadcast %cst_198 : f32 to vector<32x32xf32>
    %421 = arith.subf %420, %401 : vector<32x32xf32>
    %422 = arith.mulf %421, %418 : vector<32x32xf32>
    %423 = arith.addf %419, %422 : vector<32x32xf32>
    %c0_199 = arith.constant 0 : index
    %c0_200 = arith.constant 0 : index
    %424 = vector.load %arg15[%c0_199, %c0_200] : memref<32x32xf32, #tpu.memory_space<vmem>>, vector<32x32xf32>
    tpu.vector_store %arg15[%c0_199, %c0_200], %423 {strides = array<i32>} : memref<32x32xf32, #tpu.memory_space<vmem>>, vector<32x32xf32>,
    %425 = arith.index_cast %c7_i32 : i32 to index
    %c0_201 = arith.constant 0 : index
    %c0_202 = arith.constant 0 : index
    %426 = vector.load %arg14[%425, %c0_201, %c0_202] : memref<8x32x32xf32, #tpu.memory_space<vmem>>, vector<1x32x32xf32>
    %427 = vector.shape_cast %426 : vector<1x32x32xf32> to vector<32x32xf32>
    %428 = vector.shape_cast %423 : vector<32x32xf32> to vector<1x32x32xf32>
    tpu.vector_store %arg14[%425, %c0_201, %c0_202], %428 {strides = array<i32>} : memref<8x32x32xf32, #tpu.memory_space<vmem>>, vector<1x32x32xf32>,
    %c8_i32 = arith.constant 8 : i32
    return
  }
  func.func @transform_0(%arg0: i32, %arg1: i32) -> (i32, i32, i32) {
    %c0_i32 = arith.constant 0 : i32
    %c0_i32_0 = arith.constant 0 : i32
    return %arg1, %arg0, %c0_i32 : i32, i32, i32
  }
  func.func @transform_1(%arg0: i32, %arg1: i32) -> (i32, i32) {
    %c0_i32 = arith.constant 0 : i32
    %c0_i32_0 = arith.constant 0 : i32
    %c0_i32_1 = arith.constant 0 : i32
    return %c0_i32, %c0_i32_0 : i32, i32
  }
  func.func @transform_2(%arg0: i32, %arg1: i32) -> (i32, i32) {
    %c0_i32 = arith.constant 0 : i32
    %c0_i32_0 = arith.constant 0 : i32
    %c0_i32_1 = arith.constant 0 : i32
    return %c0_i32, %c0_i32_0 : i32, i32
  }
  func.func @transform_3(%arg0: i32, %arg1: i32) -> (i32, i32) {
    %c0_i32 = arith.constant 0 : i32
    %c0_i32_0 = arith.constant 0 : i32
    %c0_i32_1 = arith.constant 0 : i32
    return %c0_i32, %c0_i32_0 : i32, i32
  }
  func.func @transform_4(%arg0: i32, %arg1: i32) -> (i32, i32) {
    %c0_i32 = arith.constant 0 : i32
    %c0_i32_0 = arith.constant 0 : i32
    %c0_i32_1 = arith.constant 0 : i32
    return %c0_i32, %c0_i32_0 : i32, i32
  }
  func.func @transform_5(%arg0: i32, %arg1: i32) -> (i32, i32) {
    %c0_i32 = arith.constant 0 : i32
    %c0_i32_0 = arith.constant 0 : i32
    %c0_i32_1 = arith.constant 0 : i32
    return %c0_i32, %c0_i32_0 : i32, i32
  }
  func.func @transform_6(%arg0: i32, %arg1: i32) -> (i32, i32) {
    %c0_i32 = arith.constant 0 : i32
    %c0_i32_0 = arith.constant 0 : i32
    %c0_i32_1 = arith.constant 0 : i32
    return %c0_i32, %c0_i32_0 : i32, i32
  }
  func.func @transform_7(%arg0: i32, %arg1: i32) -> (i32, i32) {
    %c0_i32 = arith.constant 0 : i32
    %c0_i32_0 = arith.constant 0 : i32
    %c0_i32_1 = arith.constant 0 : i32
    return %c0_i32, %c0_i32_0 : i32, i32
  }
  func.func @transform_8(%arg0: i32, %arg1: i32) -> (i32, i32, i32) {
    %c0_i32 = arith.constant 0 : i32
    %c0_i32_0 = arith.constant 0 : i32
    %c0_i32_1 = arith.constant 0 : i32
    %c0_i32_2 = arith.constant 0 : i32
    return %c0_i32, %c0_i32_0, %c0_i32_1 : i32, i32, i32
  }
  func.func @transform_9(%arg0: i32, %arg1: i32) -> (i32, i32) {
    %c0_i32 = arith.constant 0 : i32
    %c0_i32_0 = arith.constant 0 : i32
    %c0_i32_1 = arith.constant 0 : i32
    return %c0_i32, %c0_i32_0 : i32, i32
  }
  func.func @transform_10(%arg0: i32, %arg1: i32) -> (i32, i32) {
    %c0_i32 = arith.constant 0 : i32
    %c0_i32_0 = arith.constant 0 : i32
    %c0_i32_1 = arith.constant 0 : i32
    return %c0_i32, %c0_i32_0 : i32, i32
  }
  func.func @transform_11(%arg0: i32, %arg1: i32) -> (i32, i32) {
    %c0_i32 = arith.constant 0 : i32
    %c0_i32_0 = arith.constant 0 : i32
    %c0_i32_1 = arith.constant 0 : i32
    return %c0_i32, %c0_i32_0 : i32, i32
  }
  func.func @transform_12(%arg0: i32, %arg1: i32) -> (i32, i32, i32) {
    %c0_i32 = arith.constant 0 : i32
    %c0_i32_0 = arith.constant 0 : i32
    return %arg1, %arg0, %c0_i32 : i32, i32, i32
  }
}

</mosaic_0001>

<llo_original>
// kernel: tpu_custom_call.1
$region0: #{tpu_custom_call.1}
  #allocation0 [shape = 'u32[]', space=smem, size = 0x4, offset = 0x4, fixed_abs, tag = 'smem constant byte address 0x4 - core index']
  #allocation1 [shape = 'u32[72,128]{1,0:T(1,128)}', space=vmem, size = 0x9000, scoped, tag = 'internal scratch']
  #allocation2 [shape = 'f32[32,32]{1,0:T(8,128)}', space=vmem, size = 0x4000, scoped, tag = 'scratch operand']
  %s0 = inlined_call_operand.vmem [shape: f32[8,32,4], index: 0, kind: input, shape index: {}]
  %s1 = inlined_call_operand.vmem [shape: f32[16,16], index: 1, kind: input, shape index: {}]
  %s2 = inlined_call_operand.vmem [shape: f32[4,32], index: 2, kind: input, shape index: {}]
  %s3 = inlined_call_operand.vmem [shape: f32[32,32], index: 3, kind: input, shape index: {}]
  %s4 = inlined_call_operand.vmem [shape: f32[4,32], index: 4, kind: input, shape index: {}]
  %s5 = inlined_call_operand.vmem [shape: f32[32,32], index: 5, kind: input, shape index: {}]
  %s6 = inlined_call_operand.vmem [shape: f32[4,32], index: 6, kind: input, shape index: {}]
  %s7 = inlined_call_operand.vmem [shape: f32[32,32], index: 7, kind: input, shape index: {}]
  %s8 = inlined_call_operand.vmem [shape: f32[3,32,32], index: 8, kind: input, shape index: {}]
  %s9 = inlined_call_operand.vmem [shape: f32[1,32], index: 9, kind: input, shape index: {}]
  %s10 = inlined_call_operand.vmem [shape: f32[1,32], index: 10, kind: input, shape index: {}]
  %s11 = inlined_call_operand.vmem [shape: f32[1,32], index: 11, kind: input, shape index: {}]
  %s12 = inlined_call_operand.hbm [shape: f32[8,32,32], index: 12, kind: output, shape index: {}]
  %s13 = sld [smem:[#allocation0]]
  $region62: #{tpu_custom_call.1} parent=0
    _
  %s15 = ssub.s32 1, %s13
  %s16 = scalar_select 0, %s15, %s13
  $region1: #{tpu_custom_call.1} parent=0
    #allocation3 [shape = 'u8[131072]{0}', space=vmem, size = 0x20000, scoped, tag = 'output window, operand 0, single buffered']
    #allocation4 [shape = 's32[1]{0}', space=sflag, size = 0x4, scoped, tag = 'scoped memory for tpu_custom_call.1']
    %17 = vsyncpa [#allocation4], 0
    // Predicated region
    $region2: #{tpu_custom_call.1} parent=1 // pred_check
      _
    $region3: #{tpu_custom_call.1} parent=1 // pred_check_branch
      %19 = sbr.rel (0) target = $region5
    $region4: #{tpu_custom_call.1} parent=1 // pred_region
      _
    $region5: #{tpu_custom_call.1} parent=1 // pred_fallthru
      _
    // Predicated region
    $region6: #{tpu_custom_call.1} parent=1 // pred_check
      _
    $region7: #{tpu_custom_call.1} parent=1 // pred_check_branch
      %21 = sbr.rel (0) target = $region9
    $region8: #{tpu_custom_call.1} parent=1 // pred_region
      _
    $region9: #{tpu_custom_call.1} parent=1 // pred_fallthru
      _
    // Predicated region
    $region10: #{tpu_custom_call.1} parent=1 // pred_check
      _
    $region11: #{tpu_custom_call.1} parent=1 // pred_check_branch
      %23 = sbr.rel (0) target = $region13
    $region12: #{tpu_custom_call.1} parent=1 // pred_region
      _
    $region13: #{tpu_custom_call.1} parent=1 // pred_fallthru
      _
    // Predicated region
    $region14: #{tpu_custom_call.1} parent=1 // pred_check
      _
    $region15: #{tpu_custom_call.1} parent=1 // pred_check_branch
      %25 = sbr.rel (0) target = $region17
    $region16: #{tpu_custom_call.1} parent=1 // pred_region
      _
    $region17: #{tpu_custom_call.1} parent=1 // pred_fallthru
      _
    // Predicated region
    $region18: #{tpu_custom_call.1} parent=1 // pred_check
      _
    $region19: #{tpu_custom_call.1} parent=1 // pred_check_branch
      %27 = sbr.rel (0) target = $region21
    $region20: #{tpu_custom_call.1} parent=1 // pred_region
      _
    $region21: #{tpu_custom_call.1} parent=1 // pred_fallthru
      _
    // Predicated region
    $region22: #{tpu_custom_call.1} parent=1 // pred_check
      _
    $region23: #{tpu_custom_call.1} parent=1 // pred_check_branch
      %29 = sbr.rel (0) target = $region25
    $region24: #{tpu_custom_call.1} parent=1 // pred_region
      _
    $region25: #{tpu_custom_call.1} parent=1 // pred_fallthru
      _
    // Predicated region
    $region26: #{tpu_custom_call.1} parent=1 // pred_check
      _
    $region27: #{tpu_custom_call.1} parent=1 // pred_check_branch
      %31 = sbr.rel (0) target = $region29
    $region28: #{tpu_custom_call.1} parent=1 // pred_region
      _
    $region29: #{tpu_custom_call.1} parent=1 // pred_fallthru
      _
    // Predicated region
    $region30: #{tpu_custom_call.1} parent=1 // pred_check
      _
    $region31: #{tpu_custom_call.1} parent=1 // pred_check_branch
      %33 = sbr.rel (0) target = $region33
    $region32: #{tpu_custom_call.1} parent=1 // pred_region
      _
    $region33: #{tpu_custom_call.1} parent=1 // pred_fallthru
      _
    // Predicated region
    $region34: #{tpu_custom_call.1} parent=1 // pred_check
      _
    $region35: #{tpu_custom_call.1} parent=1 // pred_check_branch
      %35 = sbr.rel (0) target = $region37
    $region36: #{tpu_custom_call.1} parent=1 // pred_region
      _
    $region37: #{tpu_custom_call.1} parent=1 // pred_fallthru
      _
    // Predicated region
    $region38: #{tpu_custom_call.1} parent=1 // pred_check
      _
    $region39: #{tpu_custom_call.1} parent=1 // pred_check_branch
      %37 = sbr.rel (0) target = $region41
    $region40: #{tpu_custom_call.1} parent=1 // pred_region
      _
    $region41: #{tpu_custom_call.1} parent=1 // pred_fallthru
      _
    // Predicated region
    $region42: #{tpu_custom_call.1} parent=1 // pred_check
      _
    $region43: #{tpu_custom_call.1} parent=1 // pred_check_branch
      %39 = sbr.rel (0) target = $region45
    $region44: #{tpu_custom_call.1} parent=1 // pred_region
      _
    $region45: #{tpu_custom_call.1} parent=1 // pred_fallthru
      _
    // Predicated region
    $region46: #{tpu_custom_call.1} parent=1 // pred_check
      _
    $region47: #{tpu_custom_call.1} parent=1 // pred_check_branch
      %41 = sbr.rel (0) target = $region49
    $region48: #{tpu_custom_call.1} parent=1 // pred_region
      _
    $region49: #{tpu_custom_call.1} parent=1 // pred_fallthru
      _
    %p42 = scmp.eq.s32.totalorder 0, 0
    // Predicated region
    $region50: #{tpu_custom_call.1} parent=1 // pred_check
      %p43 = pneg %p42
    $region51: #{tpu_custom_call.1} parent=1 // pred_check_branch
      %45 = sbr.rel (%p43) target = $region53
    $region52: #{tpu_custom_call.1} parent=1 // pred_region
      %vm46 = vcmask 261120
      %47 = vst.msk [vmem:[#allocation2] sm:$0xff] %vm46, 0.0
      %48 = vst.msk [vmem:[#allocation2 + $0x8] sm:$0xff] %vm46, 0.0
      %49 = vst.msk [vmem:[#allocation2 + $0x10] sm:$0xff] %vm46, 0.0
      %50 = vst.msk [vmem:[#allocation2 + $0x18] sm:$0xff] %vm46, 0.0
    $region53: #{tpu_custom_call.1} parent=1 // pred_fallthru
      _
    %v51 = vld [vmem:[%s1] sm:$0xff]
    %v52 = vld [vmem:[%s1 + $0x8] sm:$0xff]
    %v53 = vld [vmem:[%s2] sm:$0xf]
    %v54 = vld [vmem:[%s3] sm:$0xff]
    %v55 = vld [vmem:[%s3 + $0x8] sm:$0xff]
    %v56 = vld [vmem:[%s3 + $0x10] sm:$0xff]
    %v57 = vld [vmem:[%s3 + $0x18] sm:$0xff]
    %v58 = vld [vmem:[%s4] sm:$0xf]
    %v59 = vld [vmem:[%s5] sm:$0xff]
    %v60 = vld [vmem:[%s5 + $0x8] sm:$0xff]
    %v61 = vld [vmem:[%s5 + $0x10] sm:$0xff]
    %v62 = vld [vmem:[%s5 + $0x18] sm:$0xff]
    %v63 = vld [vmem:[%s6] sm:$0xf]
    %v64 = vld [vmem:[%s7] sm:$0xff]
    %v65 = vld [vmem:[%s7 + $0x8] sm:$0xff]
    %v66 = vld [vmem:[%s7 + $0x10] sm:$0xff]
    %v67 = vld [vmem:[%s7 + $0x18] sm:$0xff]
    %v68 = vld [vmem:[%s8] sm:$0xff]
    %v69 = vld [vmem:[%s8 + $0x8] sm:$0xff]
    %v70 = vld [vmem:[%s8 + $0x10] sm:$0xff]
    %v71 = vld [vmem:[%s8 + $0x18] sm:$0xff]
    %s72 = scalar_lea.vmem %s8, 32
    %v73 = vld [vmem:[%s72] sm:$0xff]
    %v74 = vld [vmem:[%s72 + $0x8] sm:$0xff]
    %v75 = vld [vmem:[%s72 + $0x10] sm:$0xff]
    %v76 = vld [vmem:[%s72 + $0x18] sm:$0xff]
    %s77 = scalar_lea.vmem %s8, 64
    %v78 = vld [vmem:[%s77] sm:$0xff]
    %v79 = vld [vmem:[%s77 + $0x8] sm:$0xff]
    %v80 = vld [vmem:[%s77 + $0x10] sm:$0xff]
    %v81 = vld [vmem:[%s77 + $0x18] sm:$0xff]
    %v82 = vld [vmem:[%s9] sm:$0x1]
    %v83 = vld [vmem:[%s10] sm:$0x1]
    %v84 = vld [vmem:[%s11] sm:$0x1]
    %v85 = vld [vmem:[#allocation2] sm:$0xff]
    %v86 = vld [vmem:[#allocation2 + $0x8] sm:$0xff]
    %v87 = vld [vmem:[#allocation2 + $0x10] sm:$0xff]
    %v88 = vld [vmem:[#allocation2 + $0x18] sm:$0xff]
    %v89 = vld [vmem:[%s0] sm:$0xff]
    %v90 = vld [vmem:[%s0 + $0x8] sm:$0xff]
    %v91 = vld [vmem:[%s0 + $0x10] sm:$0xff]
    %v92 = vld [vmem:[%s0 + $0x18] sm:$0xff]
    %vm93 = vcmask 261120
    %v95 = vsel %vm93, %v85, 0
    %v98 = vsel %vm93, %v86, 0
    %v101 = vsel %vm93, %v87, 0
    %v104 = vsel %vm93, %v88, 0
    %106 = vmatpush.msra.mxu0 0.0
    %107 = vmatpush.msra.mxu0 0.0
    %108 = vmatpush.msra.mxu0 0.0
    %109 = vmatpush.msra.mxu0 0.0
    %110 = vmatpush.msra.mxu0 0.0
    %111 = vmatpush.msra.mxu0 0.0
    %112 = vmatpush.msra.mxu0 0.0
    %113 = vmatpush.msra.mxu0 0.0
    %114 = vmatpush.msra.mxu0 0.0
    %115 = vmatpush.msra.mxu0 0.0
    %116 = vmatpush.msra.mxu0 0.0
    %117 = vmatpush.msra.mxu0 0.0
    %118 = vmatpush.msra.mxu0 %v57
    %119 = vmatpush.msra.mxu0 %v56
    %120 = vmatpush.msra.mxu0 %v55
    %121 = vmatpush.msra.mxu0 %v54
    %122 = vmatmul.f32.gmra.mxu0 %v95
    %v123 = vpop.f32.mrf.mxu0
    %v124 = vadd.f32 0.0, %v123
    %125 = vmatmul.f32.gmra.mxu0 %v98
    %v126 = vpop.f32.mrf.mxu0
    %v127 = vadd.f32 0.0, %v126
    %128 = vmatmul.f32.gmra.mxu0 %v101
    %v129 = vpop.f32.mrf.mxu0
    %v130 = vadd.f32 0.0, %v129
    %131 = vmatmul.f32.gmra.mxu0 %v104
    %v132 = vpop.f32.mrf.mxu0
    %v133 = vadd.f32 0.0, %v132
    %134 = vdwg.mxu0
    %vm135 = vcmask 31744
    %v137 = vsel %vm135, %v89, 0
    %v140 = vsel %vm135, %v90, 0
    %v143 = vsel %vm135, %v91, 0
    %v146 = vsel %vm135, %v92, 0
    %vm148 = vcmask 1043456
    %v150 = vsel %vm148, %v53, 0
    %152 = vmatpush.msra.mxu0 0.0
    %153 = vmatpush.msra.mxu0 0.0
    %154 = vmatpush.msra.mxu0 0.0
    %155 = vmatpush.msra.mxu0 0.0
    %156 = vmatpush.msra.mxu0 0.0
    %157 = vmatpush.msra.mxu0 0.0
    %158 = vmatpush.msra.mxu0 0.0
    %159 = vmatpush.msra.mxu0 0.0
    %160 = vmatpush.msra.mxu0 0.0
    %161 = vmatpush.msra.mxu0 0.0
    %162 = vmatpush.msra.mxu0 0.0
    %163 = vmatpush.msra.mxu0 0.0
    %164 = vmatpush.msra.mxu0 0.0
    %165 = vmatpush.msra.mxu0 0.0
    %166 = vmatpush.msra.mxu0 0.0
    %167 = vmatpush.msra.mxu0 %v150
    %168 = vmatmul.f32.gmra.mxu0 %v137
    %v169 = vpop.f32.mrf.mxu0
    %v170 = vadd.f32 %v124, %v169
    %171 = vmatmul.f32.gmra.mxu0 %v140
    %v172 = vpop.f32.mrf.mxu0
    %v173 = vadd.f32 %v127, %v172
    %174 = vmatmul.f32.gmra.mxu0 %v143
    %v175 = vpop.f32.mrf.mxu0
    %v176 = vadd.f32 %v130, %v175
    %177 = vmatmul.f32.gmra.mxu0 %v146
    %v178 = vpop.f32.mrf.mxu0
    %v179 = vadd.f32 %v133, %v178
    %180 = vdwg.mxu0
    %v182 = vperm.slane %v82, 0
    %v184 = vadd.f32 %v170, %v182
    %v185 = vadd.f32 %v173, %v182
    %v186 = vadd.f32 %v176, %v182
    %v187 = vadd.f32 %v179, %v182
    %v188 = vxor.u32 %v184, 2147483648
    %v189 = vxor.u32 %v185, 2147483648
    %v190 = vxor.u32 %v186, 2147483648
    %v191 = vxor.u32 %v187, 2147483648
    %v192 = vmul.f32 %v188, 1.442695
    %v193 = vpow.pop %v192
    %v194 = vmul.f32 %v189, 1.442695
    %v195 = vpow.pop %v194
    %v196 = vmul.f32 %v190, 1.442695
    %v197 = vpow.pop %v196
    %v198 = vmul.f32 %v191, 1.442695
    %v199 = vpow.pop %v198
    %v200 = vadd.f32 %v193, 1.0
    %v201 = vadd.f32 %v195, 1.0
    %v202 = vadd.f32 %v197, 1.0
    %v203 = vadd.f32 %v199, 1.0
    %v204 = vrcp.pop %v200
    %v205 = vmul.f32 %v200, %v204
    %v206 = vsub.f32 1.0, %v205
    %v207 = vmul.f32 %v204, %v206
    %v208 = vadd.f32 %v204, %v207
    %vm209 = vweird.f32 %v200
    %vm210 = vweird.f32 %v204
    %vm211 = vmor %vm209, %vm210
    %v212 = vsel %vm211, %v204, %v208
    %v213 = vand.u32 2147483647, %v200
    %vm214 = vcmp.eq.f32.partialorder %v213, 8.507059e+37
    %v215 = vand.u32 %v200, 2147483648
    %v216 = vor.u32 1.1754944e-38, %v215
    %v217 = vsel %vm214, %v216, %v212
    %v218 = vmul.f32 1.0, %v217
    %v219 = vrcp.pop %v201
    %v220 = vmul.f32 %v201, %v219
    %v221 = vsub.f32 1.0, %v220
    %v222 = vmul.f32 %v219, %v221
    %v223 = vadd.f32 %v219, %v222
    %vm224 = vweird.f32 %v201
    %vm225 = vweird.f32 %v219
    %vm226 = vmor %vm224, %vm225
    %v227 = vsel %vm226, %v219, %v223
    %v228 = vand.u32 2147483647, %v201
    %vm229 = vcmp.eq.f32.partialorder %v228, 8.507059e+37
    %v230 = vand.u32 %v201, 2147483648
    %v231 = vor.u32 1.1754944e-38, %v230
    %v232 = vsel %vm229, %v231, %v227
    %v233 = vmul.f32 1.0, %v232
    %v234 = vrcp.pop %v202
    %v235 = vmul.f32 %v202, %v234
    %v236 = vsub.f32 1.0, %v235
    %v237 = vmul.f32 %v234, %v236
    %v238 = vadd.f32 %v234, %v237
    %vm239 = vweird.f32 %v202
    %vm240 = vweird.f32 %v234
    %vm241 = vmor %vm239, %vm240
    %v242 = vsel %vm241, %v234, %v238
    %v243 = vand.u32 2147483647, %v202
    %vm244 = vcmp.eq.f32.partialorder %v243, 8.507059e+37
    %v245 = vand.u32 %v202, 2147483648
    %v246 = vor.u32 1.1754944e-38, %v245
    %v247 = vsel %vm244, %v246, %v242
    %v248 = vmul.f32 1.0, %v247
    %v249 = vrcp.pop %v203
    %v250 = vmul.f32 %v203, %v249
    %v251 = vsub.f32 1.0, %v250
    %v252 = vmul.f32 %v249, %v251
    %v253 = vadd.f32 %v249, %v252
    %vm254 = vweird.f32 %v203
    %vm255 = vweird.f32 %v249
    %vm256 = vmor %vm254, %vm255
    %v257 = vsel %vm256, %v249, %v253
    %v258 = vand.u32 2147483647, %v203
    %vm259 = vcmp.eq.f32.partialorder %v258, 8.507059e+37
    %v260 = vand.u32 %v203, 2147483648
    %v261 = vor.u32 1.1754944e-38, %v260
    %v262 = vsel %vm259, %v261, %v257
    %v263 = vmul.f32 1.0, %v262
    %264 = vmatpush.msra.mxu0 0.0
    %265 = vmatpush.msra.mxu0 0.0
    %266 = vmatpush.msra.mxu0 0.0
    %267 = vmatpush.msra.mxu0 0.0
    %268 = vmatpush.msra.mxu0 0.0
    %269 = vmatpush.msra.mxu0 0.0
    %270 = vmatpush.msra.mxu0 0.0
    %271 = vmatpush.msra.mxu0 0.0
    %272 = vmatpush.msra.mxu0 0.0
    %273 = vmatpush.msra.mxu0 0.0
    %274 = vmatpush.msra.mxu0 0.0
    %275 = vmatpush.msra.mxu0 0.0
    %276 = vmatpush.msra.mxu0 %v62
    %277 = vmatpush.msra.mxu0 %v61
    %278 = vmatpush.msra.mxu0 %v60
    %279 = vmatpush.msra.mxu0 %v59
    %280 = vmatmul.f32.gmra.mxu0 %v95
    %v281 = vpop.f32.mrf.mxu0
    %v282 = vadd.f32 0.0, %v281
    %283 = vmatmul.f32.gmra.mxu0 %v98
    %v284 = vpop.f32.mrf.mxu0
    %v285 = vadd.f32 0.0, %v284
    %286 = vmatmul.f32.gmra.mxu0 %v101
    %v287 = vpop.f32.mrf.mxu0
    %v288 = vadd.f32 0.0, %v287
    %289 = vmatmul.f32.gmra.mxu0 %v104
    %v290 = vpop.f32.mrf.mxu0
    %v291 = vadd.f32 0.0, %v290
    %292 = vdwg.mxu0
    %v294 = vsel %vm148, %v58, 0
    %296 = vmatpush.msra.mxu0 0.0
    %297 = vmatpush.msra.mxu0 0.0
    %298 = vmatpush.msra.mxu0 0.0
    %299 = vmatpush.msra.mxu0 0.0
    %300 = vmatpush.msra.mxu0 0.0
    %301 = vmatpush.msra.mxu0 0.0
    %302 = vmatpush.msra.mxu0 0.0
    %303 = vmatpush.msra.mxu0 0.0
    %304 = vmatpush.msra.mxu0 0.0
    %305 = vmatpush.msra.mxu0 0.0
    %306 = vmatpush.msra.mxu0 0.0
    %307 = vmatpush.msra.mxu0 0.0
    %308 = vmatpush.msra.mxu0 0.0
    %309 = vmatpush.msra.mxu0 0.0
    %310 = vmatpush.msra.mxu0 0.0
    %311 = vmatpush.msra.mxu0 %v294
    %312 = vmatmul.f32.gmra.mxu0 %v137
    %v313 = vpop.f32.mrf.mxu0
    %v314 = vadd.f32 %v282, %v313
    %315 = vmatmul.f32.gmra.mxu0 %v140
    %v316 = vpop.f32.mrf.mxu0
    %v317 = vadd.f32 %v285, %v316
    %318 = vmatmul.f32.gmra.mxu0 %v143
    %v319 = vpop.f32.mrf.mxu0
    %v320 = vadd.f32 %v288, %v319
    %321 = vmatmul.f32.gmra.mxu0 %v146
    %v322 = vpop.f32.mrf.mxu0
    %v323 = vadd.f32 %v291, %v322
    %324 = vdwg.mxu0
    %v326 = vperm.slane %v83, 0
    %v328 = vadd.f32 %v314, %v326
    %v329 = vadd.f32 %v317, %v326
    %v330 = vadd.f32 %v320, %v326
    %v331 = vadd.f32 %v323, %v326
    %v332 = vxor.u32 %v328, 2147483648
    %v333 = vxor.u32 %v329, 2147483648
    %v334 = vxor.u32 %v330, 2147483648
    %v335 = vxor.u32 %v331, 2147483648
    %v336 = vmul.f32 %v332, 1.442695
    %v337 = vpow.pop %v336
    %v338 = vmul.f32 %v333, 1.442695
    %v339 = vpow.pop %v338
    %v340 = vmul.f32 %v334, 1.442695
    %v341 = vpow.pop %v340
    %v342 = vmul.f32 %v335, 1.442695
    %v343 = vpow.pop %v342
    %v344 = vadd.f32 %v337, 1.0
    %v345 = vadd.f32 %v339, 1.0
    %v346 = vadd.f32 %v341, 1.0
    %v347 = vadd.f32 %v343, 1.0
    %v348 = vrcp.pop %v344
    %v349 = vmul.f32 %v344, %v348
    %v350 = vsub.f32 1.0, %v349
    %v351 = vmul.f32 %v348, %v350
    %v352 = vadd.f32 %v348, %v351
    %vm353 = vweird.f32 %v344
    %vm354 = vweird.f32 %v348
    %vm355 = vmor %vm353, %vm354
    %v356 = vsel %vm355, %v348, %v352
    %v357 = vand.u32 2147483647, %v344
    %vm358 = vcmp.eq.f32.partialorder %v357, 8.507059e+37
    %v359 = vand.u32 %v344, 2147483648
    %v360 = vor.u32 1.1754944e-38, %v359
    %v361 = vsel %vm358, %v360, %v356
    %v362 = vmul.f32 1.0, %v361
    %v363 = vrcp.pop %v345
    %v364 = vmul.f32 %v345, %v363
    %v365 = vsub.f32 1.0, %v364
    %v366 = vmul.f32 %v363, %v365
    %v367 = vadd.f32 %v363, %v366
    %vm368 = vweird.f32 %v345
    %vm369 = vweird.f32 %v363
    %vm370 = vmor %vm368, %vm369
    %v371 = vsel %vm370, %v363, %v367
    %v372 = vand.u32 2147483647, %v345
    %vm373 = vcmp.eq.f32.partialorder %v372, 8.507059e+37
    %v374 = vand.u32 %v345, 2147483648
    %v375 = vor.u32 1.1754944e-38, %v374
    %v376 = vsel %vm373, %v375, %v371
    %v377 = vmul.f32 1.0, %v376
    %v378 = vrcp.pop %v346
    %v379 = vmul.f32 %v346, %v378
    %v380 = vsub.f32 1.0, %v379
    %v381 = vmul.f32 %v378, %v380
    %v382 = vadd.f32 %v378, %v381
    %vm383 = vweird.f32 %v346
    %vm384 = vweird.f32 %v378
    %vm385 = vmor %vm383, %vm384
    %v386 = vsel %vm385, %v378, %v382
    %v387 = vand.u32 2147483647, %v346
    %vm388 = vcmp.eq.f32.partialorder %v387, 8.507059e+37
    %v389 = vand.u32 %v346, 2147483648
    %v390 = vor.u32 1.1754944e-38, %v389
    %v391 = vsel %vm388, %v390, %v386
    %v392 = vmul.f32 1.0, %v391
    %v393 = vrcp.pop %v347
    %v394 = vmul.f32 %v347, %v393
    %v395 = vsub.f32 1.0, %v394
    %v396 = vmul.f32 %v393, %v395
    %v397 = vadd.f32 %v393, %v396
    %vm398 = vweird.f32 %v347
    %vm399 = vweird.f32 %v393
    %vm400 = vmor %vm398, %vm399
    %v401 = vsel %vm400, %v393, %v397
    %v402 = vand.u32 2147483647, %v347
    %vm403 = vcmp.eq.f32.partialorder %v402, 8.507059e+37
    %v404 = vand.u32 %v347, 2147483648
    %v405 = vor.u32 1.1754944e-38, %v404
    %v406 = vsel %vm403, %v405, %v401
    %v407 = vmul.f32 1.0, %v406
    %vm408 = vcmask 130048
    %v410 = vsel %vm408, %v51, 0
    %v413 = vsel %vm408, %v52, 0
    %415 = vmatpush.msra.mxu0 0.0
    %416 = vmatpush.msra.mxu0 0.0
    %417 = vmatpush.msra.mxu0 0.0
    %418 = vmatpush.msra.mxu0 0.0
    %419 = vmatpush.msra.mxu0 0.0
    %420 = vmatpush.msra.mxu0 0.0
    %421 = vmatpush.msra.mxu0 0.0
    %422 = vmatpush.msra.mxu0 0.0
    %423 = vmatpush.msra.mxu0 0.0
    %424 = vmatpush.msra.mxu0 0.0
    %425 = vmatpush.msra.mxu0 0.0
    %426 = vmatpush.msra.mxu0 0.0
    %427 = vmatpush.msra.mxu0 0.0
    %428 = vmatpush.msra.mxu0 0.0
    %429 = vmatpush.msra.mxu0 %v86
    %430 = vmatpush.msra.mxu0 %v85
    %431 = vmatmul.f32.gmra.mxu0 %v410
    %v432 = vpop.f32.mrf.mxu0
    %v433 = vadd.f32 0.0, %v432
    %434 = vmatmul.f32.gmra.mxu0 %v413
    %v435 = vpop.f32.mrf.mxu0
    %v436 = vadd.f32 0.0, %v435
    %437 = vdwg.mxu0
    %438 = vmatpush.msra.mxu0 0.0
    %439 = vmatpush.msra.mxu0 0.0
    %440 = vmatpush.msra.mxu0 0.0
    %441 = vmatpush.msra.mxu0 0.0
    %442 = vmatpush.msra.mxu0 0.0
    %443 = vmatpush.msra.mxu0 0.0
    %444 = vmatpush.msra.mxu0 0.0
    %445 = vmatpush.msra.mxu0 0.0
    %446 = vmatpush.msra.mxu0 0.0
    %447 = vmatpush.msra.mxu0 0.0
    %448 = vmatpush.msra.mxu0 0.0
    %449 = vmatpush.msra.mxu0 0.0
    %450 = vmatpush.msra.mxu0 0.0
    %451 = vmatpush.msra.mxu0 0.0
    %452 = vmatpush.msra.mxu0 %v88
    %453 = vmatpush.msra.mxu0 %v87
    %454 = vmatmul.f32.gmra.mxu0 %v410
    %v455 = vpop.f32.mrf.mxu0
    %v456 = vadd.f32 0.0, %v455
    %457 = vmatmul.f32.gmra.mxu0 %v413
    %v458 = vpop.f32.mrf.mxu0
    %v459 = vadd.f32 0.0, %v458
    %460 = vdwg.mxu0
    %v462 = vsel %vm93, %v433, 0
    %v465 = vsel %vm93, %v436, 0
    %v468 = vsel %vm93, %v456, 0
    %v471 = vsel %vm93, %v459, 0
    %473 = vmatpush.msra.mxu0 0.0
    %474 = vmatpush.msra.mxu0 0.0
    %475 = vmatpush.msra.mxu0 0.0
    %476 = vmatpush.msra.mxu0 0.0
    %477 = vmatpush.msra.mxu0 0.0
    %478 = vmatpush.msra.mxu0 0.0
    %479 = vmatpush.msra.mxu0 0.0
    %480 = vmatpush.msra.mxu0 0.0
    %481 = vmatpush.msra.mxu0 0.0
    %482 = vmatpush.msra.mxu0 0.0
    %483 = vmatpush.msra.mxu0 0.0
    %484 = vmatpush.msra.mxu0 0.0
    %485 = vmatpush.msra.mxu0 %v76
    %486 = vmatpush.msra.mxu0 %v75
    %487 = vmatpush.msra.mxu0 %v74
    %488 = vmatpush.msra.mxu0 %v73
    %489 = vmatmul.f32.gmra.mxu0 %v462
    %v490 = vpop.f32.mrf.mxu0
    %v491 = vadd.f32 0.0, %v490
    %492 = vmatmul.f32.gmra.mxu0 %v465
    %v493 = vpop.f32.mrf.mxu0
    %v494 = vadd.f32 0.0, %v493
    %495 = vmatmul.f32.gmra.mxu0 %v468
    %v496 = vpop.f32.mrf.mxu0
    %v497 = vadd.f32 0.0, %v496
    %498 = vmatmul.f32.gmra.mxu0 %v471
    %v499 = vpop.f32.mrf.mxu0
    %v500 = vadd.f32 0.0, %v499
    %501 = vdwg.mxu0
    %502 = vmatpush.msra.mxu0 0.0
    %503 = vmatpush.msra.mxu0 0.0
    %504 = vmatpush.msra.mxu0 0.0
    %505 = vmatpush.msra.mxu0 0.0
    %506 = vmatpush.msra.mxu0 0.0
    %507 = vmatpush.msra.mxu0 0.0
    %508 = vmatpush.msra.mxu0 0.0
    %509 = vmatpush.msra.mxu0 0.0
    %510 = vmatpush.msra.mxu0 0.0
    %511 = vmatpush.msra.mxu0 0.0
    %512 = vmatpush.msra.mxu0 0.0
    %513 = vmatpush.msra.mxu0 0.0
    %514 = vmatpush.msra.mxu0 %v71
    %515 = vmatpush.msra.mxu0 %v70
    %516 = vmatpush.msra.mxu0 %v69
    %517 = vmatpush.msra.mxu0 %v68
    %518 = vmatmul.f32.gmra.mxu0 %v95
    %v519 = vpop.f32.mrf.mxu0
    %v520 = vadd.f32 %v491, %v519
    %521 = vmatmul.f32.gmra.mxu0 %v98
    %v522 = vpop.f32.mrf.mxu0
    %v523 = vadd.f32 %v494, %v522
    %524 = vmatmul.f32.gmra.mxu0 %v101
    %v525 = vpop.f32.mrf.mxu0
    %v526 = vadd.f32 %v497, %v525
    %527 = vmatmul.f32.gmra.mxu0 %v104
    %v528 = vpop.f32.mrf.mxu0
    %v529 = vadd.f32 %v500, %v528
    %530 = vdwg.mxu0
    %531 = vmatpush.msra.mxu0 0.0
    %532 = vmatpush.msra.mxu0 0.0
    %533 = vmatpush.msra.mxu0 0.0
    %534 = vmatpush.msra.mxu0 0.0
    %535 = vmatpush.msra.mxu0 0.0
    %536 = vmatpush.msra.mxu0 0.0
    %537 = vmatpush.msra.mxu0 0.0
    %538 = vmatpush.msra.mxu0 0.0
    %539 = vmatpush.msra.mxu0 0.0
    %540 = vmatpush.msra.mxu0 0.0
    %541 = vmatpush.msra.mxu0 0.0
    %542 = vmatpush.msra.mxu0 0.0
    %543 = vmatpush.msra.mxu0 0.0
    %544 = vmatpush.msra.mxu0 0.0
    %545 = vmatpush.msra.mxu0 %v436
    %546 = vmatpush.msra.mxu0 %v433
    %547 = vmatmul.f32.gmra.mxu0 %v410
    %v548 = vpop.f32.mrf.mxu0
    %v549 = vadd.f32 0.0, %v548
    %550 = vmatmul.f32.gmra.mxu0 %v413
    %v551 = vpop.f32.mrf.mxu0
    %v552 = vadd.f32 0.0, %v551
    %553 = vdwg.mxu0
    %554 = vmatpush.msra.mxu0 0.0
    %555 = vmatpush.msra.mxu0 0.0
    %556 = vmatpush.msra.mxu0 0.0
    %557 = vmatpush.msra.mxu0 0.0
    %558 = vmatpush.msra.mxu0 0.0
    %559 = vmatpush.msra.mxu0 0.0
    %560 = vmatpush.msra.mxu0 0.0
    %561 = vmatpush.msra.mxu0 0.0
    %562 = vmatpush.msra.mxu0 0.0
    %563 = vmatpush.msra.mxu0 0.0
    %564 = vmatpush.msra.mxu0 0.0
    %565 = vmatpush.msra.mxu0 0.0
    %566 = vmatpush.msra.mxu0 0.0
    %567 = vmatpush.msra.mxu0 0.0
    %568 = vmatpush.msra.mxu0 %v459
    %569 = vmatpush.msra.mxu0 %v456
    %570 = vmatmul.f32.gmra.mxu0 %v410
    %v571 = vpop.f32.mrf.mxu0
    %v572 = vadd.f32 0.0, %v571
    %573 = vmatmul.f32.gmra.mxu0 %v413
    %v574 = vpop.f32.mrf.mxu0
    %v575 = vadd.f32 0.0, %v574
    %576 = vdwg.mxu0
    %v578 = vsel %vm93, %v549, 0
    %v581 = vsel %vm93, %v552, 0
    %v584 = vsel %vm93, %v572, 0
    %v587 = vsel %vm93, %v575, 0
    %589 = vmatpush.msra.mxu0 0.0
    %590 = vmatpush.msra.mxu0 0.0
    %591 = vmatpush.msra.mxu0 0.0
    %592 = vmatpush.msra.mxu0 0.0
    %593 = vmatpush.msra.mxu0 0.0
    %594 = vmatpush.msra.mxu0 0.0
    %595 = vmatpush.msra.mxu0 0.0
    %596 = vmatpush.msra.mxu0 0.0
    %597 = vmatpush.msra.mxu0 0.0
    %598 = vmatpush.msra.mxu0 0.0
    %599 = vmatpush.msra.mxu0 0.0
    %600 = vmatpush.msra.mxu0 0.0
    %601 = vmatpush.msra.mxu0 %v81
    %602 = vmatpush.msra.mxu0 %v80
    %603 = vmatpush.msra.mxu0 %v79
    %604 = vmatpush.msra.mxu0 %v78
    %605 = vmatmul.f32.gmra.mxu0 %v578
    %v606 = vpop.f32.mrf.mxu0
    %v607 = vadd.f32 0.0, %v606
    %608 = vmatmul.f32.gmra.mxu0 %v581
    %v609 = vpop.f32.mrf.mxu0
    %v610 = vadd.f32 0.0, %v609
    %611 = vmatmul.f32.gmra.mxu0 %v584
    %v612 = vpop.f32.mrf.mxu0
    %v613 = vadd.f32 0.0, %v612
    %614 = vmatmul.f32.gmra.mxu0 %v587
    %v615 = vpop.f32.mrf.mxu0
    %v616 = vadd.f32 0.0, %v615
    %617 = vdwg.mxu0
    %v618 = vadd.f32 %v520, %v607
    %v619 = vadd.f32 %v523, %v610
    %v620 = vadd.f32 %v526, %v613
    %v621 = vadd.f32 %v529, %v616
    %v622 = vmul.f32 %v218, %v618
    %v623 = vmul.f32 %v233, %v619
    %v624 = vmul.f32 %v248, %v620
    %v625 = vmul.f32 %v263, %v621
    %v627 = vsel %vm93, %v622, 0
    %v630 = vsel %vm93, %v623, 0
    %v633 = vsel %vm93, %v624, 0
    %v636 = vsel %vm93, %v625, 0
    %638 = vmatpush.msra.mxu0 0.0
    %639 = vmatpush.msra.mxu0 0.0
    %640 = vmatpush.msra.mxu0 0.0
    %641 = vmatpush.msra.mxu0 0.0
    %642 = vmatpush.msra.mxu0 0.0
    %643 = vmatpush.msra.mxu0 0.0
    %644 = vmatpush.msra.mxu0 0.0
    %645 = vmatpush.msra.mxu0 0.0
    %646 = vmatpush.msra.mxu0 0.0
    %647 = vmatpush.msra.mxu0 0.0
    %648 = vmatpush.msra.mxu0 0.0
    %649 = vmatpush.msra.mxu0 0.0
    %650 = vmatpush.msra.mxu0 %v67
    %651 = vmatpush.msra.mxu0 %v66
    %652 = vmatpush.msra.mxu0 %v65
    %653 = vmatpush.msra.mxu0 %v64
    %654 = vmatmul.f32.gmra.mxu0 %v627
    %v655 = vpop.f32.mrf.mxu0
    %v656 = vadd.f32 0.0, %v655
    %657 = vmatmul.f32.gmra.mxu0 %v630
    %v658 = vpop.f32.mrf.mxu0
    %v659 = vadd.f32 0.0, %v658
    %660 = vmatmul.f32.gmra.mxu0 %v633
    %v661 = vpop.f32.mrf.mxu0
    %v662 = vadd.f32 0.0, %v661
    %663 = vmatmul.f32.gmra.mxu0 %v636
    %v664 = vpop.f32.mrf.mxu0
    %v665 = vadd.f32 0.0, %v664
    %666 = vdwg.mxu0
    %v668 = vsel %vm148, %v63, 0
    %670 = vmatpush.msra.mxu0 0.0
    %671 = vmatpush.msra.mxu0 0.0
    %672 = vmatpush.msra.mxu0 0.0
    %673 = vmatpush.msra.mxu0 0.0
    %674 = vmatpush.msra.mxu0 0.0
    %675 = vmatpush.msra.mxu0 0.0
    %676 = vmatpush.msra.mxu0 0.0
    %677 = vmatpush.msra.mxu0 0.0
    %678 = vmatpush.msra.mxu0 0.0
    %679 = vmatpush.msra.mxu0 0.0
    %680 = vmatpush.msra.mxu0 0.0
    %681 = vmatpush.msra.mxu0 0.0
    %682 = vmatpush.msra.mxu0 0.0
    %683 = vmatpush.msra.mxu0 0.0
    %684 = vmatpush.msra.mxu0 0.0
    %685 = vmatpush.msra.mxu0 %v668
    %686 = vmatmul.f32.gmra.mxu0 %v137
    %v687 = vpop.f32.mrf.mxu0
    %v688 = vadd.f32 %v656, %v687
    %689 = vmatmul.f32.gmra.mxu0 %v140
    %v690 = vpop.f32.mrf.mxu0
    %v691 = vadd.f32 %v659, %v690
    %692 = vmatmul.f32.gmra.mxu0 %v143
    %v693 = vpop.f32.mrf.mxu0
    %v694 = vadd.f32 %v662, %v693
    %695 = vmatmul.f32.gmra.mxu0 %v146
    %v696 = vpop.f32.mrf.mxu0
    %v697 = vadd.f32 %v665, %v696
    %698 = vdwg.mxu0
    %v700 = vperm.slane %v84, 0
    %v702 = vadd.f32 %v688, %v700
    %v703 = vadd.f32 %v691, %v700
    %v704 = vadd.f32 %v694, %v700
    %v705 = vadd.f32 %v697, %v700
    %v706 = vtanh.pop %v702
    %v707 = vtanh.pop %v703
    %v708 = vtanh.pop %v704
    %v709 = vtanh.pop %v705
    %v710 = vmul.f32 %v362, %v85
    %v711 = vmul.f32 %v377, %v86
    %v712 = vmul.f32 %v392, %v87
    %v713 = vmul.f32 %v407, %v88
    %v714 = vsub.f32 1.0, %v362
    %v715 = vsub.f32 1.0, %v377
    %v716 = vsub.f32 1.0, %v392
    %v717 = vsub.f32 1.0, %v407
    %v718 = vmul.f32 %v714, %v706
    %v719 = vmul.f32 %v715, %v707
    %v720 = vmul.f32 %v716, %v708
    %v721 = vmul.f32 %v717, %v709
    %v722 = vadd.f32 %v710, %v718
    %v723 = vadd.f32 %v711, %v719
    %v724 = vadd.f32 %v712, %v720
    %v725 = vadd.f32 %v713, %v721
    %726 = vst.msk [vmem:[#allocation2] sm:$0xff] %vm93, %v722
    %727 = vst.msk [vmem:[#allocation2 + $0x8] sm:$0xff] %vm93, %v723
    %728 = vst.msk [vmem:[#allocation2 + $0x10] sm:$0xff] %vm93, %v724
    %729 = vst.msk [vmem:[#allocation2 + $0x18] sm:$0xff] %vm93, %v725
    %730 = vst.msk [vmem:[#allocation3] sm:$0xff] %vm93, %v722
    %731 = vst.msk [vmem:[#allocation3 + $0x8] sm:$0xff] %vm93, %v723
    %732 = vst.msk [vmem:[#allocation3 + $0x10] sm:$0xff] %vm93, %v724
    %733 = vst.msk [vmem:[#allocation3 + $0x18] sm:$0xff] %vm93, %v725
    %v734 = vld [vmem:[#allocation2] sm:$0xff]
    %v735 = vld [vmem:[#allocation2 + $0x8] sm:$0xff]
    %v736 = vld [vmem:[#allocation2 + $0x10] sm:$0xff]
    %v737 = vld [vmem:[#allocation2 + $0x18] sm:$0xff]
    %s738 = scalar_lea.vmem %s0, 32
    %v739 = vld [vmem:[%s738] sm:$0xff]
    %v740 = vld [vmem:[%s738 + $0x8] sm:$0xff]
    %v741 = vld [vmem:[%s738 + $0x10] sm:$0xff]
    %v742 = vld [vmem:[%s738 + $0x18] sm:$0xff]
    %v744 = vsel %vm93, %v734, 0
    %v747 = vsel %vm93, %v735, 0
    %v750 = vsel %vm93, %v736, 0
    %v753 = vsel %vm93, %v737, 0
    %755 = vmatpush.msra.mxu0 0.0
    %756 = vmatpush.msra.mxu0 0.0
    %757 = vmatpush.msra.mxu0 0.0
    %758 = vmatpush.msra.mxu0 0.0
    %759 = vmatpush.msra.mxu0 0.0
    %760 = vmatpush.msra.mxu0 0.0
    %761 = vmatpush.msra.mxu0 0.0
    %762 = vmatpush.msra.mxu0 0.0
    %763 = vmatpush.msra.mxu0 0.0
    %764 = vmatpush.msra.mxu0 0.0
    %765 = vmatpush.msra.mxu0 0.0
    %766 = vmatpush.msra.mxu0 0.0
    %767 = vmatpush.msra.mxu0 %v57
    %768 = vmatpush.msra.mxu0 %v56
    %769 = vmatpush.msra.mxu0 %v55
    %770 = vmatpush.msra.mxu0 %v54
    %771 = vmatmul.f32.gmra.mxu0 %v744
    %v772 = vpop.f32.mrf.mxu0
    %v773 = vadd.f32 0.0, %v772
    %774 = vmatmul.f32.gmra.mxu0 %v747
    %v775 = vpop.f32.mrf.mxu0
    %v776 = vadd.f32 0.0, %v775
    %777 = vmatmul.f32.gmra.mxu0 %v750
    %v778 = vpop.f32.mrf.mxu0
    %v779 = vadd.f32 0.0, %v778
    %780 = vmatmul.f32.gmra.mxu0 %v753
    %v781 = vpop.f32.mrf.mxu0
    %v782 = vadd.f32 0.0, %v781
    %783 = vdwg.mxu0
    %v785 = vsel %vm135, %v739, 0
    %v788 = vsel %vm135, %v740, 0
    %v791 = vsel %vm135, %v741, 0
    %v794 = vsel %vm135, %v742, 0
    %796 = vmatpush.msra.mxu0 0.0
    %797 = vmatpush.msra.mxu0 0.0
    %798 = vmatpush.msra.mxu0 0.0
    %799 = vmatpush.msra.mxu0 0.0
    %800 = vmatpush.msra.mxu0 0.0
    %801 = vmatpush.msra.mxu0 0.0
    %802 = vmatpush.msra.mxu0 0.0
    %803 = vmatpush.msra.mxu0 0.0
    %804 = vmatpush.msra.mxu0 0.0
    %805 = vmatpush.msra.mxu0 0.0
    %806 = vmatpush.msra.mxu0 0.0
    %807 = vmatpush.msra.mxu0 0.0
    %808 = vmatpush.msra.mxu0 0.0
    %809 = vmatpush.msra.mxu0 0.0
    %810 = vmatpush.msra.mxu0 0.0
    %811 = vmatpush.msra.mxu0 %v150
    %812 = vmatmul.f32.gmra.mxu0 %v785
    %v813 = vpop.f32.mrf.mxu0
    %v814 = vadd.f32 %v773, %v813
    %815 = vmatmul.f32.gmra.mxu0 %v788
    %v816 = vpop.f32.mrf.mxu0
    %v817 = vadd.f32 %v776, %v816
    %818 = vmatmul.f32.gmra.mxu0 %v791
    %v819 = vpop.f32.mrf.mxu0
    %v820 = vadd.f32 %v779, %v819
    %821 = vmatmul.f32.gmra.mxu0 %v794
    %v822 = vpop.f32.mrf.mxu0
    %v823 = vadd.f32 %v782, %v822
    %824 = vdwg.mxu0
    %v825 = vadd.f32 %v814, %v182
    %v826 = vadd.f32 %v817, %v182
    %v827 = vadd.f32 %v820, %v182
    %v828 = vadd.f32 %v823, %v182
    %v829 = vxor.u32 %v825, 2147483648
    %v830 = vxor.u32 %v826, 2147483648
    %v831 = vxor.u32 %v827, 2147483648
    %v832 = vxor.u32 %v828, 2147483648
    %v833 = vmul.f32 %v829, 1.442695
    %v834 = vpow.pop %v833
    %v835 = vmul.f32 %v830, 1.442695
    %v836 = vpow.pop %v835
    %v837 = vmul.f32 %v831, 1.442695
    %v838 = vpow.pop %v837
    %v839 = vmul.f32 %v832, 1.442695
    %v840 = vpow.pop %v839
    %v841 = vadd.f32 %v834, 1.0
    %v842 = vadd.f32 %v836, 1.0
    %v843 = vadd.f32 %v838, 1.0
    %v844 = vadd.f32 %v840, 1.0
    %v845 = vrcp.pop %v841
    %v846 = vmul.f32 %v841, %v845
    %v847 = vsub.f32 1.0, %v846
    %v848 = vmul.f32 %v845, %v847
    %v849 = vadd.f32 %v845, %v848
    %vm850 = vweird.f32 %v841
    %vm851 = vweird.f32 %v845
    %vm852 = vmor %vm850, %vm851
    %v853 = vsel %vm852, %v845, %v849
    %v854 = vand.u32 2147483647, %v841
    %vm855 = vcmp.eq.f32.partialorder %v854, 8.507059e+37
    %v856 = vand.u32 %v841, 2147483648
    %v857 = vor.u32 1.1754944e-38, %v856
    %v858 = vsel %vm855, %v857, %v853
    %v859 = vmul.f32 1.0, %v858
    %v860 = vrcp.pop %v842
    %v861 = vmul.f32 %v842, %v860
    %v862 = vsub.f32 1.0, %v861
    %v863 = vmul.f32 %v860, %v862
    %v864 = vadd.f32 %v860, %v863
    %vm865 = vweird.f32 %v842
    %vm866 = vweird.f32 %v860
    %vm867 = vmor %vm865, %vm866
    %v868 = vsel %vm867, %v860, %v864
    %v869 = vand.u32 2147483647, %v842
    %vm870 = vcmp.eq.f32.partialorder %v869, 8.507059e+37
    %v871 = vand.u32 %v842, 2147483648
    %v872 = vor.u32 1.1754944e-38, %v871
    %v873 = vsel %vm870, %v872, %v868
    %v874 = vmul.f32 1.0, %v873
    %v875 = vrcp.pop %v843
    %v876 = vmul.f32 %v843, %v875
    %v877 = vsub.f32 1.0, %v876
    %v878 = vmul.f32 %v875, %v877
    %v879 = vadd.f32 %v875, %v878
    %vm880 = vweird.f32 %v843
    %vm881 = vweird.f32 %v875
    %vm882 = vmor %vm880, %vm881
    %v883 = vsel %vm882, %v875, %v879
    %v884 = vand.u32 2147483647, %v843
    %vm885 = vcmp.eq.f32.partialorder %v884, 8.507059e+37
    %v886 = vand.u32 %v843, 2147483648
    %v887 = vor.u32 1.1754944e-38, %v886
    %v888 = vsel %vm885, %v887, %v883
    %v889 = vmul.f32 1.0, %v888
    %v890 = vrcp.pop %v844
    %v891 = vmul.f32 %v844, %v890
    %v892 = vsub.f32 1.0, %v891
    %v893 = vmul.f32 %v890, %v892
    %v894 = vadd.f32 %v890, %v893
    %vm895 = vweird.f32 %v844
    %vm896 = vweird.f32 %v890
    %vm897 = vmor %vm895, %vm896
    %v898 = vsel %vm897, %v890, %v894
    %v899 = vand.u32 2147483647, %v844
    %vm900 = vcmp.eq.f32.partialorder %v899, 8.507059e+37
    %v901 = vand.u32 %v844, 2147483648
    %v902 = vor.u32 1.1754944e-38, %v901
    %v903 = vsel %vm900, %v902, %v898
    %v904 = vmul.f32 1.0, %v903
    %905 = vmatpush.msra.mxu0 0.0
    %906 = vmatpush.msra.mxu0 0.0
    %907 = vmatpush.msra.mxu0 0.0
    %908 = vmatpush.msra.mxu0 0.0
    %909 = vmatpush.msra.mxu0 0.0
    %910 = vmatpush.msra.mxu0 0.0
    %911 = vmatpush.msra.mxu0 0.0
    %912 = vmatpush.msra.mxu0 0.0
    %913 = vmatpush.msra.mxu0 0.0
    %914 = vmatpush.msra.mxu0 0.0
    %915 = vmatpush.msra.mxu0 0.0
    %916 = vmatpush.msra.mxu0 0.0
    %917 = vmatpush.msra.mxu0 %v62
    %918 = vmatpush.msra.mxu0 %v61
    %919 = vmatpush.msra.mxu0 %v60
    %920 = vmatpush.msra.mxu0 %v59
    %921 = vmatmul.f32.gmra.mxu0 %v744
    %v922 = vpop.f32.mrf.mxu0
    %v923 = vadd.f32 0.0, %v922
    %924 = vmatmul.f32.gmra.mxu0 %v747
    %v925 = vpop.f32.mrf.mxu0
    %v926 = vadd.f32 0.0, %v925
    %927 = vmatmul.f32.gmra.mxu0 %v750
    %v928 = vpop.f32.mrf.mxu0
    %v929 = vadd.f32 0.0, %v928
    %930 = vmatmul.f32.gmra.mxu0 %v753
    %v931 = vpop.f32.mrf.mxu0
    %v932 = vadd.f32 0.0, %v931
    %933 = vdwg.mxu0
    %934 = vmatpush.msra.mxu0 0.0
    %935 = vmatpush.msra.mxu0 0.0
    %936 = vmatpush.msra.mxu0 0.0
    %937 = vmatpush.msra.mxu0 0.0
    %938 = vmatpush.msra.mxu0 0.0
    %939 = vmatpush.msra.mxu0 0.0
    %940 = vmatpush.msra.mxu0 0.0
    %941 = vmatpush.msra.mxu0 0.0
    %942 = vmatpush.msra.mxu0 0.0
    %943 = vmatpush.msra.mxu0 0.0
    %944 = vmatpush.msra.mxu0 0.0
    %945 = vmatpush.msra.mxu0 0.0
    %946 = vmatpush.msra.mxu0 0.0
    %947 = vmatpush.msra.mxu0 0.0
    %948 = vmatpush.msra.mxu0 0.0
    %949 = vmatpush.msra.mxu0 %v294
    %950 = vmatmul.f32.gmra.mxu0 %v785
    %v951 = vpop.f32.mrf.mxu0
    %v952 = vadd.f32 %v923, %v951
    %953 = vmatmul.f32.gmra.mxu0 %v788
    %v954 = vpop.f32.mrf.mxu0
    %v955 = vadd.f32 %v926, %v954
    %956 = vmatmul.f32.gmra.mxu0 %v791
    %v957 = vpop.f32.mrf.mxu0
    %v958 = vadd.f32 %v929, %v957
    %959 = vmatmul.f32.gmra.mxu0 %v794
    %v960 = vpop.f32.mrf.mxu0
    %v961 = vadd.f32 %v932, %v960
    %962 = vdwg.mxu0
    %v963 = vadd.f32 %v952, %v326
    %v964 = vadd.f32 %v955, %v326
    %v965 = vadd.f32 %v958, %v326
    %v966 = vadd.f32 %v961, %v326
    %v967 = vxor.u32 %v963, 2147483648
    %v968 = vxor.u32 %v964, 2147483648
    %v969 = vxor.u32 %v965, 2147483648
    %v970 = vxor.u32 %v966, 2147483648
    %v971 = vmul.f32 %v967, 1.442695
    %v972 = vpow.pop %v971
    %v973 = vmul.f32 %v968, 1.442695
    %v974 = vpow.pop %v973
    %v975 = vmul.f32 %v969, 1.442695
    %v976 = vpow.pop %v975
    %v977 = vmul.f32 %v970, 1.442695
    %v978 = vpow.pop %v977
    %v979 = vadd.f32 %v972, 1.0
    %v980 = vadd.f32 %v974, 1.0
    %v981 = vadd.f32 %v976, 1.0
    %v982 = vadd.f32 %v978, 1.0
    %v983 = vrcp.pop %v979
    %v984 = vmul.f32 %v979, %v983
    %v985 = vsub.f32 1.0, %v984
    %v986 = vmul.f32 %v983, %v985
    %v987 = vadd.f32 %v983, %v986
    %vm988 = vweird.f32 %v979
    %vm989 = vweird.f32 %v983
    %vm990 = vmor %vm988, %vm989
    %v991 = vsel %vm990, %v983, %v987
    %v992 = vand.u32 2147483647, %v979
    %vm993 = vcmp.eq.f32.partialorder %v992, 8.507059e+37
    %v994 = vand.u32 %v979, 2147483648
    %v995 = vor.u32 1.1754944e-38, %v994
    %v996 = vsel %vm993, %v995, %v991
    %v997 = vmul.f32 1.0, %v996
    %v998 = vrcp.pop %v980
    %v999 = vmul.f32 %v980, %v998
    %v1000 = vsub.f32 1.0, %v999
    %v1001 = vmul.f32 %v998, %v1000
    %v1002 = vadd.f32 %v998, %v1001
    %vm1003 = vweird.f32 %v980
    %vm1004 = vweird.f32 %v998
    %vm1005 = vmor %vm1003, %vm1004
    %v1006 = vsel %vm1005, %v998, %v1002
    %v1007 = vand.u32 2147483647, %v980
    %vm1008 = vcmp.eq.f32.partialorder %v1007, 8.507059e+37
    %v1009 = vand.u32 %v980, 2147483648
    %v1010 = vor.u32 1.1754944e-38, %v1009
    %v1011 = vsel %vm1008, %v1010, %v1006
    %v1012 = vmul.f32 1.0, %v1011
    %v1013 = vrcp.pop %v981
    %v1014 = vmul.f32 %v981, %v1013
    %v1015 = vsub.f32 1.0, %v1014
    %v1016 = vmul.f32 %v1013, %v1015
    %v1017 = vadd.f32 %v1013, %v1016
    %vm1018 = vweird.f32 %v981
    %vm1019 = vweird.f32 %v1013
    %vm1020 = vmor %vm1018, %vm1019
    %v1021 = vsel %vm1020, %v1013, %v1017
    %v1022 = vand.u32 2147483647, %v981
    %vm1023 = vcmp.eq.f32.partialorder %v1022, 8.507059e+37
    %v1024 = vand.u32 %v981, 2147483648
    %v1025 = vor.u32 1.1754944e-38, %v1024
    %v1026 = vsel %vm1023, %v1025, %v1021
    %v1027 = vmul.f32 1.0, %v1026
    %v1028 = vrcp.pop %v982
    %v1029 = vmul.f32 %v982, %v1028
    %v1030 = vsub.f32 1.0, %v1029
    %v1031 = vmul.f32 %v1028, %v1030
    %v1032 = vadd.f32 %v1028, %v1031
    %vm1033 = vweird.f32 %v982
    %vm1034 = vweird.f32 %v1028
    %vm1035 = vmor %vm1033, %vm1034
    %v1036 = vsel %vm1035, %v1028, %v1032
    %v1037 = vand.u32 2147483647, %v982
    %vm1038 = vcmp.eq.f32.partialorder %v1037, 8.507059e+37
    %v1039 = vand.u32 %v982, 2147483648
    %v1040 = vor.u32 1.1754944e-38, %v1039
    %v1041 = vsel %vm1038, %v1040, %v1036
    %v1042 = vmul.f32 1.0, %v1041
    %1043 = vmatpush.msra.mxu0 0.0
    %1044 = vmatpush.msra.mxu0 0.0
    %1045 = vmatpush.msra.mxu0 0.0
    %1046 = vmatpush.msra.mxu0 0.0
    %1047 = vmatpush.msra.mxu0 0.0
    %1048 = vmatpush.msra.mxu0 0.0
    %1049 = vmatpush.msra.mxu0 0.0
    %1050 = vmatpush.msra.mxu0 0.0
    %1051 = vmatpush.msra.mxu0 0.0
    %1052 = vmatpush.msra.mxu0 0.0
    %1053 = vmatpush.msra.mxu0 0.0
    %1054 = vmatpush.msra.mxu0 0.0
    %1055 = vmatpush.msra.mxu0 0.0
    %1056 = vmatpush.msra.mxu0 0.0
    %1057 = vmatpush.msra.mxu0 %v735
    %1058 = vmatpush.msra.mxu0 %v734
    %1059 = vmatmul.f32.gmra.mxu0 %v410
    %v1060 = vpop.f32.mrf.mxu0
    %v1061 = vadd.f32 0.0, %v1060
    %1062 = vmatmul.f32.gmra.mxu0 %v413
    %v1063 = vpop.f32.mrf.mxu0
    %v1064 = vadd.f32 0.0, %v1063
    %1065 = vdwg.mxu0
    %1066 = vmatpush.msra.mxu0 0.0
    %1067 = vmatpush.msra.mxu0 0.0
    %1068 = vmatpush.msra.mxu0 0.0
    %1069 = vmatpush.msra.mxu0 0.0
    %1070 = vmatpush.msra.mxu0 0.0
    %1071 = vmatpush.msra.mxu0 0.0
    %1072 = vmatpush.msra.mxu0 0.0
    %1073 = vmatpush.msra.mxu0 0.0
    %1074 = vmatpush.msra.mxu0 0.0
    %1075 = vmatpush.msra.mxu0 0.0
    %1076 = vmatpush.msra.mxu0 0.0
    %1077 = vmatpush.msra.mxu0 0.0
    %1078 = vmatpush.msra.mxu0 0.0
    %1079 = vmatpush.msra.mxu0 0.0
    %1080 = vmatpush.msra.mxu0 %v737
    %1081 = vmatpush.msra.mxu0 %v736
    %1082 = vmatmul.f32.gmra.mxu0 %v410
    %v1083 = vpop.f32.mrf.mxu0
    %v1084 = vadd.f32 0.0, %v1083
    %1085 = vmatmul.f32.gmra.mxu0 %v413
    %v1086 = vpop.f32.mrf.mxu0
    %v1087 = vadd.f32 0.0, %v1086
    %1088 = vdwg.mxu0
    %v1090 = vsel %vm93, %v1061, 0
    %v1093 = vsel %vm93, %v1064, 0
    %v1096 = vsel %vm93, %v1084, 0
    %v1099 = vsel %vm93, %v1087, 0
    %1101 = vmatpush.msra.mxu0 0.0
    %1102 = vmatpush.msra.mxu0 0.0
    %1103 = vmatpush.msra.mxu0 0.0
    %1104 = vmatpush.msra.mxu0 0.0
    %1105 = vmatpush.msra.mxu0 0.0
    %1106 = vmatpush.msra.mxu0 0.0
    %1107 = vmatpush.msra.mxu0 0.0
    %1108 = vmatpush.msra.mxu0 0.0
    %1109 = vmatpush.msra.mxu0 0.0
    %1110 = vmatpush.msra.mxu0 0.0
    %1111 = vmatpush.msra.mxu0 0.0
    %1112 = vmatpush.msra.mxu0 0.0
    %1113 = vmatpush.msra.mxu0 %v76
    %1114 = vmatpush.msra.mxu0 %v75
    %1115 = vmatpush.msra.mxu0 %v74
    %1116 = vmatpush.msra.mxu0 %v73
    %1117 = vmatmul.f32.gmra.mxu0 %v1090
    %v1118 = vpop.f32.mrf.mxu0
    %v1119 = vadd.f32 0.0, %v1118
    %1120 = vmatmul.f32.gmra.mxu0 %v1093
    %v1121 = vpop.f32.mrf.mxu0
    %v1122 = vadd.f32 0.0, %v1121
    %1123 = vmatmul.f32.gmra.mxu0 %v1096
    %v1124 = vpop.f32.mrf.mxu0
    %v1125 = vadd.f32 0.0, %v1124
    %1126 = vmatmul.f32.gmra.mxu0 %v1099
    %v1127 = vpop.f32.mrf.mxu0
    %v1128 = vadd.f32 0.0, %v1127
    %1129 = vdwg.mxu0
    %1130 = vmatpush.msra.mxu0 0.0
    %1131 = vmatpush.msra.mxu0 0.0
    %1132 = vmatpush.msra.mxu0 0.0
    %1133 = vmatpush.msra.mxu0 0.0
    %1134 = vmatpush.msra.mxu0 0.0
    %1135 = vmatpush.msra.mxu0 0.0
    %1136 = vmatpush.msra.mxu0 0.0
    %1137 = vmatpush.msra.mxu0 0.0
    %1138 = vmatpush.msra.mxu0 0.0
    %1139 = vmatpush.msra.mxu0 0.0
    %1140 = vmatpush.msra.mxu0 0.0
    %1141 = vmatpush.msra.mxu0 0.0
    %1142 = vmatpush.msra.mxu0 %v71
    %1143 = vmatpush.msra.mxu0 %v70
    %1144 = vmatpush.msra.mxu0 %v69
    %1145 = vmatpush.msra.mxu0 %v68
    %1146 = vmatmul.f32.gmra.mxu0 %v744
    %v1147 = vpop.f32.mrf.mxu0
    %v1148 = vadd.f32 %v1119, %v1147
    %1149 = vmatmul.f32.gmra.mxu0 %v747
    %v1150 = vpop.f32.mrf.mxu0
    %v1151 = vadd.f32 %v1122, %v1150
    %1152 = vmatmul.f32.gmra.mxu0 %v750
    %v1153 = vpop.f32.mrf.mxu0
    %v1154 = vadd.f32 %v1125, %v1153
    %1155 = vmatmul.f32.gmra.mxu0 %v753
    %v1156 = vpop.f32.mrf.mxu0
    %v1157 = vadd.f32 %v1128, %v1156
    %1158 = vdwg.mxu0
    %1159 = vmatpush.msra.mxu0 0.0
    %1160 = vmatpush.msra.mxu0 0.0
    %1161 = vmatpush.msra.mxu0 0.0
    %1162 = vmatpush.msra.mxu0 0.0
    %1163 = vmatpush.msra.mxu0 0.0
    %1164 = vmatpush.msra.mxu0 0.0
    %1165 = vmatpush.msra.mxu0 0.0
    %1166 = vmatpush.msra.mxu0 0.0
    %1167 = vmatpush.msra.mxu0 0.0
    %1168 = vmatpush.msra.mxu0 0.0
    %1169 = vmatpush.msra.mxu0 0.0
    %1170 = vmatpush.msra.mxu0 0.0
    %1171 = vmatpush.msra.mxu0 0.0
    %1172 = vmatpush.msra.mxu0 0.0
    %1173 = vmatpush.msra.mxu0 %v1064
    %1174 = vmatpush.msra.mxu0 %v1061
    %1175 = vmatmul.f32.gmra.mxu0 %v410
    %v1176 = vpop.f32.mrf.mxu0
    %v1177 = vadd.f32 0.0, %v1176
    %1178 = vmatmul.f32.gmra.mxu0 %v413
    %v1179 = vpop.f32.mrf.mxu0
    %v1180 = vadd.f32 0.0, %v1179
    %1181 = vdwg.mxu0
    %1182 = vmatpush.msra.mxu0 0.0
    %1183 = vmatpush.msra.mxu0 0.0
    %1184 = vmatpush.msra.mxu0 0.0
    %1185 = vmatpush.msra.mxu0 0.0
    %1186 = vmatpush.msra.mxu0 0.0
    %1187 = vmatpush.msra.mxu0 0.0
    %1188 = vmatpush.msra.mxu0 0.0
    %1189 = vmatpush.msra.mxu0 0.0
    %1190 = vmatpush.msra.mxu0 0.0
    %1191 = vmatpush.msra.mxu0 0.0
    %1192 = vmatpush.msra.mxu0 0.0
    %1193 = vmatpush.msra.mxu0 0.0
    %1194 = vmatpush.msra.mxu0 0.0
    %1195 = vmatpush.msra.mxu0 0.0
    %1196 = vmatpush.msra.mxu0 %v1087
    %1197 = vmatpush.msra.mxu0 %v1084
    %1198 = vmatmul.f32.gmra.mxu0 %v410
    %v1199 = vpop.f32.mrf.mxu0
    %v1200 = vadd.f32 0.0, %v1199
    %1201 = vmatmul.f32.gmra.mxu0 %v413
    %v1202 = vpop.f32.mrf.mxu0
    %v1203 = vadd.f32 0.0, %v1202
    %1204 = vdwg.mxu0
    %v1206 = vsel %vm93, %v1177, 0
    %v1209 = vsel %vm93, %v1180, 0
    %v1212 = vsel %vm93, %v1200, 0
    %v1215 = vsel %vm93, %v1203, 0
    %1217 = vmatpush.msra.mxu0 0.0
    %1218 = vmatpush.msra.mxu0 0.0
    %1219 = vmatpush.msra.mxu0 0.0
    %1220 = vmatpush.msra.mxu0 0.0
    %1221 = vmatpush.msra.mxu0 0.0
    %1222 = vmatpush.msra.mxu0 0.0
    %1223 = vmatpush.msra.mxu0 0.0
    %1224 = vmatpush.msra.mxu0 0.0
    %1225 = vmatpush.msra.mxu0 0.0
    %1226 = vmatpush.msra.mxu0 0.0
    %1227 = vmatpush.msra.mxu0 0.0
    %1228 = vmatpush.msra.mxu0 0.0
    %1229 = vmatpush.msra.mxu0 %v81
    %1230 = vmatpush.msra.mxu0 %v80
    %1231 = vmatpush.msra.mxu0 %v79
    %1232 = vmatpush.msra.mxu0 %v78
    %1233 = vmatmul.f32.gmra.mxu0 %v1206
    %v1234 = vpop.f32.mrf.mxu0
    %v1235 = vadd.f32 0.0, %v1234
    %1236 = vmatmul.f32.gmra.mxu0 %v1209
    %v1237 = vpop.f32.mrf.mxu0
    %v1238 = vadd.f32 0.0, %v1237
    %1239 = vmatmul.f32.gmra.mxu0 %v1212
    %v1240 = vpop.f32.mrf.mxu0
    %v1241 = vadd.f32 0.0, %v1240
    %1242 = vmatmul.f32.gmra.mxu0 %v1215
    %v1243 = vpop.f32.mrf.mxu0
    %v1244 = vadd.f32 0.0, %v1243
    %1245 = vdwg.mxu0
    %v1246 = vadd.f32 %v1148, %v1235
    %v1247 = vadd.f32 %v1151, %v1238
    %v1248 = vadd.f32 %v1154, %v1241
    %v1249 = vadd.f32 %v1157, %v1244
    %v1250 = vmul.f32 %v859, %v1246
    %v1251 = vmul.f32 %v874, %v1247
    %v1252 = vmul.f32 %v889, %v1248
    %v1253 = vmul.f32 %v904, %v1249
    %v1255 = vsel %vm93, %v1250, 0
    %v1258 = vsel %vm93, %v1251, 0
    %v1261 = vsel %vm93, %v1252, 0
    %v1264 = vsel %vm93, %v1253, 0
    %1266 = vmatpush.msra.mxu0 0.0
    %1267 = vmatpush.msra.mxu0 0.0
    %1268 = vmatpush.msra.mxu0 0.0
    %1269 = vmatpush.msra.mxu0 0.0
    %1270 = vmatpush.msra.mxu0 0.0
    %1271 = vmatpush.msra.mxu0 0.0
    %1272 = vmatpush.msra.mxu0 0.0
    %1273 = vmatpush.msra.mxu0 0.0
    %1274 = vmatpush.msra.mxu0 0.0
    %1275 = vmatpush.msra.mxu0 0.0
    %1276 = vmatpush.msra.mxu0 0.0
    %1277 = vmatpush.msra.mxu0 0.0
    %1278 = vmatpush.msra.mxu0 %v67
    %1279 = vmatpush.msra.mxu0 %v66
    %1280 = vmatpush.msra.mxu0 %v65
    %1281 = vmatpush.msra.mxu0 %v64
    %1282 = vmatmul.f32.gmra.mxu0 %v1255
    %v1283 = vpop.f32.mrf.mxu0
    %v1284 = vadd.f32 0.0, %v1283
    %1285 = vmatmul.f32.gmra.mxu0 %v1258
    %v1286 = vpop.f32.mrf.mxu0
    %v1287 = vadd.f32 0.0, %v1286
    %1288 = vmatmul.f32.gmra.mxu0 %v1261
    %v1289 = vpop.f32.mrf.mxu0
    %v1290 = vadd.f32 0.0, %v1289
    %1291 = vmatmul.f32.gmra.mxu0 %v1264
    %v1292 = vpop.f32.mrf.mxu0
    %v1293 = vadd.f32 0.0, %v1292
    %1294 = vdwg.mxu0
    %1295 = vmatpush.msra.mxu0 0.0
    %1296 = vmatpush.msra.mxu0 0.0
    %1297 = vmatpush.msra.mxu0 0.0
    %1298 = vmatpush.msra.mxu0 0.0
    %1299 = vmatpush.msra.mxu0 0.0
    %1300 = vmatpush.msra.mxu0 0.0
    %1301 = vmatpush.msra.mxu0 0.0
    %1302 = vmatpush.msra.mxu0 0.0
    %1303 = vmatpush.msra.mxu0 0.0
    %1304 = vmatpush.msra.mxu0 0.0
    %1305 = vmatpush.msra.mxu0 0.0
    %1306 = vmatpush.msra.mxu0 0.0
    %1307 = vmatpush.msra.mxu0 0.0
    %1308 = vmatpush.msra.mxu0 0.0
    %1309 = vmatpush.msra.mxu0 0.0
    %1310 = vmatpush.msra.mxu0 %v668
    %1311 = vmatmul.f32.gmra.mxu0 %v785
    %v1312 = vpop.f32.mrf.mxu0
    %v1313 = vadd.f32 %v1284, %v1312
    %1314 = vmatmul.f32.gmra.mxu0 %v788
    %v1315 = vpop.f32.mrf.mxu0
    %v1316 = vadd.f32 %v1287, %v1315
    %1317 = vmatmul.f32.gmra.mxu0 %v791
    %v1318 = vpop.f32.mrf.mxu0
    %v1319 = vadd.f32 %v1290, %v1318
    %1320 = vmatmul.f32.gmra.mxu0 %v794
    %v1321 = vpop.f32.mrf.mxu0
    %v1322 = vadd.f32 %v1293, %v1321
    %1323 = vdwg.mxu0
    %v1324 = vadd.f32 %v1313, %v700
    %v1325 = vadd.f32 %v1316, %v700
    %v1326 = vadd.f32 %v1319, %v700
    %v1327 = vadd.f32 %v1322, %v700
    %v1328 = vtanh.pop %v1324
    %v1329 = vtanh.pop %v1325
    %v1330 = vtanh.pop %v1326
    %v1331 = vtanh.pop %v1327
    %v1332 = vmul.f32 %v997, %v734
    %v1333 = vmul.f32 %v1012, %v735
    %v1334 = vmul.f32 %v1027, %v736
    %v1335 = vmul.f32 %v1042, %v737
    %v1336 = vsub.f32 1.0, %v997
    %v1337 = vsub.f32 1.0, %v1012
    %v1338 = vsub.f32 1.0, %v1027
    %v1339 = vsub.f32 1.0, %v1042
    %v1340 = vmul.f32 %v1336, %v1328
    %v1341 = vmul.f32 %v1337, %v1329
    %v1342 = vmul.f32 %v1338, %v1330
    %v1343 = vmul.f32 %v1339, %v1331
    %v1344 = vadd.f32 %v1332, %v1340
    %v1345 = vadd.f32 %v1333, %v1341
    %v1346 = vadd.f32 %v1334, %v1342
    %v1347 = vadd.f32 %v1335, %v1343
    %1348 = vst.msk [vmem:[#allocation2] sm:$0xff] %vm93, %v1344
    %1349 = vst.msk [vmem:[#allocation2 + $0x8] sm:$0xff] %vm93, %v1345
    %1350 = vst.msk [vmem:[#allocation2 + $0x10] sm:$0xff] %vm93, %v1346
    %1351 = vst.msk [vmem:[#allocation2 + $0x18] sm:$0xff] %vm93, %v1347
    %s1352 = scalar_lea.vmem [#allocation3], 32
    %1353 = vst.msk [vmem:[%s1352] sm:$0xff] %vm93, %v1344
    %1354 = vst.msk [vmem:[%s1352 + $0x8] sm:$0xff] %vm93, %v1345
    %1355 = vst.msk [vmem:[%s1352 + $0x10] sm:$0xff] %vm93, %v1346
    %1356 = vst.msk [vmem:[%s1352 + $0x18] sm:$0xff] %vm93, %v1347
    %v1357 = vld [vmem:[#allocation2] sm:$0xff]
    %v1358 = vld [vmem:[#allocation2 + $0x8] sm:$0xff]
    %v1359 = vld [vmem:[#allocation2 + $0x10] sm:$0xff]
    %v1360 = vld [vmem:[#allocation2 + $0x18] sm:$0xff]
    %s1361 = scalar_lea.vmem %s0, 64
    %v1362 = vld [vmem:[%s1361] sm:$0xff]
    %v1363 = vld [vmem:[%s1361 + $0x8] sm:$0xff]
    %v1364 = vld [vmem:[%s1361 + $0x10] sm:$0xff]
    %v1365 = vld [vmem:[%s1361 + $0x18] sm:$0xff]
    %v1367 = vsel %vm93, %v1357, 0
    %v1370 = vsel %vm93, %v1358, 0
    %v1373 = vsel %vm93, %v1359, 0
    %v1376 = vsel %vm93, %v1360, 0
    %1378 = vmatpush.msra.mxu0 0.0
    %1379 = vmatpush.msra.mxu0 0.0
    %1380 = vmatpush.msra.mxu0 0.0
    %1381 = vmatpush.msra.mxu0 0.0
    %1382 = vmatpush.msra.mxu0 0.0
    %1383 = vmatpush.msra.mxu0 0.0
    %1384 = vmatpush.msra.mxu0 0.0
    %1385 = vmatpush.msra.mxu0 0.0
    %1386 = vmatpush.msra.mxu0 0.0
    %1387 = vmatpush.msra.mxu0 0.0
    %1388 = vmatpush.msra.mxu0 0.0
    %1389 = vmatpush.msra.mxu0 0.0
    %1390 = vmatpush.msra.mxu0 %v57
    %1391 = vmatpush.msra.mxu0 %v56
    %1392 = vmatpush.msra.mxu0 %v55
    %1393 = vmatpush.msra.mxu0 %v54
    %1394 = vmatmul.f32.gmra.mxu0 %v1367
    %v1395 = vpop.f32.mrf.mxu0
    %v1396 = vadd.f32 0.0, %v1395
    %1397 = vmatmul.f32.gmra.mxu0 %v1370
    %v1398 = vpop.f32.mrf.mxu0
    %v1399 = vadd.f32 0.0, %v1398
    %1400 = vmatmul.f32.gmra.mxu0 %v1373
    %v1401 = vpop.f32.mrf.mxu0
    %v1402 = vadd.f32 0.0, %v1401
    %1403 = vmatmul.f32.gmra.mxu0 %v1376
    %v1404 = vpop.f32.mrf.mxu0
    %v1405 = vadd.f32 0.0, %v1404
    %1406 = vdwg.mxu0
    %v1408 = vsel %vm135, %v1362, 0
    %v1411 = vsel %vm135, %v1363, 0
    %v1414 = vsel %vm135, %v1364, 0
    %v1417 = vsel %vm135, %v1365, 0
    %1419 = vmatpush.msra.mxu0 0.0
    %1420 = vmatpush.msra.mxu0 0.0
    %1421 = vmatpush.msra.mxu0 0.0
    %1422 = vmatpush.msra.mxu0 0.0
    %1423 = vmatpush.msra.mxu0 0.0
    %1424 = vmatpush.msra.mxu0 0.0
    %1425 = vmatpush.msra.mxu0 0.0
    %1426 = vmatpush.msra.mxu0 0.0
    %1427 = vmatpush.msra.mxu0 0.0
    %1428 = vmatpush.msra.mxu0 0.0
    %1429 = vmatpush.msra.mxu0 0.0
    %1430 = vmatpush.msra.mxu0 0.0
    %1431 = vmatpush.msra.mxu0 0.0
    %1432 = vmatpush.msra.mxu0 0.0
    %1433 = vmatpush.msra.mxu0 0.0
    %1434 = vmatpush.msra.mxu0 %v150
    %1435 = vmatmul.f32.gmra.mxu0 %v1408
    %v1436 = vpop.f32.mrf.mxu0
    %v1437 = vadd.f32 %v1396, %v1436
    %1438 = vmatmul.f32.gmra.mxu0 %v1411
    %v1439 = vpop.f32.mrf.mxu0
    %v1440 = vadd.f32 %v1399, %v1439
    %1441 = vmatmul.f32.gmra.mxu0 %v1414
    %v1442 = vpop.f32.mrf.mxu0
    %v1443 = vadd.f32 %v1402, %v1442
    %1444 = vmatmul.f32.gmra.mxu0 %v1417
    %v1445 = vpop.f32.mrf.mxu0
    %v1446 = vadd.f32 %v1405, %v1445
    %1447 = vdwg.mxu0
    %v1448 = vadd.f32 %v1437, %v182
    %v1449 = vadd.f32 %v1440, %v182
    %v1450 = vadd.f32 %v1443, %v182
    %v1451 = vadd.f32 %v1446, %v182
    %v1452 = vxor.u32 %v1448, 2147483648
    %v1453 = vxor.u32 %v1449, 2147483648
    %v1454 = vxor.u32 %v1450, 2147483648
    %v1455 = vxor.u32 %v1451, 2147483648
    %v1456 = vmul.f32 %v1452, 1.442695
    %v1457 = vpow.pop %v1456
    %v1458 = vmul.f32 %v1453, 1.442695
    %v1459 = vpow.pop %v1458
    %v1460 = vmul.f32 %v1454, 1.442695
    %v1461 = vpow.pop %v1460
    %v1462 = vmul.f32 %v1455, 1.442695
    %v1463 = vpow.pop %v1462
    %v1464 = vadd.f32 %v1457, 1.0
    %v1465 = vadd.f32 %v1459, 1.0
    %v1466 = vadd.f32 %v1461, 1.0
    %v1467 = vadd.f32 %v1463, 1.0
    %v1468 = vrcp.pop %v1464
    %v1469 = vmul.f32 %v1464, %v1468
    %v1470 = vsub.f32 1.0, %v1469
    %v1471 = vmul.f32 %v1468, %v1470
    %v1472 = vadd.f32 %v1468, %v1471
    %vm1473 = vweird.f32 %v1464
    %vm1474 = vweird.f32 %v1468
    %vm1475 = vmor %vm1473, %vm1474
    %v1476 = vsel %vm1475, %v1468, %v1472
    %v1477 = vand.u32 2147483647, %v1464
    %vm1478 = vcmp.eq.f32.partialorder %v1477, 8.507059e+37
    %v1479 = vand.u32 %v1464, 2147483648
    %v1480 = vor.u32 1.1754944e-38, %v1479
    %v1481 = vsel %vm1478, %v1480, %v1476
    %v1482 = vmul.f32 1.0, %v1481
    %v1483 = vrcp.pop %v1465
    %v1484 = vmul.f32 %v1465, %v1483
    %v1485 = vsub.f32 1.0, %v1484
    %v1486 = vmul.f32 %v1483, %v1485
    %v1487 = vadd.f32 %v1483, %v1486
    %vm1488 = vweird.f32 %v1465
    %vm1489 = vweird.f32 %v1483
    %vm1490 = vmor %vm1488, %vm1489
    %v1491 = vsel %vm1490, %v1483, %v1487
    %v1492 = vand.u32 2147483647, %v1465
    %vm1493 = vcmp.eq.f32.partialorder %v1492, 8.507059e+37
    %v1494 = vand.u32 %v1465, 2147483648
    %v1495 = vor.u32 1.1754944e-38, %v1494
    %v1496 = vsel %vm1493, %v1495, %v1491
    %v1497 = vmul.f32 1.0, %v1496
    %v1498 = vrcp.pop %v1466
    %v1499 = vmul.f32 %v1466, %v1498
    %v1500 = vsub.f32 1.0, %v1499
    %v1501 = vmul.f32 %v1498, %v1500
    %v1502 = vadd.f32 %v1498, %v1501
    %vm1503 = vweird.f32 %v1466
    %vm1504 = vweird.f32 %v1498
    %vm1505 = vmor %vm1503, %vm1504
    %v1506 = vsel %vm1505, %v1498, %v1502
    %v1507 = vand.u32 2147483647, %v1466
    %vm1508 = vcmp.eq.f32.partialorder %v1507, 8.507059e+37
    %v1509 = vand.u32 %v1466, 2147483648
    %v1510 = vor.u32 1.1754944e-38, %v1509
    %v1511 = vsel %vm1508, %v1510, %v1506
    %v1512 = vmul.f32 1.0, %v1511
    %v1513 = vrcp.pop %v1467
    %v1514 = vmul.f32 %v1467, %v1513
    %v1515 = vsub.f32 1.0, %v1514
    %v1516 = vmul.f32 %v1513, %v1515
    %v1517 = vadd.f32 %v1513, %v1516
    %vm1518 = vweird.f32 %v1467
    %vm1519 = vweird.f32 %v1513
    %vm1520 = vmor %vm1518, %vm1519
    %v1521 = vsel %vm1520, %v1513, %v1517
    %v1522 = vand.u32 2147483647, %v1467
    %vm1523 = vcmp.eq.f32.partialorder %v1522, 8.507059e+37
    %v1524 = vand.u32 %v1467, 2147483648
    %v1525 = vor.u32 1.1754944e-38, %v1524
    %v1526 = vsel %vm1523, %v1525, %v1521
    %v1527 = vmul.f32 1.0, %v1526
    %1528 = vmatpush.msra.mxu0 0.0
    %1529 = vmatpush.msra.mxu0 0.0
    %1530 = vmatpush.msra.mxu0 0.0
    %1531 = vmatpush.msra.mxu0 0.0
    %1532 = vmatpush.msra.mxu0 0.0
    %1533 = vmatpush.msra.mxu0 0.0
    %1534 = vmatpush.msra.mxu0 0.0
    %1535 = vmatpush.msra.mxu0 0.0
    %1536 = vmatpush.msra.mxu0 0.0
    %1537 = vmatpush.msra.mxu0 0.0
    %1538 = vmatpush.msra.mxu0 0.0
    %1539 = vmatpush.msra.mxu0 0.0
    %1540 = vmatpush.msra.mxu0 %v62
    %1541 = vmatpush.msra.mxu0 %v61
    %1542 = vmatpush.msra.mxu0 %v60
    %1543 = vmatpush.msra.mxu0 %v59
    %1544 = vmatmul.f32.gmra.mxu0 %v1367
    %v1545 = vpop.f32.mrf.mxu0
    %v1546 = vadd.f32 0.0, %v1545
    %1547 = vmatmul.f32.gmra.mxu0 %v1370
    %v1548 = vpop.f32.mrf.mxu0
    %v1549 = vadd.f32 0.0, %v1548
    %1550 = vmatmul.f32.gmra.mxu0 %v1373
    %v1551 = vpop.f32.mrf.mxu0
    %v1552 = vadd.f32 0.0, %v1551
    %1553 = vmatmul.f32.gmra.mxu0 %v1376
    %v1554 = vpop.f32.mrf.mxu0
    %v1555 = vadd.f32 0.0, %v1554
    %1556 = vdwg.mxu0
    %1557 = vmatpush.msra.mxu0 0.0
    %1558 = vmatpush.msra.mxu0 0.0
    %1559 = vmatpush.msra.mxu0 0.0
    %1560 = vmatpush.msra.mxu0 0.0
    %1561 = vmatpush.msra.mxu0 0.0
    %1562 = vmatpush.msra.mxu0 0.0
    %1563 = vmatpush.msra.mxu0 0.0
    %1564 = vmatpush.msra.mxu0 0.0
    %1565 = vmatpush.msra.mxu0 0.0
    %1566 = vmatpush.msra.mxu0 0.0
    %1567 = vmatpush.msra.mxu0 0.0
    %1568 = vmatpush.msra.mxu0 0.0
    %1569 = vmatpush.msra.mxu0 0.0
    %1570 = vmatpush.msra.mxu0 0.0
    %1571 = vmatpush.msra.mxu0 0.0
    %1572 = vmatpush.msra.mxu0 %v294
    %1573 = vmatmul.f32.gmra.mxu0 %v1408
    %v1574 = vpop.f32.mrf.mxu0
    %v1575 = vadd.f32 %v1546, %v1574
    %1576 = vmatmul.f32.gmra.mxu0 %v1411
    %v1577 = vpop.f32.mrf.mxu0
    %v1578 = vadd.f32 %v1549, %v1577
    %1579 = vmatmul.f32.gmra.mxu0 %v1414
    %v1580 = vpop.f32.mrf.mxu0
    %v1581 = vadd.f32 %v1552, %v1580
    %1582 = vmatmul.f32.gmra.mxu0 %v1417
    %v1583 = vpop.f32.mrf.mxu0
    %v1584 = vadd.f32 %v1555, %v1583
    %1585 = vdwg.mxu0
    %v1586 = vadd.f32 %v1575, %v326
    %v1587 = vadd.f32 %v1578, %v326
    %v1588 = vadd.f32 %v1581, %v326
    %v1589 = vadd.f32 %v1584, %v326
    %v1590 = vxor.u32 %v1586, 2147483648
    %v1591 = vxor.u32 %v1587, 2147483648
    %v1592 = vxor.u32 %v1588, 2147483648
    %v1593 = vxor.u32 %v1589, 2147483648
    %v1594 = vmul.f32 %v1590, 1.442695
    %v1595 = vpow.pop %v1594
    %v1596 = vmul.f32 %v1591, 1.442695
    %v1597 = vpow.pop %v1596
    %v1598 = vmul.f32 %v1592, 1.442695
    %v1599 = vpow.pop %v1598
    %v1600 = vmul.f32 %v1593, 1.442695
    %v1601 = vpow.pop %v1600
    %v1602 = vadd.f32 %v1595, 1.0
    %v1603 = vadd.f32 %v1597, 1.0
    %v1604 = vadd.f32 %v1599, 1.0
    %v1605 = vadd.f32 %v1601, 1.0
    %v1606 = vrcp.pop %v1602
    %v1607 = vmul.f32 %v1602, %v1606
    %v1608 = vsub.f32 1.0, %v1607
    %v1609 = vmul.f32 %v1606, %v1608
    %v1610 = vadd.f32 %v1606, %v1609
    %vm1611 = vweird.f32 %v1602
    %vm1612 = vweird.f32 %v1606
    %vm1613 = vmor %vm1611, %vm1612
    %v1614 = vsel %vm1613, %v1606, %v1610
    %v1615 = vand.u32 2147483647, %v1602
    %vm1616 = vcmp.eq.f32.partialorder %v1615, 8.507059e+37
    %v1617 = vand.u32 %v1602, 2147483648
    %v1618 = vor.u32 1.1754944e-38, %v1617
    %v1619 = vsel %vm1616, %v1618, %v1614
    %v1620 = vmul.f32 1.0, %v1619
    %v1621 = vrcp.pop %v1603
    %v1622 = vmul.f32 %v1603, %v1621
    %v1623 = vsub.f32 1.0, %v1622
    %v1624 = vmul.f32 %v1621, %v1623
    %v1625 = vadd.f32 %v1621, %v1624
    %vm1626 = vweird.f32 %v1603
    %vm1627 = vweird.f32 %v1621
    %vm1628 = vmor %vm1626, %vm1627
    %v1629 = vsel %vm1628, %v1621, %v1625
    %v1630 = vand.u32 2147483647, %v1603
    %vm1631 = vcmp.eq.f32.partialorder %v1630, 8.507059e+37
    %v1632 = vand.u32 %v1603, 2147483648
    %v1633 = vor.u32 1.1754944e-38, %v1632
    %v1634 = vsel %vm1631, %v1633, %v1629
    %v1635 = vmul.f32 1.0, %v1634
    %v1636 = vrcp.pop %v1604
    %v1637 = vmul.f32 %v1604, %v1636
    %v1638 = vsub.f32 1.0, %v1637
    %v1639 = vmul.f32 %v1636, %v1638
    %v1640 = vadd.f32 %v1636, %v1639
    %vm1641 = vweird.f32 %v1604
    %vm1642 = vweird.f32 %v1636
    %vm1643 = vmor %vm1641, %vm1642
    %v1644 = vsel %vm1643, %v1636, %v1640
    %v1645 = vand.u32 2147483647, %v1604
    %vm1646 = vcmp.eq.f32.partialorder %v1645, 8.507059e+37
    %v1647 = vand.u32 %v1604, 2147483648
    %v1648 = vor.u32 1.1754944e-38, %v1647
    %v1649 = vsel %vm1646, %v1648, %v1644
    %v1650 = vmul.f32 1.0, %v1649
    %v1651 = vrcp.pop %v1605
    %v1652 = vmul.f32 %v1605, %v1651
    %v1653 = vsub.f32 1.0, %v1652
    %v1654 = vmul.f32 %v1651, %v1653
    %v1655 = vadd.f32 %v1651, %v1654
    %vm1656 = vweird.f32 %v1605
    %vm1657 = vweird.f32 %v1651
    %vm1658 = vmor %vm1656, %vm1657
    %v1659 = vsel %vm1658, %v1651, %v1655
    %v1660 = vand.u32 2147483647, %v1605
    %vm1661 = vcmp.eq.f32.partialorder %v1660, 8.507059e+37
    %v1662 = vand.u32 %v1605, 2147483648
    %v1663 = vor.u32 1.1754944e-38, %v1662
    %v1664 = vsel %vm1661, %v1663, %v1659
    %v1665 = vmul.f32 1.0, %v1664
    %1666 = vmatpush.msra.mxu0 0.0
    %1667 = vmatpush.msra.mxu0 0.0
    %1668 = vmatpush.msra.mxu0 0.0
    %1669 = vmatpush.msra.mxu0 0.0
    %1670 = vmatpush.msra.mxu0 0.0
    %1671 = vmatpush.msra.mxu0 0.0
    %1672 = vmatpush.msra.mxu0 0.0
    %1673 = vmatpush.msra.mxu0 0.0
    %1674 = vmatpush.msra.mxu0 0.0
    %1675 = vmatpush.msra.mxu0 0.0
    %1676 = vmatpush.msra.mxu0 0.0
    %1677 = vmatpush.msra.mxu0 0.0
    %1678 = vmatpush.msra.mxu0 0.0
    %1679 = vmatpush.msra.mxu0 0.0
    %1680 = vmatpush.msra.mxu0 %v1358
    %1681 = vmatpush.msra.mxu0 %v1357
    %1682 = vmatmul.f32.gmra.mxu0 %v410
    %v1683 = vpop.f32.mrf.mxu0
    %v1684 = vadd.f32 0.0, %v1683
    %1685 = vmatmul.f32.gmra.mxu0 %v413
    %v1686 = vpop.f32.mrf.mxu0
    %v1687 = vadd.f32 0.0, %v1686
    %1688 = vdwg.mxu0
    %1689 = vmatpush.msra.mxu0 0.0
    %1690 = vmatpush.msra.mxu0 0.0
    %1691 = vmatpush.msra.mxu0 0.0
    %1692 = vmatpush.msra.mxu0 0.0
    %1693 = vmatpush.msra.mxu0 0.0
    %1694 = vmatpush.msra.mxu0 0.0
    %1695 = vmatpush.msra.mxu0 0.0
    %1696 = vmatpush.msra.mxu0 0.0
    %1697 = vmatpush.msra.mxu0 0.0
    %1698 = vmatpush.msra.mxu0 0.0
    %1699 = vmatpush.msra.mxu0 0.0
    %1700 = vmatpush.msra.mxu0 0.0
    %1701 = vmatpush.msra.mxu0 0.0
    %1702 = vmatpush.msra.mxu0 0.0
    %1703 = vmatpush.msra.mxu0 %v1360
    %1704 = vmatpush.msra.mxu0 %v1359
    %1705 = vmatmul.f32.gmra.mxu0 %v410
    %v1706 = vpop.f32.mrf.mxu0
    %v1707 = vadd.f32 0.0, %v1706
    %1708 = vmatmul.f32.gmra.mxu0 %v413
    %v1709 = vpop.f32.mrf.mxu0
    %v1710 = vadd.f32 0.0, %v1709
    %1711 = vdwg.mxu0
    %v1713 = vsel %vm93, %v1684, 0
    %v1716 = vsel %vm93, %v1687, 0
    %v1719 = vsel %vm93, %v1707, 0
    %v1722 = vsel %vm93, %v1710, 0
    %1724 = vmatpush.msra.mxu0 0.0
    %1725 = vmatpush.msra.mxu0 0.0
    %1726 = vmatpush.msra.mxu0 0.0
    %1727 = vmatpush.msra.mxu0 0.0
    %1728 = vmatpush.msra.mxu0 0.0
    %1729 = vmatpush.msra.mxu0 0.0
    %1730 = vmatpush.msra.mxu0 0.0
    %1731 = vmatpush.msra.mxu0 0.0
    %1732 = vmatpush.msra.mxu0 0.0
    %1733 = vmatpush.msra.mxu0 0.0
    %1734 = vmatpush.msra.mxu0 0.0
    %1735 = vmatpush.msra.mxu0 0.0
    %1736 = vmatpush.msra.mxu0 %v76
    %1737 = vmatpush.msra.mxu0 %v75
    %1738 = vmatpush.msra.mxu0 %v74
    %1739 = vmatpush.msra.mxu0 %v73
    %1740 = vmatmul.f32.gmra.mxu0 %v1713
    %v1741 = vpop.f32.mrf.mxu0
    %v1742 = vadd.f32 0.0, %v1741
    %1743 = vmatmul.f32.gmra.mxu0 %v1716
    %v1744 = vpop.f32.mrf.mxu0
    %v1745 = vadd.f32 0.0, %v1744
    %1746 = vmatmul.f32.gmra.mxu0 %v1719
    %v1747 = vpop.f32.mrf.mxu0
    %v1748 = vadd.f32 0.0, %v1747
    %1749 = vmatmul.f32.gmra.mxu0 %v1722
    %v1750 = vpop.f32.mrf.mxu0
    %v1751 = vadd.f32 0.0, %v1750
    %1752 = vdwg.mxu0
    %1753 = vmatpush.msra.mxu0 0.0
    %1754 = vmatpush.msra.mxu0 0.0
    %1755 = vmatpush.msra.mxu0 0.0
    %1756 = vmatpush.msra.mxu0 0.0
    %1757 = vmatpush.msra.mxu0 0.0
    %1758 = vmatpush.msra.mxu0 0.0
    %1759 = vmatpush.msra.mxu0 0.0
    %1760 = vmatpush.msra.mxu0 0.0
    %1761 = vmatpush.msra.mxu0 0.0
    %1762 = vmatpush.msra.mxu0 0.0
    %1763 = vmatpush.msra.mxu0 0.0
    %1764 = vmatpush.msra.mxu0 0.0
    %1765 = vmatpush.msra.mxu0 %v71
    %1766 = vmatpush.msra.mxu0 %v70
    %1767 = vmatpush.msra.mxu0 %v69
    %1768 = vmatpush.msra.mxu0 %v68
    %1769 = vmatmul.f32.gmra.mxu0 %v1367
    %v1770 = vpop.f32.mrf.mxu0
    %v1771 = vadd.f32 %v1742, %v1770
    %1772 = vmatmul.f32.gmra.mxu0 %v1370
    %v1773 = vpop.f32.mrf.mxu0
    %v1774 = vadd.f32 %v1745, %v1773
    %1775 = vmatmul.f32.gmra.mxu0 %v1373
    %v1776 = vpop.f32.mrf.mxu0
    %v1777 = vadd.f32 %v1748, %v1776
    %1778 = vmatmul.f32.gmra.mxu0 %v1376
    %v1779 = vpop.f32.mrf.mxu0
    %v1780 = vadd.f32 %v1751, %v1779
    %1781 = vdwg.mxu0
    %1782 = vmatpush.msra.mxu0 0.0
    %1783 = vmatpush.msra.mxu0 0.0
    %1784 = vmatpush.msra.mxu0 0.0
    %1785 = vmatpush.msra.mxu0 0.0
    %1786 = vmatpush.msra.mxu0 0.0
    %1787 = vmatpush.msra.mxu0 0.0
    %1788 = vmatpush.msra.mxu0 0.0
    %1789 = vmatpush.msra.mxu0 0.0
    %1790 = vmatpush.msra.mxu0 0.0
    %1791 = vmatpush.msra.mxu0 0.0
    %1792 = vmatpush.msra.mxu0 0.0
    %1793 = vmatpush.msra.mxu0 0.0
    %1794 = vmatpush.msra.mxu0 0.0
    %1795 = vmatpush.msra.mxu0 0.0
    %1796 = vmatpush.msra.mxu0 %v1687
    %1797 = vmatpush.msra.mxu0 %v1684
    %1798 = vmatmul.f32.gmra.mxu0 %v410
    %v1799 = vpop.f32.mrf.mxu0
    %v1800 = vadd.f32 0.0, %v1799
    %1801 = vmatmul.f32.gmra.mxu0 %v413
    %v1802 = vpop.f32.mrf.mxu0
    %v1803 = vadd.f32 0.0, %v1802
    %1804 = vdwg.mxu0
    %1805 = vmatpush.msra.mxu0 0.0
    %1806 = vmatpush.msra.mxu0 0.0
    %1807 = vmatpush.msra.mxu0 0.0
    %1808 = vmatpush.msra.mxu0 0.0
    %1809 = vmatpush.msra.mxu0 0.0
    %1810 = vmatpush.msra.mxu0 0.0
    %1811 = vmatpush.msra.mxu0 0.0
    %1812 = vmatpush.msra.mxu0 0.0
    %1813 = vmatpush.msra.mxu0 0.0
    %1814 = vmatpush.msra.mxu0 0.0
    %1815 = vmatpush.msra.mxu0 0.0
    %1816 = vmatpush.msra.mxu0 0.0
    %1817 = vmatpush.msra.mxu0 0.0
    %1818 = vmatpush.msra.mxu0 0.0
    %1819 = vmatpush.msra.mxu0 %v1710
    %1820 = vmatpush.msra.mxu0 %v1707
    %1821 = vmatmul.f32.gmra.mxu0 %v410
    %v1822 = vpop.f32.mrf.mxu0
    %v1823 = vadd.f32 0.0, %v1822
    %1824 = vmatmul.f32.gmra.mxu0 %v413
    %v1825 = vpop.f32.mrf.mxu0
    %v1826 = vadd.f32 0.0, %v1825
    %1827 = vdwg.mxu0
    %v1829 = vsel %vm93, %v1800, 0
    %v1832 = vsel %vm93, %v1803, 0
    %v1835 = vsel %vm93, %v1823, 0
    %v1838 = vsel %vm93, %v1826, 0
    %1840 = vmatpush.msra.mxu0 0.0
    %1841 = vmatpush.msra.mxu0 0.0
    %1842 = vmatpush.msra.mxu0 0.0
    %1843 = vmatpush.msra.mxu0 0.0
    %1844 = vmatpush.msra.mxu0 0.0
    %1845 = vmatpush.msra.mxu0 0.0
    %1846 = vmatpush.msra.mxu0 0.0
    %1847 = vmatpush.msra.mxu0 0.0
    %1848 = vmatpush.msra.mxu0 0.0
    %1849 = vmatpush.msra.mxu0 0.0
    %1850 = vmatpush.msra.mxu0 0.0
    %1851 = vmatpush.msra.mxu0 0.0
    %1852 = vmatpush.msra.mxu0 %v81
    %1853 = vmatpush.msra.mxu0 %v80
    %1854 = vmatpush.msra.mxu0 %v79
    %1855 = vmatpush.msra.mxu0 %v78
    %1856 = vmatmul.f32.gmra.mxu0 %v1829
    %v1857 = vpop.f32.mrf.mxu0
    %v1858 = vadd.f32 0.0, %v1857
    %1859 = vmatmul.f32.gmra.mxu0 %v1832
    %v1860 = vpop.f32.mrf.mxu0
    %v1861 = vadd.f32 0.0, %v1860
    %1862 = vmatmul.f32.gmra.mxu0 %v1835
    %v1863 = vpop.f32.mrf.mxu0
    %v1864 = vadd.f32 0.0, %v1863
    %1865 = vmatmul.f32.gmra.mxu0 %v1838
    %v1866 = vpop.f32.mrf.mxu0
    %v1867 = vadd.f32 0.0, %v1866
    %1868 = vdwg.mxu0
    %v1869 = vadd.f32 %v1771, %v1858
    %v1870 = vadd.f32 %v1774, %v1861
    %v1871 = vadd.f32 %v1777, %v1864
    %v1872 = vadd.f32 %v1780, %v1867
    %v1873 = vmul.f32 %v1482, %v1869
    %v1874 = vmul.f32 %v1497, %v1870
    %v1875 = vmul.f32 %v1512, %v1871
    %v1876 = vmul.f32 %v1527, %v1872
    %v1878 = vsel %vm93, %v1873, 0
    %v1881 = vsel %vm93, %v1874, 0
    %v1884 = vsel %vm93, %v1875, 0
    %v1887 = vsel %vm93, %v1876, 0
    %1889 = vmatpush.msra.mxu0 0.0
    %1890 = vmatpush.msra.mxu0 0.0
    %1891 = vmatpush.msra.mxu0 0.0
    %1892 = vmatpush.msra.mxu0 0.0
    %1893 = vmatpush.msra.mxu0 0.0
    %1894 = vmatpush.msra.mxu0 0.0
    %1895 = vmatpush.msra.mxu0 0.0
    %1896 = vmatpush.msra.mxu0 0.0
    %1897 = vmatpush.msra.mxu0 0.0
    %1898 = vmatpush.msra.mxu0 0.0
    %1899 = vmatpush.msra.mxu0 0.0
    %1900 = vmatpush.msra.mxu0 0.0
    %1901 = vmatpush.msra.mxu0 %v67
    %1902 = vmatpush.msra.mxu0 %v66
    %1903 = vmatpush.msra.mxu0 %v65
    %1904 = vmatpush.msra.mxu0 %v64
    %1905 = vmatmul.f32.gmra.mxu0 %v1878
    %v1906 = vpop.f32.mrf.mxu0
    %v1907 = vadd.f32 0.0, %v1906
    %1908 = vmatmul.f32.gmra.mxu0 %v1881
    %v1909 = vpop.f32.mrf.mxu0
    %v1910 = vadd.f32 0.0, %v1909
    %1911 = vmatmul.f32.gmra.mxu0 %v1884
    %v1912 = vpop.f32.mrf.mxu0
    %v1913 = vadd.f32 0.0, %v1912
    %1914 = vmatmul.f32.gmra.mxu0 %v1887
    %v1915 = vpop.f32.mrf.mxu0
    %v1916 = vadd.f32 0.0, %v1915
    %1917 = vdwg.mxu0
    %1918 = vmatpush.msra.mxu0 0.0
    %1919 = vmatpush.msra.mxu0 0.0
    %1920 = vmatpush.msra.mxu0 0.0
    %1921 = vmatpush.msra.mxu0 0.0
    %1922 = vmatpush.msra.mxu0 0.0
    %1923 = vmatpush.msra.mxu0 0.0
    %1924 = vmatpush.msra.mxu0 0.0
    %1925 = vmatpush.msra.mxu0 0.0
    %1926 = vmatpush.msra.mxu0 0.0
    %1927 = vmatpush.msra.mxu0 0.0
    %1928 = vmatpush.msra.mxu0 0.0
    %1929 = vmatpush.msra.mxu0 0.0
    %1930 = vmatpush.msra.mxu0 0.0
    %1931 = vmatpush.msra.mxu0 0.0
    %1932 = vmatpush.msra.mxu0 0.0
    %1933 = vmatpush.msra.mxu0 %v668
    %1934 = vmatmul.f32.gmra.mxu0 %v1408
    %v1935 = vpop.f32.mrf.mxu0
    %v1936 = vadd.f32 %v1907, %v1935
    %1937 = vmatmul.f32.gmra.mxu0 %v1411
    %v1938 = vpop.f32.mrf.mxu0
    %v1939 = vadd.f32 %v1910, %v1938
    %1940 = vmatmul.f32.gmra.mxu0 %v1414
    %v1941 = vpop.f32.mrf.mxu0
    %v1942 = vadd.f32 %v1913, %v1941
    %1943 = vmatmul.f32.gmra.mxu0 %v1417
    %v1944 = vpop.f32.mrf.mxu0
    %v1945 = vadd.f32 %v1916, %v1944
    %1946 = vdwg.mxu0
    %v1947 = vadd.f32 %v1936, %v700
    %v1948 = vadd.f32 %v1939, %v700
    %v1949 = vadd.f32 %v1942, %v700
    %v1950 = vadd.f32 %v1945, %v700
    %v1951 = vtanh.pop %v1947
    %v1952 = vtanh.pop %v1948
    %v1953 = vtanh.pop %v1949
    %v1954 = vtanh.pop %v1950
    %v1955 = vmul.f32 %v1620, %v1357
    %v1956 = vmul.f32 %v1635, %v1358
    %v1957 = vmul.f32 %v1650, %v1359
    %v1958 = vmul.f32 %v1665, %v1360
    %v1959 = vsub.f32 1.0, %v1620
    %v1960 = vsub.f32 1.0, %v1635
    %v1961 = vsub.f32 1.0, %v1650
    %v1962 = vsub.f32 1.0, %v1665
    %v1963 = vmul.f32 %v1959, %v1951
    %v1964 = vmul.f32 %v1960, %v1952
    %v1965 = vmul.f32 %v1961, %v1953
    %v1966 = vmul.f32 %v1962, %v1954
    %v1967 = vadd.f32 %v1955, %v1963
    %v1968 = vadd.f32 %v1956, %v1964
    %v1969 = vadd.f32 %v1957, %v1965
    %v1970 = vadd.f32 %v1958, %v1966
    %1971 = vst.msk [vmem:[#allocation2] sm:$0xff] %vm93, %v1967
    %1972 = vst.msk [vmem:[#allocation2 + $0x8] sm:$0xff] %vm93, %v1968
    %1973 = vst.msk [vmem:[#allocation2 + $0x10] sm:$0xff] %vm93, %v1969
    %1974 = vst.msk [vmem:[#allocation2 + $0x18] sm:$0xff] %vm93, %v1970
    %s1975 = scalar_lea.vmem [#allocation3], 64
    %1976 = vst.msk [vmem:[%s1975] sm:$0xff] %vm93, %v1967
    %1977 = vst.msk [vmem:[%s1975 + $0x8] sm:$0xff] %vm93, %v1968
    %1978 = vst.msk [vmem:[%s1975 + $0x10] sm:$0xff] %vm93, %v1969
    %1979 = vst.msk [vmem:[%s1975 + $0x18] sm:$0xff] %vm93, %v1970
    %v1980 = vld [vmem:[#allocation2] sm:$0xff]
    %v1981 = vld [vmem:[#allocation2 + $0x8] sm:$0xff]
    %v1982 = vld [vmem:[#allocation2 + $0x10] sm:$0xff]
    %v1983 = vld [vmem:[#allocation2 + $0x18] sm:$0xff]
    %s1984 = scalar_lea.vmem %s0, 96
    %v1985 = vld [vmem:[%s1984] sm:$0xff]
    %v1986 = vld [vmem:[%s1984 + $0x8] sm:$0xff]
    %v1987 = vld [vmem:[%s1984 + $0x10] sm:$0xff]
    %v1988 = vld [vmem:[%s1984 + $0x18] sm:$0xff]
    %v1990 = vsel %vm93, %v1980, 0
    %v1993 = vsel %vm93, %v1981, 0
    %v1996 = vsel %vm93, %v1982, 0
    %v1999 = vsel %vm93, %v1983, 0
    %2001 = vmatpush.msra.mxu0 0.0
    %2002 = vmatpush.msra.mxu0 0.0
    %2003 = vmatpush.msra.mxu0 0.0
    %2004 = vmatpush.msra.mxu0 0.0
    %2005 = vmatpush.msra.mxu0 0.0
    %2006 = vmatpush.msra.mxu0 0.0
    %2007 = vmatpush.msra.mxu0 0.0
    %2008 = vmatpush.msra.mxu0 0.0
    %2009 = vmatpush.msra.mxu0 0.0
    %2010 = vmatpush.msra.mxu0 0.0
    %2011 = vmatpush.msra.mxu0 0.0
    %2012 = vmatpush.msra.mxu0 0.0
    %2013 = vmatpush.msra.mxu0 %v57
    %2014 = vmatpush.msra.mxu0 %v56
    %2015 = vmatpush.msra.mxu0 %v55
    %2016 = vmatpush.msra.mxu0 %v54
    %2017 = vmatmul.f32.gmra.mxu0 %v1990
    %v2018 = vpop.f32.mrf.mxu0
    %v2019 = vadd.f32 0.0, %v2018
    %2020 = vmatmul.f32.gmra.mxu0 %v1993
    %v2021 = vpop.f32.mrf.mxu0
    %v2022 = vadd.f32 0.0, %v2021
    %2023 = vmatmul.f32.gmra.mxu0 %v1996
    %v2024 = vpop.f32.mrf.mxu0
    %v2025 = vadd.f32 0.0, %v2024
    %2026 = vmatmul.f32.gmra.mxu0 %v1999
    %v2027 = vpop.f32.mrf.mxu0
    %v2028 = vadd.f32 0.0, %v2027
    %2029 = vdwg.mxu0
    %v2031 = vsel %vm135, %v1985, 0
    %v2034 = vsel %vm135, %v1986, 0
    %v2037 = vsel %vm135, %v1987, 0
    %v2040 = vsel %vm135, %v1988, 0
    %2042 = vmatpush.msra.mxu0 0.0
    %2043 = vmatpush.msra.mxu0 0.0
    %2044 = vmatpush.msra.mxu0 0.0
    %2045 = vmatpush.msra.mxu0 0.0
    %2046 = vmatpush.msra.mxu0 0.0
    %2047 = vmatpush.msra.mxu0 0.0
    %2048 = vmatpush.msra.mxu0 0.0
    %2049 = vmatpush.msra.mxu0 0.0
    %2050 = vmatpush.msra.mxu0 0.0
    %2051 = vmatpush.msra.mxu0 0.0
    %2052 = vmatpush.msra.mxu0 0.0
    %2053 = vmatpush.msra.mxu0 0.0
    %2054 = vmatpush.msra.mxu0 0.0
    %2055 = vmatpush.msra.mxu0 0.0
    %2056 = vmatpush.msra.mxu0 0.0
    %2057 = vmatpush.msra.mxu0 %v150
    %2058 = vmatmul.f32.gmra.mxu0 %v2031
    %v2059 = vpop.f32.mrf.mxu0
    %v2060 = vadd.f32 %v2019, %v2059
    %2061 = vmatmul.f32.gmra.mxu0 %v2034
    %v2062 = vpop.f32.mrf.mxu0
    %v2063 = vadd.f32 %v2022, %v2062
    %2064 = vmatmul.f32.gmra.mxu0 %v2037
    %v2065 = vpop.f32.mrf.mxu0
    %v2066 = vadd.f32 %v2025, %v2065
    %2067 = vmatmul.f32.gmra.mxu0 %v2040
    %v2068 = vpop.f32.mrf.mxu0
    %v2069 = vadd.f32 %v2028, %v2068
    %2070 = vdwg.mxu0
    %v2071 = vadd.f32 %v2060, %v182
    %v2072 = vadd.f32 %v2063, %v182
    %v2073 = vadd.f32 %v2066, %v182
    %v2074 = vadd.f32 %v2069, %v182
    %v2075 = vxor.u32 %v2071, 2147483648
    %v2076 = vxor.u32 %v2072, 2147483648
    %v2077 = vxor.u32 %v2073, 2147483648
    %v2078 = vxor.u32 %v2074, 2147483648
    %v2079 = vmul.f32 %v2075, 1.442695
    %v2080 = vpow.pop %v2079
    %v2081 = vmul.f32 %v2076, 1.442695
    %v2082 = vpow.pop %v2081
    %v2083 = vmul.f32 %v2077, 1.442695
    %v2084 = vpow.pop %v2083
    %v2085 = vmul.f32 %v2078, 1.442695
    %v2086 = vpow.pop %v2085
    %v2087 = vadd.f32 %v2080, 1.0
    %v2088 = vadd.f32 %v2082, 1.0
    %v2089 = vadd.f32 %v2084, 1.0
    %v2090 = vadd.f32 %v2086, 1.0
    %v2091 = vrcp.pop %v2087
    %v2092 = vmul.f32 %v2087, %v2091
    %v2093 = vsub.f32 1.0, %v2092
    %v2094 = vmul.f32 %v2091, %v2093
    %v2095 = vadd.f32 %v2091, %v2094
    %vm2096 = vweird.f32 %v2087
    %vm2097 = vweird.f32 %v2091
    %vm2098 = vmor %vm2096, %vm2097
    %v2099 = vsel %vm2098, %v2091, %v2095
    %v2100 = vand.u32 2147483647, %v2087
    %vm2101 = vcmp.eq.f32.partialorder %v2100, 8.507059e+37
    %v2102 = vand.u32 %v2087, 2147483648
    %v2103 = vor.u32 1.1754944e-38, %v2102
    %v2104 = vsel %vm2101, %v2103, %v2099
    %v2105 = vmul.f32 1.0, %v2104
    %v2106 = vrcp.pop %v2088
    %v2107 = vmul.f32 %v2088, %v2106
    %v2108 = vsub.f32 1.0, %v2107
    %v2109 = vmul.f32 %v2106, %v2108
    %v2110 = vadd.f32 %v2106, %v2109
    %vm2111 = vweird.f32 %v2088
    %vm2112 = vweird.f32 %v2106
    %vm2113 = vmor %vm2111, %vm2112
    %v2114 = vsel %vm2113, %v2106, %v2110
    %v2115 = vand.u32 2147483647, %v2088
    %vm2116 = vcmp.eq.f32.partialorder %v2115, 8.507059e+37
    %v2117 = vand.u32 %v2088, 2147483648
    %v2118 = vor.u32 1.1754944e-38, %v2117
    %v2119 = vsel %vm2116, %v2118, %v2114
    %v2120 = vmul.f32 1.0, %v2119
    %v2121 = vrcp.pop %v2089
    %v2122 = vmul.f32 %v2089, %v2121
    %v2123 = vsub.f32 1.0, %v2122
    %v2124 = vmul.f32 %v2121, %v2123
    %v2125 = vadd.f32 %v2121, %v2124
    %vm2126 = vweird.f32 %v2089
    %vm2127 = vweird.f32 %v2121
    %vm2128 = vmor %vm2126, %vm2127
    %v2129 = vsel %vm2128, %v2121, %v2125
    %v2130 = vand.u32 2147483647, %v2089
    %vm2131 = vcmp.eq.f32.partialorder %v2130, 8.507059e+37
    %v2132 = vand.u32 %v2089, 2147483648
    %v2133 = vor.u32 1.1754944e-38, %v2132
    %v2134 = vsel %vm2131, %v2133, %v2129
    %v2135 = vmul.f32 1.0, %v2134
    %v2136 = vrcp.pop %v2090
    %v2137 = vmul.f32 %v2090, %v2136
    %v2138 = vsub.f32 1.0, %v2137
    %v2139 = vmul.f32 %v2136, %v2138
    %v2140 = vadd.f32 %v2136, %v2139
    %vm2141 = vweird.f32 %v2090
    %vm2142 = vweird.f32 %v2136
    %vm2143 = vmor %vm2141, %vm2142
    %v2144 = vsel %vm2143, %v2136, %v2140
    %v2145 = vand.u32 2147483647, %v2090
    %vm2146 = vcmp.eq.f32.partialorder %v2145, 8.507059e+37
    %v2147 = vand.u32 %v2090, 2147483648
    %v2148 = vor.u32 1.1754944e-38, %v2147
    %v2149 = vsel %vm2146, %v2148, %v2144
    %v2150 = vmul.f32 1.0, %v2149
    %2151 = vmatpush.msra.mxu0 0.0
    %2152 = vmatpush.msra.mxu0 0.0
    %2153 = vmatpush.msra.mxu0 0.0
    %2154 = vmatpush.msra.mxu0 0.0
    %2155 = vmatpush.msra.mxu0 0.0
    %2156 = vmatpush.msra.mxu0 0.0
    %2157 = vmatpush.msra.mxu0 0.0
    %2158 = vmatpush.msra.mxu0 0.0
    %2159 = vmatpush.msra.mxu0 0.0
    %2160 = vmatpush.msra.mxu0 0.0
    %2161 = vmatpush.msra.mxu0 0.0
    %2162 = vmatpush.msra.mxu0 0.0
    %2163 = vmatpush.msra.mxu0 %v62
    %2164 = vmatpush.msra.mxu0 %v61
    %2165 = vmatpush.msra.mxu0 %v60
    %2166 = vmatpush.msra.mxu0 %v59
    %2167 = vmatmul.f32.gmra.mxu0 %v1990
    %v2168 = vpop.f32.mrf.mxu0
    %v2169 = vadd.f32 0.0, %v2168
    %2170 = vmatmul.f32.gmra.mxu0 %v1993
    %v2171 = vpop.f32.mrf.mxu0
    %v2172 = vadd.f32 0.0, %v2171
    %2173 = vmatmul.f32.gmra.mxu0 %v1996
    %v2174 = vpop.f32.mrf.mxu0
    %v2175 = vadd.f32 0.0, %v2174
    %2176 = vmatmul.f32.gmra.mxu0 %v1999
    %v2177 = vpop.f32.mrf.mxu0
    %v2178 = vadd.f32 0.0, %v2177
    %2179 = vdwg.mxu0
    %2180 = vmatpush.msra.mxu0 0.0
    %2181 = vmatpush.msra.mxu0 0.0
    %2182 = vmatpush.msra.mxu0 0.0
    %2183 = vmatpush.msra.mxu0 0.0
    %2184 = vmatpush.msra.mxu0 0.0
    %2185 = vmatpush.msra.mxu0 0.0
    %2186 = vmatpush.msra.mxu0 0.0
    %2187 = vmatpush.msra.mxu0 0.0
    %2188 = vmatpush.msra.mxu0 0.0
    %2189 = vmatpush.msra.mxu0 0.0
    %2190 = vmatpush.msra.mxu0 0.0
    %2191 = vmatpush.msra.mxu0 0.0
    %2192 = vmatpush.msra.mxu0 0.0
    %2193 = vmatpush.msra.mxu0 0.0
    %2194 = vmatpush.msra.mxu0 0.0
    %2195 = vmatpush.msra.mxu0 %v294
    %2196 = vmatmul.f32.gmra.mxu0 %v2031
    %v2197 = vpop.f32.mrf.mxu0
    %v2198 = vadd.f32 %v2169, %v2197
    %2199 = vmatmul.f32.gmra.mxu0 %v2034
    %v2200 = vpop.f32.mrf.mxu0
    %v2201 = vadd.f32 %v2172, %v2200
    %2202 = vmatmul.f32.gmra.mxu0 %v2037
    %v2203 = vpop.f32.mrf.mxu0
    %v2204 = vadd.f32 %v2175, %v2203
    %2205 = vmatmul.f32.gmra.mxu0 %v2040
    %v2206 = vpop.f32.mrf.mxu0
    %v2207 = vadd.f32 %v2178, %v2206
    %2208 = vdwg.mxu0
    %v2209 = vadd.f32 %v2198, %v326
    %v2210 = vadd.f32 %v2201, %v326
    %v2211 = vadd.f32 %v2204, %v326
    %v2212 = vadd.f32 %v2207, %v326
    %v2213 = vxor.u32 %v2209, 2147483648
    %v2214 = vxor.u32 %v2210, 2147483648
    %v2215 = vxor.u32 %v2211, 2147483648
    %v2216 = vxor.u32 %v2212, 2147483648
    %v2217 = vmul.f32 %v2213, 1.442695
    %v2218 = vpow.pop %v2217
    %v2219 = vmul.f32 %v2214, 1.442695
    %v2220 = vpow.pop %v2219
    %v2221 = vmul.f32 %v2215, 1.442695
    %v2222 = vpow.pop %v2221
    %v2223 = vmul.f32 %v2216, 1.442695
    %v2224 = vpow.pop %v2223
    %v2225 = vadd.f32 %v2218, 1.0
    %v2226 = vadd.f32 %v2220, 1.0
    %v2227 = vadd.f32 %v2222, 1.0
    %v2228 = vadd.f32 %v2224, 1.0
    %v2229 = vrcp.pop %v2225
    %v2230 = vmul.f32 %v2225, %v2229
    %v2231 = vsub.f32 1.0, %v2230
    %v2232 = vmul.f32 %v2229, %v2231
    %v2233 = vadd.f32 %v2229, %v2232
    %vm2234 = vweird.f32 %v2225
    %vm2235 = vweird.f32 %v2229
    %vm2236 = vmor %vm2234, %vm2235
    %v2237 = vsel %vm2236, %v2229, %v2233
    %v2238 = vand.u32 2147483647, %v2225
    %vm2239 = vcmp.eq.f32.partialorder %v2238, 8.507059e+37
    %v2240 = vand.u32 %v2225, 2147483648
    %v2241 = vor.u32 1.1754944e-38, %v2240
    %v2242 = vsel %vm2239, %v2241, %v2237
    %v2243 = vmul.f32 1.0, %v2242
    %v2244 = vrcp.pop %v2226
    %v2245 = vmul.f32 %v2226, %v2244
    %v2246 = vsub.f32 1.0, %v2245
    %v2247 = vmul.f32 %v2244, %v2246
    %v2248 = vadd.f32 %v2244, %v2247
    %vm2249 = vweird.f32 %v2226
    %vm2250 = vweird.f32 %v2244
    %vm2251 = vmor %vm2249, %vm2250
    %v2252 = vsel %vm2251, %v2244, %v2248
    %v2253 = vand.u32 2147483647, %v2226
    %vm2254 = vcmp.eq.f32.partialorder %v2253, 8.507059e+37
    %v2255 = vand.u32 %v2226, 2147483648
    %v2256 = vor.u32 1.1754944e-38, %v2255
    %v2257 = vsel %vm2254, %v2256, %v2252
    %v2258 = vmul.f32 1.0, %v2257
    %v2259 = vrcp.pop %v2227
    %v2260 = vmul.f32 %v2227, %v2259
    %v2261 = vsub.f32 1.0, %v2260
    %v2262 = vmul.f32 %v2259, %v2261
    %v2263 = vadd.f32 %v2259, %v2262
    %vm2264 = vweird.f32 %v2227
    %vm2265 = vweird.f32 %v2259
    %vm2266 = vmor %vm2264, %vm2265
    %v2267 = vsel %vm2266, %v2259, %v2263
    %v2268 = vand.u32 2147483647, %v2227
    %vm2269 = vcmp.eq.f32.partialorder %v2268, 8.507059e+37
    %v2270 = vand.u32 %v2227, 2147483648
    %v2271 = vor.u32 1.1754944e-38, %v2270
    %v2272 = vsel %vm2269, %v2271, %v2267
    %v2273 = vmul.f32 1.0, %v2272
    %v2274 = vrcp.pop %v2228
    %v2275 = vmul.f32 %v2228, %v2274
    %v2276 = vsub.f32 1.0, %v2275
    %v2277 = vmul.f32 %v2274, %v2276
    %v2278 = vadd.f32 %v2274, %v2277
    %vm2279 = vweird.f32 %v2228
    %vm2280 = vweird.f32 %v2274
    %vm2281 = vmor %vm2279, %vm2280
    %v2282 = vsel %vm2281, %v2274, %v2278
    %v2283 = vand.u32 2147483647, %v2228
    %vm2284 = vcmp.eq.f32.partialorder %v2283, 8.507059e+37
    %v2285 = vand.u32 %v2228, 2147483648
    %v2286 = vor.u32 1.1754944e-38, %v2285
    %v2287 = vsel %vm2284, %v2286, %v2282
    %v2288 = vmul.f32 1.0, %v2287
    %2289 = vmatpush.msra.mxu0 0.0
    %2290 = vmatpush.msra.mxu0 0.0
    %2291 = vmatpush.msra.mxu0 0.0
    %2292 = vmatpush.msra.mxu0 0.0
    %2293 = vmatpush.msra.mxu0 0.0
    %2294 = vmatpush.msra.mxu0 0.0
    %2295 = vmatpush.msra.mxu0 0.0
    %2296 = vmatpush.msra.mxu0 0.0
    %2297 = vmatpush.msra.mxu0 0.0
    %2298 = vmatpush.msra.mxu0 0.0
    %2299 = vmatpush.msra.mxu0 0.0
    %2300 = vmatpush.msra.mxu0 0.0
    %2301 = vmatpush.msra.mxu0 0.0
    %2302 = vmatpush.msra.mxu0 0.0
    %2303 = vmatpush.msra.mxu0 %v1981
    %2304 = vmatpush.msra.mxu0 %v1980
    %2305 = vmatmul.f32.gmra.mxu0 %v410
    %v2306 = vpop.f32.mrf.mxu0
    %v2307 = vadd.f32 0.0, %v2306
    %2308 = vmatmul.f32.gmra.mxu0 %v413
    %v2309 = vpop.f32.mrf.mxu0
    %v2310 = vadd.f32 0.0, %v2309
    %2311 = vdwg.mxu0
    %2312 = vmatpush.msra.mxu0 0.0
    %2313 = vmatpush.msra.mxu0 0.0
    %2314 = vmatpush.msra.mxu0 0.0
    %2315 = vmatpush.msra.mxu0 0.0
    %2316 = vmatpush.msra.mxu0 0.0
    %2317 = vmatpush.msra.mxu0 0.0
    %2318 = vmatpush.msra.mxu0 0.0
    %2319 = vmatpush.msra.mxu0 0.0
    %2320 = vmatpush.msra.mxu0 0.0
    %2321 = vmatpush.msra.mxu0 0.0
    %2322 = vmatpush.msra.mxu0 0.0
    %2323 = vmatpush.msra.mxu0 0.0
    %2324 = vmatpush.msra.mxu0 0.0
    %2325 = vmatpush.msra.mxu0 0.0
    %2326 = vmatpush.msra.mxu0 %v1983
    %2327 = vmatpush.msra.mxu0 %v1982
    %2328 = vmatmul.f32.gmra.mxu0 %v410
    %v2329 = vpop.f32.mrf.mxu0
    %v2330 = vadd.f32 0.0, %v2329
    %2331 = vmatmul.f32.gmra.mxu0 %v413
    %v2332 = vpop.f32.mrf.mxu0
    %v2333 = vadd.f32 0.0, %v2332
    %2334 = vdwg.mxu0
    %v2336 = vsel %vm93, %v2307, 0
    %v2339 = vsel %vm93, %v2310, 0
    %v2342 = vsel %vm93, %v2330, 0
    %v2345 = vsel %vm93, %v2333, 0
    %2347 = vmatpush.msra.mxu0 0.0
    %2348 = vmatpush.msra.mxu0 0.0
    %2349 = vmatpush.msra.mxu0 0.0
    %2350 = vmatpush.msra.mxu0 0.0
    %2351 = vmatpush.msra.mxu0 0.0
    %2352 = vmatpush.msra.mxu0 0.0
    %2353 = vmatpush.msra.mxu0 0.0
    %2354 = vmatpush.msra.mxu0 0.0
    %2355 = vmatpush.msra.mxu0 0.0
    %2356 = vmatpush.msra.mxu0 0.0
    %2357 = vmatpush.msra.mxu0 0.0
    %2358 = vmatpush.msra.mxu0 0.0
    %2359 = vmatpush.msra.mxu0 %v76
    %2360 = vmatpush.msra.mxu0 %v75
    %2361 = vmatpush.msra.mxu0 %v74
    %2362 = vmatpush.msra.mxu0 %v73
    %2363 = vmatmul.f32.gmra.mxu0 %v2336
    %v2364 = vpop.f32.mrf.mxu0
    %v2365 = vadd.f32 0.0, %v2364
    %2366 = vmatmul.f32.gmra.mxu0 %v2339
    %v2367 = vpop.f32.mrf.mxu0
    %v2368 = vadd.f32 0.0, %v2367
    %2369 = vmatmul.f32.gmra.mxu0 %v2342
    %v2370 = vpop.f32.mrf.mxu0
    %v2371 = vadd.f32 0.0, %v2370
    %2372 = vmatmul.f32.gmra.mxu0 %v2345
    %v2373 = vpop.f32.mrf.mxu0
    %v2374 = vadd.f32 0.0, %v2373
    %2375 = vdwg.mxu0
    %2376 = vmatpush.msra.mxu0 0.0
    %2377 = vmatpush.msra.mxu0 0.0
    %2378 = vmatpush.msra.mxu0 0.0
    %2379 = vmatpush.msra.mxu0 0.0
    %2380 = vmatpush.msra.mxu0 0.0
    %2381 = vmatpush.msra.mxu0 0.0
    %2382 = vmatpush.msra.mxu0 0.0
    %2383 = vmatpush.msra.mxu0 0.0
    %2384 = vmatpush.msra.mxu0 0.0
    %2385 = vmatpush.msra.mxu0 0.0
    %2386 = vmatpush.msra.mxu0 0.0
    %2387 = vmatpush.msra.mxu0 0.0
    %2388 = vmatpush.msra.mxu0 %v71
    %2389 = vmatpush.msra.mxu0 %v70
    %2390 = vmatpush.msra.mxu0 %v69
    %2391 = vmatpush.msra.mxu0 %v68
    %2392 = vmatmul.f32.gmra.mxu0 %v1990
    %v2393 = vpop.f32.mrf.mxu0
    %v2394 = vadd.f32 %v2365, %v2393
    %2395 = vmatmul.f32.gmra.mxu0 %v1993
    %v2396 = vpop.f32.mrf.mxu0
    %v2397 = vadd.f32 %v2368, %v2396
    %2398 = vmatmul.f32.gmra.mxu0 %v1996
    %v2399 = vpop.f32.mrf.mxu0
    %v2400 = vadd.f32 %v2371, %v2399
    %2401 = vmatmul.f32.gmra.mxu0 %v1999
    %v2402 = vpop.f32.mrf.mxu0
    %v2403 = vadd.f32 %v2374, %v2402
    %2404 = vdwg.mxu0
    %2405 = vmatpush.msra.mxu0 0.0
    %2406 = vmatpush.msra.mxu0 0.0
    %2407 = vmatpush.msra.mxu0 0.0
    %2408 = vmatpush.msra.mxu0 0.0
    %2409 = vmatpush.msra.mxu0 0.0
    %2410 = vmatpush.msra.mxu0 0.0
    %2411 = vmatpush.msra.mxu0 0.0
    %2412 = vmatpush.msra.mxu0 0.0
    %2413 = vmatpush.msra.mxu0 0.0
    %2414 = vmatpush.msra.mxu0 0.0
    %2415 = vmatpush.msra.mxu0 0.0
    %2416 = vmatpush.msra.mxu0 0.0
    %2417 = vmatpush.msra.mxu0 0.0
    %2418 = vmatpush.msra.mxu0 0.0
    %2419 = vmatpush.msra.mxu0 %v2310
    %2420 = vmatpush.msra.mxu0 %v2307
    %2421 = vmatmul.f32.gmra.mxu0 %v410
    %v2422 = vpop.f32.mrf.mxu0
    %v2423 = vadd.f32 0.0, %v2422
    %2424 = vmatmul.f32.gmra.mxu0 %v413
    %v2425 = vpop.f32.mrf.mxu0
    %v2426 = vadd.f32 0.0, %v2425
    %2427 = vdwg.mxu0
    %2428 = vmatpush.msra.mxu0 0.0
    %2429 = vmatpush.msra.mxu0 0.0
    %2430 = vmatpush.msra.mxu0 0.0
    %2431 = vmatpush.msra.mxu0 0.0
    %2432 = vmatpush.msra.mxu0 0.0
    %2433 = vmatpush.msra.mxu0 0.0
    %2434 = vmatpush.msra.mxu0 0.0
    %2435 = vmatpush.msra.mxu0 0.0
    %2436 = vmatpush.msra.mxu0 0.0
    %2437 = vmatpush.msra.mxu0 0.0
    %2438 = vmatpush.msra.mxu0 0.0
    %2439 = vmatpush.msra.mxu0 0.0
    %2440 = vmatpush.msra.mxu0 0.0
    %2441 = vmatpush.msra.mxu0 0.0
    %2442 = vmatpush.msra.mxu0 %v2333
    %2443 = vmatpush.msra.mxu0 %v2330
    %2444 = vmatmul.f32.gmra.mxu0 %v410
    %v2445 = vpop.f32.mrf.mxu0
    %v2446 = vadd.f32 0.0, %v2445
    %2447 = vmatmul.f32.gmra.mxu0 %v413
    %v2448 = vpop.f32.mrf.mxu0
    %v2449 = vadd.f32 0.0, %v2448
    %2450 = vdwg.mxu0
    %v2452 = vsel %vm93, %v2423, 0
    %v2455 = vsel %vm93, %v2426, 0
    %v2458 = vsel %vm93, %v2446, 0
    %v2461 = vsel %vm93, %v2449, 0
    %2463 = vmatpush.msra.mxu0 0.0
    %2464 = vmatpush.msra.mxu0 0.0
    %2465 = vmatpush.msra.mxu0 0.0
    %2466 = vmatpush.msra.mxu0 0.0
    %2467 = vmatpush.msra.mxu0 0.0
    %2468 = vmatpush.msra.mxu0 0.0
    %2469 = vmatpush.msra.mxu0 0.0
    %2470 = vmatpush.msra.mxu0 0.0
    %2471 = vmatpush.msra.mxu0 0.0
    %2472 = vmatpush.msra.mxu0 0.0
    %2473 = vmatpush.msra.mxu0 0.0
    %2474 = vmatpush.msra.mxu0 0.0
    %2475 = vmatpush.msra.mxu0 %v81
    %2476 = vmatpush.msra.mxu0 %v80
    %2477 = vmatpush.msra.mxu0 %v79
    %2478 = vmatpush.msra.mxu0 %v78
    %2479 = vmatmul.f32.gmra.mxu0 %v2452
    %v2480 = vpop.f32.mrf.mxu0
    %v2481 = vadd.f32 0.0, %v2480
    %2482 = vmatmul.f32.gmra.mxu0 %v2455
    %v2483 = vpop.f32.mrf.mxu0
    %v2484 = vadd.f32 0.0, %v2483
    %2485 = vmatmul.f32.gmra.mxu0 %v2458
    %v2486 = vpop.f32.mrf.mxu0
    %v2487 = vadd.f32 0.0, %v2486
    %2488 = vmatmul.f32.gmra.mxu0 %v2461
    %v2489 = vpop.f32.mrf.mxu0
    %v2490 = vadd.f32 0.0, %v2489
    %2491 = vdwg.mxu0
    %v2492 = vadd.f32 %v2394, %v2481
    %v2493 = vadd.f32 %v2397, %v2484
    %v2494 = vadd.f32 %v2400, %v2487
    %v2495 = vadd.f32 %v2403, %v2490
    %v2496 = vmul.f32 %v2105, %v2492
    %v2497 = vmul.f32 %v2120, %v2493
    %v2498 = vmul.f32 %v2135, %v2494
    %v2499 = vmul.f32 %v2150, %v2495
    %v2501 = vsel %vm93, %v2496, 0
    %v2504 = vsel %vm93, %v2497, 0
    %v2507 = vsel %vm93, %v2498, 0
    %v2510 = vsel %vm93, %v2499, 0
    %2512 = vmatpush.msra.mxu0 0.0
    %2513 = vmatpush.msra.mxu0 0.0
    %2514 = vmatpush.msra.mxu0 0.0
    %2515 = vmatpush.msra.mxu0 0.0
    %2516 = vmatpush.msra.mxu0 0.0
    %2517 = vmatpush.msra.mxu0 0.0
    %2518 = vmatpush.msra.mxu0 0.0
    %2519 = vmatpush.msra.mxu0 0.0
    %2520 = vmatpush.msra.mxu0 0.0
    %2521 = vmatpush.msra.mxu0 0.0
    %2522 = vmatpush.msra.mxu0 0.0
    %2523 = vmatpush.msra.mxu0 0.0
    %2524 = vmatpush.msra.mxu0 %v67
    %2525 = vmatpush.msra.mxu0 %v66
    %2526 = vmatpush.msra.mxu0 %v65
    %2527 = vmatpush.msra.mxu0 %v64
    %2528 = vmatmul.f32.gmra.mxu0 %v2501
    %v2529 = vpop.f32.mrf.mxu0
    %v2530 = vadd.f32 0.0, %v2529
    %2531 = vmatmul.f32.gmra.mxu0 %v2504
    %v2532 = vpop.f32.mrf.mxu0
    %v2533 = vadd.f32 0.0, %v2532
    %2534 = vmatmul.f32.gmra.mxu0 %v2507
    %v2535 = vpop.f32.mrf.mxu0
    %v2536 = vadd.f32 0.0, %v2535
    %2537 = vmatmul.f32.gmra.mxu0 %v2510
    %v2538 = vpop.f32.mrf.mxu0
    %v2539 = vadd.f32 0.0, %v2538
    %2540 = vdwg.mxu0
    %2541 = vmatpush.msra.mxu0 0.0
    %2542 = vmatpush.msra.mxu0 0.0
    %2543 = vmatpush.msra.mxu0 0.0
    %2544 = vmatpush.msra.mxu0 0.0
    %2545 = vmatpush.msra.mxu0 0.0
    %2546 = vmatpush.msra.mxu0 0.0
    %2547 = vmatpush.msra.mxu0 0.0
    %2548 = vmatpush.msra.mxu0 0.0
    %2549 = vmatpush.msra.mxu0 0.0
    %2550 = vmatpush.msra.mxu0 0.0
    %2551 = vmatpush.msra.mxu0 0.0
    %2552 = vmatpush.msra.mxu0 0.0
    %2553 = vmatpush.msra.mxu0 0.0
    %2554 = vmatpush.msra.mxu0 0.0
    %2555 = vmatpush.msra.mxu0 0.0
    %2556 = vmatpush.msra.mxu0 %v668
    %2557 = vmatmul.f32.gmra.mxu0 %v2031
    %v2558 = vpop.f32.mrf.mxu0
    %v2559 = vadd.f32 %v2530, %v2558
    %2560 = vmatmul.f32.gmra.mxu0 %v2034
    %v2561 = vpop.f32.mrf.mxu0
    %v2562 = vadd.f32 %v2533, %v2561
    %2563 = vmatmul.f32.gmra.mxu0 %v2037
    %v2564 = vpop.f32.mrf.mxu0
    %v2565 = vadd.f32 %v2536, %v2564
    %2566 = vmatmul.f32.gmra.mxu0 %v2040
    %v2567 = vpop.f32.mrf.mxu0
    %v2568 = vadd.f32 %v2539, %v2567
    %2569 = vdwg.mxu0
    %v2570 = vadd.f32 %v2559, %v700
    %v2571 = vadd.f32 %v2562, %v700
    %v2572 = vadd.f32 %v2565, %v700
    %v2573 = vadd.f32 %v2568, %v700
    %v2574 = vtanh.pop %v2570
    %v2575 = vtanh.pop %v2571
    %v2576 = vtanh.pop %v2572
    %v2577 = vtanh.pop %v2573
    %v2578 = vmul.f32 %v2243, %v1980
    %v2579 = vmul.f32 %v2258, %v1981
    %v2580 = vmul.f32 %v2273, %v1982
    %v2581 = vmul.f32 %v2288, %v1983
    %v2582 = vsub.f32 1.0, %v2243
    %v2583 = vsub.f32 1.0, %v2258
    %v2584 = vsub.f32 1.0, %v2273
    %v2585 = vsub.f32 1.0, %v2288
    %v2586 = vmul.f32 %v2582, %v2574
    %v2587 = vmul.f32 %v2583, %v2575
    %v2588 = vmul.f32 %v2584, %v2576
    %v2589 = vmul.f32 %v2585, %v2577
    %v2590 = vadd.f32 %v2578, %v2586
    %v2591 = vadd.f32 %v2579, %v2587
    %v2592 = vadd.f32 %v2580, %v2588
    %v2593 = vadd.f32 %v2581, %v2589
    %2594 = vst.msk [vmem:[#allocation2] sm:$0xff] %vm93, %v2590
    %2595 = vst.msk [vmem:[#allocation2 + $0x8] sm:$0xff] %vm93, %v2591
    %2596 = vst.msk [vmem:[#allocation2 + $0x10] sm:$0xff] %vm93, %v2592
    %2597 = vst.msk [vmem:[#allocation2 + $0x18] sm:$0xff] %vm93, %v2593
    %s2598 = scalar_lea.vmem [#allocation3], 96
    %2599 = vst.msk [vmem:[%s2598] sm:$0xff] %vm93, %v2590
    %2600 = vst.msk [vmem:[%s2598 + $0x8] sm:$0xff] %vm93, %v2591
    %2601 = vst.msk [vmem:[%s2598 + $0x10] sm:$0xff] %vm93, %v2592
    %2602 = vst.msk [vmem:[%s2598 + $0x18] sm:$0xff] %vm93, %v2593
    %v2603 = vld [vmem:[#allocation2] sm:$0xff]
    %v2604 = vld [vmem:[#allocation2 + $0x8] sm:$0xff]
    %v2605 = vld [vmem:[#allocation2 + $0x10] sm:$0xff]
    %v2606 = vld [vmem:[#allocation2 + $0x18] sm:$0xff]
    %s2607 = scalar_lea.vmem %s0, 128
    %v2608 = vld [vmem:[%s2607] sm:$0xff]
    %v2609 = vld [vmem:[%s2607 + $0x8] sm:$0xff]
    %v2610 = vld [vmem:[%s2607 + $0x10] sm:$0xff]
    %v2611 = vld [vmem:[%s2607 + $0x18] sm:$0xff]
    %v2613 = vsel %vm93, %v2603, 0
    %v2616 = vsel %vm93, %v2604, 0
    %v2619 = vsel %vm93, %v2605, 0
    %v2622 = vsel %vm93, %v2606, 0
    %2624 = vmatpush.msra.mxu0 0.0
    %2625 = vmatpush.msra.mxu0 0.0
    %2626 = vmatpush.msra.mxu0 0.0
    %2627 = vmatpush.msra.mxu0 0.0
    %2628 = vmatpush.msra.mxu0 0.0
    %2629 = vmatpush.msra.mxu0 0.0
    %2630 = vmatpush.msra.mxu0 0.0
    %2631 = vmatpush.msra.mxu0 0.0
    %2632 = vmatpush.msra.mxu0 0.0
    %2633 = vmatpush.msra.mxu0 0.0
    %2634 = vmatpush.msra.mxu0 0.0
    %2635 = vmatpush.msra.mxu0 0.0
    %2636 = vmatpush.msra.mxu0 %v57
    %2637 = vmatpush.msra.mxu0 %v56
    %2638 = vmatpush.msra.mxu0 %v55
    %2639 = vmatpush.msra.mxu0 %v54
    %2640 = vmatmul.f32.gmra.mxu0 %v2613
    %v2641 = vpop.f32.mrf.mxu0
    %v2642 = vadd.f32 0.0, %v2641
    %2643 = vmatmul.f32.gmra.mxu0 %v2616
    %v2644 = vpop.f32.mrf.mxu0
    %v2645 = vadd.f32 0.0, %v2644
    %2646 = vmatmul.f32.gmra.mxu0 %v2619
    %v2647 = vpop.f32.mrf.mxu0
    %v2648 = vadd.f32 0.0, %v2647
    %2649 = vmatmul.f32.gmra.mxu0 %v2622
    %v2650 = vpop.f32.mrf.mxu0
    %v2651 = vadd.f32 0.0, %v2650
    %2652 = vdwg.mxu0
    %v2654 = vsel %vm135, %v2608, 0
    %v2657 = vsel %vm135, %v2609, 0
    %v2660 = vsel %vm135, %v2610, 0
    %v2663 = vsel %vm135, %v2611, 0
    %2665 = vmatpush.msra.mxu0 0.0
    %2666 = vmatpush.msra.mxu0 0.0
    %2667 = vmatpush.msra.mxu0 0.0
    %2668 = vmatpush.msra.mxu0 0.0
    %2669 = vmatpush.msra.mxu0 0.0
    %2670 = vmatpush.msra.mxu0 0.0
    %2671 = vmatpush.msra.mxu0 0.0
    %2672 = vmatpush.msra.mxu0 0.0
    %2673 = vmatpush.msra.mxu0 0.0
    %2674 = vmatpush.msra.mxu0 0.0
    %2675 = vmatpush.msra.mxu0 0.0
    %2676 = vmatpush.msra.mxu0 0.0
    %2677 = vmatpush.msra.mxu0 0.0
    %2678 = vmatpush.msra.mxu0 0.0
    %2679 = vmatpush.msra.mxu0 0.0
    %2680 = vmatpush.msra.mxu0 %v150
    %2681 = vmatmul.f32.gmra.mxu0 %v2654
    %v2682 = vpop.f32.mrf.mxu0
    %v2683 = vadd.f32 %v2642, %v2682
    %2684 = vmatmul.f32.gmra.mxu0 %v2657
    %v2685 = vpop.f32.mrf.mxu0
    %v2686 = vadd.f32 %v2645, %v2685
    %2687 = vmatmul.f32.gmra.mxu0 %v2660
    %v2688 = vpop.f32.mrf.mxu0
    %v2689 = vadd.f32 %v2648, %v2688
    %2690 = vmatmul.f32.gmra.mxu0 %v2663
    %v2691 = vpop.f32.mrf.mxu0
    %v2692 = vadd.f32 %v2651, %v2691
    %2693 = vdwg.mxu0
    %v2694 = vadd.f32 %v2683, %v182
    %v2695 = vadd.f32 %v2686, %v182
    %v2696 = vadd.f32 %v2689, %v182
    %v2697 = vadd.f32 %v2692, %v182
    %v2698 = vxor.u32 %v2694, 2147483648
    %v2699 = vxor.u32 %v2695, 2147483648
    %v2700 = vxor.u32 %v2696, 2147483648
    %v2701 = vxor.u32 %v2697, 2147483648
    %v2702 = vmul.f32 %v2698, 1.442695
    %v2703 = vpow.pop %v2702
    %v2704 = vmul.f32 %v2699, 1.442695
    %v2705 = vpow.pop %v2704
    %v2706 = vmul.f32 %v2700, 1.442695
    %v2707 = vpow.pop %v2706
    %v2708 = vmul.f32 %v2701, 1.442695
    %v2709 = vpow.pop %v2708
    %v2710 = vadd.f32 %v2703, 1.0
    %v2711 = vadd.f32 %v2705, 1.0
    %v2712 = vadd.f32 %v2707, 1.0
    %v2713 = vadd.f32 %v2709, 1.0
    %v2714 = vrcp.pop %v2710
    %v2715 = vmul.f32 %v2710, %v2714
    %v2716 = vsub.f32 1.0, %v2715
    %v2717 = vmul.f32 %v2714, %v2716
    %v2718 = vadd.f32 %v2714, %v2717
    %vm2719 = vweird.f32 %v2710
    %vm2720 = vweird.f32 %v2714
    %vm2721 = vmor %vm2719, %vm2720
    %v2722 = vsel %vm2721, %v2714, %v2718
    %v2723 = vand.u32 2147483647, %v2710
    %vm2724 = vcmp.eq.f32.partialorder %v2723, 8.507059e+37
    %v2725 = vand.u32 %v2710, 2147483648
    %v2726 = vor.u32 1.1754944e-38, %v2725
    %v2727 = vsel %vm2724, %v2726, %v2722
    %v2728 = vmul.f32 1.0, %v2727
    %v2729 = vrcp.pop %v2711
    %v2730 = vmul.f32 %v2711, %v2729
    %v2731 = vsub.f32 1.0, %v2730
    %v2732 = vmul.f32 %v2729, %v2731
    %v2733 = vadd.f32 %v2729, %v2732
    %vm2734 = vweird.f32 %v2711
    %vm2735 = vweird.f32 %v2729
    %vm2736 = vmor %vm2734, %vm2735
    %v2737 = vsel %vm2736, %v2729, %v2733
    %v2738 = vand.u32 2147483647, %v2711
    %vm2739 = vcmp.eq.f32.partialorder %v2738, 8.507059e+37
    %v2740 = vand.u32 %v2711, 2147483648
    %v2741 = vor.u32 1.1754944e-38, %v2740
    %v2742 = vsel %vm2739, %v2741, %v2737
    %v2743 = vmul.f32 1.0, %v2742
    %v2744 = vrcp.pop %v2712
    %v2745 = vmul.f32 %v2712, %v2744
    %v2746 = vsub.f32 1.0, %v2745
    %v2747 = vmul.f32 %v2744, %v2746
    %v2748 = vadd.f32 %v2744, %v2747
    %vm2749 = vweird.f32 %v2712
    %vm2750 = vweird.f32 %v2744
    %vm2751 = vmor %vm2749, %vm2750
    %v2752 = vsel %vm2751, %v2744, %v2748
    %v2753 = vand.u32 2147483647, %v2712
    %vm2754 = vcmp.eq.f32.partialorder %v2753, 8.507059e+37
    %v2755 = vand.u32 %v2712, 2147483648
    %v2756 = vor.u32 1.1754944e-38, %v2755
    %v2757 = vsel %vm2754, %v2756, %v2752
    %v2758 = vmul.f32 1.0, %v2757
    %v2759 = vrcp.pop %v2713
    %v2760 = vmul.f32 %v2713, %v2759
    %v2761 = vsub.f32 1.0, %v2760
    %v2762 = vmul.f32 %v2759, %v2761
    %v2763 = vadd.f32 %v2759, %v2762
    %vm2764 = vweird.f32 %v2713
    %vm2765 = vweird.f32 %v2759
    %vm2766 = vmor %vm2764, %vm2765
    %v2767 = vsel %vm2766, %v2759, %v2763
    %v2768 = vand.u32 2147483647, %v2713
    %vm2769 = vcmp.eq.f32.partialorder %v2768, 8.507059e+37
    %v2770 = vand.u32 %v2713, 2147483648
    %v2771 = vor.u32 1.1754944e-38, %v2770
    %v2772 = vsel %vm2769, %v2771, %v2767
    %v2773 = vmul.f32 1.0, %v2772
    %2774 = vmatpush.msra.mxu0 0.0
    %2775 = vmatpush.msra.mxu0 0.0
    %2776 = vmatpush.msra.mxu0 0.0
    %2777 = vmatpush.msra.mxu0 0.0
    %2778 = vmatpush.msra.mxu0 0.0
    %2779 = vmatpush.msra.mxu0 0.0
    %2780 = vmatpush.msra.mxu0 0.0
    %2781 = vmatpush.msra.mxu0 0.0
    %2782 = vmatpush.msra.mxu0 0.0
    %2783 = vmatpush.msra.mxu0 0.0
    %2784 = vmatpush.msra.mxu0 0.0
    %2785 = vmatpush.msra.mxu0 0.0
    %2786 = vmatpush.msra.mxu0 %v62
    %2787 = vmatpush.msra.mxu0 %v61
    %2788 = vmatpush.msra.mxu0 %v60
    %2789 = vmatpush.msra.mxu0 %v59
    %2790 = vmatmul.f32.gmra.mxu0 %v2613
    %v2791 = vpop.f32.mrf.mxu0
    %v2792 = vadd.f32 0.0, %v2791
    %2793 = vmatmul.f32.gmra.mxu0 %v2616
    %v2794 = vpop.f32.mrf.mxu0
    %v2795 = vadd.f32 0.0, %v2794
    %2796 = vmatmul.f32.gmra.mxu0 %v2619
    %v2797 = vpop.f32.mrf.mxu0
    %v2798 = vadd.f32 0.0, %v2797
    %2799 = vmatmul.f32.gmra.mxu0 %v2622
    %v2800 = vpop.f32.mrf.mxu0
    %v2801 = vadd.f32 0.0, %v2800
    %2802 = vdwg.mxu0
    %2803 = vmatpush.msra.mxu0 0.0
    %2804 = vmatpush.msra.mxu0 0.0
    %2805 = vmatpush.msra.mxu0 0.0
    %2806 = vmatpush.msra.mxu0 0.0
    %2807 = vmatpush.msra.mxu0 0.0
    %2808 = vmatpush.msra.mxu0 0.0
    %2809 = vmatpush.msra.mxu0 0.0
    %2810 = vmatpush.msra.mxu0 0.0
    %2811 = vmatpush.msra.mxu0 0.0
    %2812 = vmatpush.msra.mxu0 0.0
    %2813 = vmatpush.msra.mxu0 0.0
    %2814 = vmatpush.msra.mxu0 0.0
    %2815 = vmatpush.msra.mxu0 0.0
    %2816 = vmatpush.msra.mxu0 0.0
    %2817 = vmatpush.msra.mxu0 0.0
    %2818 = vmatpush.msra.mxu0 %v294
    %2819 = vmatmul.f32.gmra.mxu0 %v2654
    %v2820 = vpop.f32.mrf.mxu0
    %v2821 = vadd.f32 %v2792, %v2820
    %2822 = vmatmul.f32.gmra.mxu0 %v2657
    %v2823 = vpop.f32.mrf.mxu0
    %v2824 = vadd.f32 %v2795, %v2823
    %2825 = vmatmul.f32.gmra.mxu0 %v2660
    %v2826 = vpop.f32.mrf.mxu0
    %v2827 = vadd.f32 %v2798, %v2826
    %2828 = vmatmul.f32.gmra.mxu0 %v2663
    %v2829 = vpop.f32.mrf.mxu0
    %v2830 = vadd.f32 %v2801, %v2829
    %2831 = vdwg.mxu0
    %v2832 = vadd.f32 %v2821, %v326
    %v2833 = vadd.f32 %v2824, %v326
    %v2834 = vadd.f32 %v2827, %v326
    %v2835 = vadd.f32 %v2830, %v326
    %v2836 = vxor.u32 %v2832, 2147483648
    %v2837 = vxor.u32 %v2833, 2147483648
    %v2838 = vxor.u32 %v2834, 2147483648
    %v2839 = vxor.u32 %v2835, 2147483648
    %v2840 = vmul.f32 %v2836, 1.442695
    %v2841 = vpow.pop %v2840
    %v2842 = vmul.f32 %v2837, 1.442695
    %v2843 = vpow.pop %v2842
    %v2844 = vmul.f32 %v2838, 1.442695
    %v2845 = vpow.pop %v2844
    %v2846 = vmul.f32 %v2839, 1.442695
    %v2847 = vpow.pop %v2846
    %v2848 = vadd.f32 %v2841, 1.0
    %v2849 = vadd.f32 %v2843, 1.0
    %v2850 = vadd.f32 %v2845, 1.0
    %v2851 = vadd.f32 %v2847, 1.0
    %v2852 = vrcp.pop %v2848
    %v2853 = vmul.f32 %v2848, %v2852
    %v2854 = vsub.f32 1.0, %v2853
    %v2855 = vmul.f32 %v2852, %v2854
    %v2856 = vadd.f32 %v2852, %v2855
    %vm2857 = vweird.f32 %v2848
    %vm2858 = vweird.f32 %v2852
    %vm2859 = vmor %vm2857, %vm2858
    %v2860 = vsel %vm2859, %v2852, %v2856
    %v2861 = vand.u32 2147483647, %v2848
    %vm2862 = vcmp.eq.f32.partialorder %v2861, 8.507059e+37
    %v2863 = vand.u32 %v2848, 2147483648
    %v2864 = vor.u32 1.1754944e-38, %v2863
    %v2865 = vsel %vm2862, %v2864, %v2860
    %v2866 = vmul.f32 1.0, %v2865
    %v2867 = vrcp.pop %v2849
    %v2868 = vmul.f32 %v2849, %v2867
    %v2869 = vsub.f32 1.0, %v2868
    %v2870 = vmul.f32 %v2867, %v2869
    %v2871 = vadd.f32 %v2867, %v2870
    %vm2872 = vweird.f32 %v2849
    %vm2873 = vweird.f32 %v2867
    %vm2874 = vmor %vm2872, %vm2873
    %v2875 = vsel %vm2874, %v2867, %v2871
    %v2876 = vand.u32 2147483647, %v2849
    %vm2877 = vcmp.eq.f32.partialorder %v2876, 8.507059e+37
    %v2878 = vand.u32 %v2849, 2147483648
    %v2879 = vor.u32 1.1754944e-38, %v2878
    %v2880 = vsel %vm2877, %v2879, %v2875
    %v2881 = vmul.f32 1.0, %v2880
    %v2882 = vrcp.pop %v2850
    %v2883 = vmul.f32 %v2850, %v2882
    %v2884 = vsub.f32 1.0, %v2883
    %v2885 = vmul.f32 %v2882, %v2884
    %v2886 = vadd.f32 %v2882, %v2885
    %vm2887 = vweird.f32 %v2850
    %vm2888 = vweird.f32 %v2882
    %vm2889 = vmor %vm2887, %vm2888
    %v2890 = vsel %vm2889, %v2882, %v2886
    %v2891 = vand.u32 2147483647, %v2850
    %vm2892 = vcmp.eq.f32.partialorder %v2891, 8.507059e+37
    %v2893 = vand.u32 %v2850, 2147483648
    %v2894 = vor.u32 1.1754944e-38, %v2893
    %v2895 = vsel %vm2892, %v2894, %v2890
    %v2896 = vmul.f32 1.0, %v2895
    %v2897 = vrcp.pop %v2851
    %v2898 = vmul.f32 %v2851, %v2897
    %v2899 = vsub.f32 1.0, %v2898
    %v2900 = vmul.f32 %v2897, %v2899
    %v2901 = vadd.f32 %v2897, %v2900
    %vm2902 = vweird.f32 %v2851
    %vm2903 = vweird.f32 %v2897
    %vm2904 = vmor %vm2902, %vm2903
    %v2905 = vsel %vm2904, %v2897, %v2901
    %v2906 = vand.u32 2147483647, %v2851
    %vm2907 = vcmp.eq.f32.partialorder %v2906, 8.507059e+37
    %v2908 = vand.u32 %v2851, 2147483648
    %v2909 = vor.u32 1.1754944e-38, %v2908
    %v2910 = vsel %vm2907, %v2909, %v2905
    %v2911 = vmul.f32 1.0, %v2910
    %2912 = vmatpush.msra.mxu0 0.0
    %2913 = vmatpush.msra.mxu0 0.0
    %2914 = vmatpush.msra.mxu0 0.0
    %2915 = vmatpush.msra.mxu0 0.0
    %2916 = vmatpush.msra.mxu0 0.0
    %2917 = vmatpush.msra.mxu0 0.0
    %2918 = vmatpush.msra.mxu0 0.0
    %2919 = vmatpush.msra.mxu0 0.0
    %2920 = vmatpush.msra.mxu0 0.0
    %2921 = vmatpush.msra.mxu0 0.0
    %2922 = vmatpush.msra.mxu0 0.0
    %2923 = vmatpush.msra.mxu0 0.0
    %2924 = vmatpush.msra.mxu0 0.0
    %2925 = vmatpush.msra.mxu0 0.0
    %2926 = vmatpush.msra.mxu0 %v2604
    %2927 = vmatpush.msra.mxu0 %v2603
    %2928 = vmatmul.f32.gmra.mxu0 %v410
    %v2929 = vpop.f32.mrf.mxu0
    %v2930 = vadd.f32 0.0, %v2929
    %2931 = vmatmul.f32.gmra.mxu0 %v413
    %v2932 = vpop.f32.mrf.mxu0
    %v2933 = vadd.f32 0.0, %v2932
    %2934 = vdwg.mxu0
    %2935 = vmatpush.msra.mxu0 0.0
    %2936 = vmatpush.msra.mxu0 0.0
    %2937 = vmatpush.msra.mxu0 0.0
    %2938 = vmatpush.msra.mxu0 0.0
    %2939 = vmatpush.msra.mxu0 0.0
    %2940 = vmatpush.msra.mxu0 0.0
    %2941 = vmatpush.msra.mxu0 0.0
    %2942 = vmatpush.msra.mxu0 0.0
    %2943 = vmatpush.msra.mxu0 0.0
    %2944 = vmatpush.msra.mxu0 0.0
    %2945 = vmatpush.msra.mxu0 0.0
    %2946 = vmatpush.msra.mxu0 0.0
    %2947 = vmatpush.msra.mxu0 0.0
    %2948 = vmatpush.msra.mxu0 0.0
    %2949 = vmatpush.msra.mxu0 %v2606
    %2950 = vmatpush.msra.mxu0 %v2605
    %2951 = vmatmul.f32.gmra.mxu0 %v410
    %v2952 = vpop.f32.mrf.mxu0
    %v2953 = vadd.f32 0.0, %v2952
    %2954 = vmatmul.f32.gmra.mxu0 %v413
    %v2955 = vpop.f32.mrf.mxu0
    %v2956 = vadd.f32 0.0, %v2955
    %2957 = vdwg.mxu0
    %v2959 = vsel %vm93, %v2930, 0
    %v2962 = vsel %vm93, %v2933, 0
    %v2965 = vsel %vm93, %v2953, 0
    %v2968 = vsel %vm93, %v2956, 0
    %2970 = vmatpush.msra.mxu0 0.0
    %2971 = vmatpush.msra.mxu0 0.0
    %2972 = vmatpush.msra.mxu0 0.0
    %2973 = vmatpush.msra.mxu0 0.0
    %2974 = vmatpush.msra.mxu0 0.0
    %2975 = vmatpush.msra.mxu0 0.0
    %2976 = vmatpush.msra.mxu0 0.0
    %2977 = vmatpush.msra.mxu0 0.0
    %2978 = vmatpush.msra.mxu0 0.0
    %2979 = vmatpush.msra.mxu0 0.0
    %2980 = vmatpush.msra.mxu0 0.0
    %2981 = vmatpush.msra.mxu0 0.0
    %2982 = vmatpush.msra.mxu0 %v76
    %2983 = vmatpush.msra.mxu0 %v75
    %2984 = vmatpush.msra.mxu0 %v74
    %2985 = vmatpush.msra.mxu0 %v73
    %2986 = vmatmul.f32.gmra.mxu0 %v2959
    %v2987 = vpop.f32.mrf.mxu0
    %v2988 = vadd.f32 0.0, %v2987
    %2989 = vmatmul.f32.gmra.mxu0 %v2962
    %v2990 = vpop.f32.mrf.mxu0
    %v2991 = vadd.f32 0.0, %v2990
    %2992 = vmatmul.f32.gmra.mxu0 %v2965
    %v2993 = vpop.f32.mrf.mxu0
    %v2994 = vadd.f32 0.0, %v2993
    %2995 = vmatmul.f32.gmra.mxu0 %v2968
    %v2996 = vpop.f32.mrf.mxu0
    %v2997 = vadd.f32 0.0, %v2996
    %2998 = vdwg.mxu0
    %2999 = vmatpush.msra.mxu0 0.0
    %3000 = vmatpush.msra.mxu0 0.0
    %3001 = vmatpush.msra.mxu0 0.0
    %3002 = vmatpush.msra.mxu0 0.0
    %3003 = vmatpush.msra.mxu0 0.0
    %3004 = vmatpush.msra.mxu0 0.0
    %3005 = vmatpush.msra.mxu0 0.0
    %3006 = vmatpush.msra.mxu0 0.0
    %3007 = vmatpush.msra.mxu0 0.0
    %3008 = vmatpush.msra.mxu0 0.0
    %3009 = vmatpush.msra.mxu0 0.0
    %3010 = vmatpush.msra.mxu0 0.0
    %3011 = vmatpush.msra.mxu0 %v71
    %3012 = vmatpush.msra.mxu0 %v70
    %3013 = vmatpush.msra.mxu0 %v69
    %3014 = vmatpush.msra.mxu0 %v68
    %3015 = vmatmul.f32.gmra.mxu0 %v2613
    %v3016 = vpop.f32.mrf.mxu0
    %v3017 = vadd.f32 %v2988, %v3016
    %3018 = vmatmul.f32.gmra.mxu0 %v2616
    %v3019 = vpop.f32.mrf.mxu0
    %v3020 = vadd.f32 %v2991, %v3019
    %3021 = vmatmul.f32.gmra.mxu0 %v2619
    %v3022 = vpop.f32.mrf.mxu0
    %v3023 = vadd.f32 %v2994, %v3022
    %3024 = vmatmul.f32.gmra.mxu0 %v2622
    %v3025 = vpop.f32.mrf.mxu0
    %v3026 = vadd.f32 %v2997, %v3025
    %3027 = vdwg.mxu0
    %3028 = vmatpush.msra.mxu0 0.0
    %3029 = vmatpush.msra.mxu0 0.0
    %3030 = vmatpush.msra.mxu0 0.0
    %3031 = vmatpush.msra.mxu0 0.0
    %3032 = vmatpush.msra.mxu0 0.0
    %3033 = vmatpush.msra.mxu0 0.0
    %3034 = vmatpush.msra.mxu0 0.0
    %3035 = vmatpush.msra.mxu0 0.0
    %3036 = vmatpush.msra.mxu0 0.0
    %3037 = vmatpush.msra.mxu0 0.0
    %3038 = vmatpush.msra.mxu0 0.0
    %3039 = vmatpush.msra.mxu0 0.0
    %3040 = vmatpush.msra.mxu0 0.0
    %3041 = vmatpush.msra.mxu0 0.0
    %3042 = vmatpush.msra.mxu0 %v2933
    %3043 = vmatpush.msra.mxu0 %v2930
    %3044 = vmatmul.f32.gmra.mxu0 %v410
    %v3045 = vpop.f32.mrf.mxu0
    %v3046 = vadd.f32 0.0, %v3045
    %3047 = vmatmul.f32.gmra.mxu0 %v413
    %v3048 = vpop.f32.mrf.mxu0
    %v3049 = vadd.f32 0.0, %v3048
    %3050 = vdwg.mxu0
    %3051 = vmatpush.msra.mxu0 0.0
    %3052 = vmatpush.msra.mxu0 0.0
    %3053 = vmatpush.msra.mxu0 0.0
    %3054 = vmatpush.msra.mxu0 0.0
    %3055 = vmatpush.msra.mxu0 0.0
    %3056 = vmatpush.msra.mxu0 0.0
    %3057 = vmatpush.msra.mxu0 0.0
    %3058 = vmatpush.msra.mxu0 0.0
    %3059 = vmatpush.msra.mxu0 0.0
    %3060 = vmatpush.msra.mxu0 0.0
    %3061 = vmatpush.msra.mxu0 0.0
    %3062 = vmatpush.msra.mxu0 0.0
    %3063 = vmatpush.msra.mxu0 0.0
    %3064 = vmatpush.msra.mxu0 0.0
    %3065 = vmatpush.msra.mxu0 %v2956
    %3066 = vmatpush.msra.mxu0 %v2953
    %3067 = vmatmul.f32.gmra.mxu0 %v410
    %v3068 = vpop.f32.mrf.mxu0
    %v3069 = vadd.f32 0.0, %v3068
    %3070 = vmatmul.f32.gmra.mxu0 %v413
    %v3071 = vpop.f32.mrf.mxu0
    %v3072 = vadd.f32 0.0, %v3071
    %3073 = vdwg.mxu0
    %v3075 = vsel %vm93, %v3046, 0
    %v3078 = vsel %vm93, %v3049, 0
    %v3081 = vsel %vm93, %v3069, 0
    %v3084 = vsel %vm93, %v3072, 0
    %3086 = vmatpush.msra.mxu0 0.0
    %3087 = vmatpush.msra.mxu0 0.0
    %3088 = vmatpush.msra.mxu0 0.0
    %3089 = vmatpush.msra.mxu0 0.0
    %3090 = vmatpush.msra.mxu0 0.0
    %3091 = vmatpush.msra.mxu0 0.0
    %3092 = vmatpush.msra.mxu0 0.0
    %3093 = vmatpush.msra.mxu0 0.0
    %3094 = vmatpush.msra.mxu0 0.0
    %3095 = vmatpush.msra.mxu0 0.0
    %3096 = vmatpush.msra.mxu0 0.0
    %3097 = vmatpush.msra.mxu0 0.0
    %3098 = vmatpush.msra.mxu0 %v81
    %3099 = vmatpush.msra.mxu0 %v80
    %3100 = vmatpush.msra.mxu0 %v79
    %3101 = vmatpush.msra.mxu0 %v78
    %3102 = vmatmul.f32.gmra.mxu0 %v3075
    %v3103 = vpop.f32.mrf.mxu0
    %v3104 = vadd.f32 0.0, %v3103
    %3105 = vmatmul.f32.gmra.mxu0 %v3078
    %v3106 = vpop.f32.mrf.mxu0
    %v3107 = vadd.f32 0.0, %v3106
    %3108 = vmatmul.f32.gmra.mxu0 %v3081
    %v3109 = vpop.f32.mrf.mxu0
    %v3110 = vadd.f32 0.0, %v3109
    %3111 = vmatmul.f32.gmra.mxu0 %v3084
    %v3112 = vpop.f32.mrf.mxu0
    %v3113 = vadd.f32 0.0, %v3112
    %3114 = vdwg.mxu0
    %v3115 = vadd.f32 %v3017, %v3104
    %v3116 = vadd.f32 %v3020, %v3107
    %v3117 = vadd.f32 %v3023, %v3110
    %v3118 = vadd.f32 %v3026, %v3113
    %v3119 = vmul.f32 %v2728, %v3115
    %v3120 = vmul.f32 %v2743, %v3116
    %v3121 = vmul.f32 %v2758, %v3117
    %v3122 = vmul.f32 %v2773, %v3118
    %v3124 = vsel %vm93, %v3119, 0
    %v3127 = vsel %vm93, %v3120, 0
    %v3130 = vsel %vm93, %v3121, 0
    %v3133 = vsel %vm93, %v3122, 0
    %3135 = vmatpush.msra.mxu0 0.0
    %3136 = vmatpush.msra.mxu0 0.0
    %3137 = vmatpush.msra.mxu0 0.0
    %3138 = vmatpush.msra.mxu0 0.0
    %3139 = vmatpush.msra.mxu0 0.0
    %3140 = vmatpush.msra.mxu0 0.0
    %3141 = vmatpush.msra.mxu0 0.0
    %3142 = vmatpush.msra.mxu0 0.0
    %3143 = vmatpush.msra.mxu0 0.0
    %3144 = vmatpush.msra.mxu0 0.0
    %3145 = vmatpush.msra.mxu0 0.0
    %3146 = vmatpush.msra.mxu0 0.0
    %3147 = vmatpush.msra.mxu0 %v67
    %3148 = vmatpush.msra.mxu0 %v66
    %3149 = vmatpush.msra.mxu0 %v65
    %3150 = vmatpush.msra.mxu0 %v64
    %3151 = vmatmul.f32.gmra.mxu0 %v3124
    %v3152 = vpop.f32.mrf.mxu0
    %v3153 = vadd.f32 0.0, %v3152
    %3154 = vmatmul.f32.gmra.mxu0 %v3127
    %v3155 = vpop.f32.mrf.mxu0
    %v3156 = vadd.f32 0.0, %v3155
    %3157 = vmatmul.f32.gmra.mxu0 %v3130
    %v3158 = vpop.f32.mrf.mxu0
    %v3159 = vadd.f32 0.0, %v3158
    %3160 = vmatmul.f32.gmra.mxu0 %v3133
    %v3161 = vpop.f32.mrf.mxu0
    %v3162 = vadd.f32 0.0, %v3161
    %3163 = vdwg.mxu0
    %3164 = vmatpush.msra.mxu0 0.0
    %3165 = vmatpush.msra.mxu0 0.0
    %3166 = vmatpush.msra.mxu0 0.0
    %3167 = vmatpush.msra.mxu0 0.0
    %3168 = vmatpush.msra.mxu0 0.0
    %3169 = vmatpush.msra.mxu0 0.0
    %3170 = vmatpush.msra.mxu0 0.0
    %3171 = vmatpush.msra.mxu0 0.0
    %3172 = vmatpush.msra.mxu0 0.0
    %3173 = vmatpush.msra.mxu0 0.0
    %3174 = vmatpush.msra.mxu0 0.0
    %3175 = vmatpush.msra.mxu0 0.0
    %3176 = vmatpush.msra.mxu0 0.0
    %3177 = vmatpush.msra.mxu0 0.0
    %3178 = vmatpush.msra.mxu0 0.0
    %3179 = vmatpush.msra.mxu0 %v668
    %3180 = vmatmul.f32.gmra.mxu0 %v2654
    %v3181 = vpop.f32.mrf.mxu0
    %v3182 = vadd.f32 %v3153, %v3181
    %3183 = vmatmul.f32.gmra.mxu0 %v2657
    %v3184 = vpop.f32.mrf.mxu0
    %v3185 = vadd.f32 %v3156, %v3184
    %3186 = vmatmul.f32.gmra.mxu0 %v2660
    %v3187 = vpop.f32.mrf.mxu0
    %v3188 = vadd.f32 %v3159, %v3187
    %3189 = vmatmul.f32.gmra.mxu0 %v2663
    %v3190 = vpop.f32.mrf.mxu0
    %v3191 = vadd.f32 %v3162, %v3190
    %3192 = vdwg.mxu0
    %v3193 = vadd.f32 %v3182, %v700
    %v3194 = vadd.f32 %v3185, %v700
    %v3195 = vadd.f32 %v3188, %v700
    %v3196 = vadd.f32 %v3191, %v700
    %v3197 = vtanh.pop %v3193
    %v3198 = vtanh.pop %v3194
    %v3199 = vtanh.pop %v3195
    %v3200 = vtanh.pop %v3196
    %v3201 = vmul.f32 %v2866, %v2603
    %v3202 = vmul.f32 %v2881, %v2604
    %v3203 = vmul.f32 %v2896, %v2605
    %v3204 = vmul.f32 %v2911, %v2606
    %v3205 = vsub.f32 1.0, %v2866
    %v3206 = vsub.f32 1.0, %v2881
    %v3207 = vsub.f32 1.0, %v2896
    %v3208 = vsub.f32 1.0, %v2911
    %v3209 = vmul.f32 %v3205, %v3197
    %v3210 = vmul.f32 %v3206, %v3198
    %v3211 = vmul.f32 %v3207, %v3199
    %v3212 = vmul.f32 %v3208, %v3200
    %v3213 = vadd.f32 %v3201, %v3209
    %v3214 = vadd.f32 %v3202, %v3210
    %v3215 = vadd.f32 %v3203, %v3211
    %v3216 = vadd.f32 %v3204, %v3212
    %3217 = vst.msk [vmem:[#allocation2] sm:$0xff] %vm93, %v3213
    %3218 = vst.msk [vmem:[#allocation2 + $0x8] sm:$0xff] %vm93, %v3214
    %3219 = vst.msk [vmem:[#allocation2 + $0x10] sm:$0xff] %vm93, %v3215
    %3220 = vst.msk [vmem:[#allocation2 + $0x18] sm:$0xff] %vm93, %v3216
    %s3221 = scalar_lea.vmem [#allocation3], 128
    %3222 = vst.msk [vmem:[%s3221] sm:$0xff] %vm93, %v3213
    %3223 = vst.msk [vmem:[%s3221 + $0x8] sm:$0xff] %vm93, %v3214
    %3224 = vst.msk [vmem:[%s3221 + $0x10] sm:$0xff] %vm93, %v3215
    %3225 = vst.msk [vmem:[%s3221 + $0x18] sm:$0xff] %vm93, %v3216
    %v3226 = vld [vmem:[#allocation2] sm:$0xff]
    %v3227 = vld [vmem:[#allocation2 + $0x8] sm:$0xff]
    %v3228 = vld [vmem:[#allocation2 + $0x10] sm:$0xff]
    %v3229 = vld [vmem:[#allocation2 + $0x18] sm:$0xff]
    %s3230 = scalar_lea.vmem %s0, 160
    %v3231 = vld [vmem:[%s3230] sm:$0xff]
    %v3232 = vld [vmem:[%s3230 + $0x8] sm:$0xff]
    %v3233 = vld [vmem:[%s3230 + $0x10] sm:$0xff]
    %v3234 = vld [vmem:[%s3230 + $0x18] sm:$0xff]
    %v3236 = vsel %vm93, %v3226, 0
    %v3239 = vsel %vm93, %v3227, 0
    %v3242 = vsel %vm93, %v3228, 0
    %v3245 = vsel %vm93, %v3229, 0
    %3247 = vmatpush.msra.mxu0 0.0
    %3248 = vmatpush.msra.mxu0 0.0
    %3249 = vmatpush.msra.mxu0 0.0
    %3250 = vmatpush.msra.mxu0 0.0
    %3251 = vmatpush.msra.mxu0 0.0
    %3252 = vmatpush.msra.mxu0 0.0
    %3253 = vmatpush.msra.mxu0 0.0
    %3254 = vmatpush.msra.mxu0 0.0
    %3255 = vmatpush.msra.mxu0 0.0
    %3256 = vmatpush.msra.mxu0 0.0
    %3257 = vmatpush.msra.mxu0 0.0
    %3258 = vmatpush.msra.mxu0 0.0
    %3259 = vmatpush.msra.mxu0 %v57
    %3260 = vmatpush.msra.mxu0 %v56
    %3261 = vmatpush.msra.mxu0 %v55
    %3262 = vmatpush.msra.mxu0 %v54
    %3263 = vmatmul.f32.gmra.mxu0 %v3236
    %v3264 = vpop.f32.mrf.mxu0
    %v3265 = vadd.f32 0.0, %v3264
    %3266 = vmatmul.f32.gmra.mxu0 %v3239
    %v3267 = vpop.f32.mrf.mxu0
    %v3268 = vadd.f32 0.0, %v3267
    %3269 = vmatmul.f32.gmra.mxu0 %v3242
    %v3270 = vpop.f32.mrf.mxu0
    %v3271 = vadd.f32 0.0, %v3270
    %3272 = vmatmul.f32.gmra.mxu0 %v3245
    %v3273 = vpop.f32.mrf.mxu0
    %v3274 = vadd.f32 0.0, %v3273
    %3275 = vdwg.mxu0
    %v3277 = vsel %vm135, %v3231, 0
    %v3280 = vsel %vm135, %v3232, 0
    %v3283 = vsel %vm135, %v3233, 0
    %v3286 = vsel %vm135, %v3234, 0
    %3288 = vmatpush.msra.mxu0 0.0
    %3289 = vmatpush.msra.mxu0 0.0
    %3290 = vmatpush.msra.mxu0 0.0
    %3291 = vmatpush.msra.mxu0 0.0
    %3292 = vmatpush.msra.mxu0 0.0
    %3293 = vmatpush.msra.mxu0 0.0
    %3294 = vmatpush.msra.mxu0 0.0
    %3295 = vmatpush.msra.mxu0 0.0
    %3296 = vmatpush.msra.mxu0 0.0
    %3297 = vmatpush.msra.mxu0 0.0
    %3298 = vmatpush.msra.mxu0 0.0
    %3299 = vmatpush.msra.mxu0 0.0
    %3300 = vmatpush.msra.mxu0 0.0
    %3301 = vmatpush.msra.mxu0 0.0
    %3302 = vmatpush.msra.mxu0 0.0
    %3303 = vmatpush.msra.mxu0 %v150
    %3304 = vmatmul.f32.gmra.mxu0 %v3277
    %v3305 = vpop.f32.mrf.mxu0
    %v3306 = vadd.f32 %v3265, %v3305
    %3307 = vmatmul.f32.gmra.mxu0 %v3280
    %v3308 = vpop.f32.mrf.mxu0
    %v3309 = vadd.f32 %v3268, %v3308
    %3310 = vmatmul.f32.gmra.mxu0 %v3283
    %v3311 = vpop.f32.mrf.mxu0
    %v3312 = vadd.f32 %v3271, %v3311
    %3313 = vmatmul.f32.gmra.mxu0 %v3286
    %v3314 = vpop.f32.mrf.mxu0
    %v3315 = vadd.f32 %v3274, %v3314
    %3316 = vdwg.mxu0
    %v3317 = vadd.f32 %v3306, %v182
    %v3318 = vadd.f32 %v3309, %v182
    %v3319 = vadd.f32 %v3312, %v182
    %v3320 = vadd.f32 %v3315, %v182
    %v3321 = vxor.u32 %v3317, 2147483648
    %v3322 = vxor.u32 %v3318, 2147483648
    %v3323 = vxor.u32 %v3319, 2147483648
    %v3324 = vxor.u32 %v3320, 2147483648
    %v3325 = vmul.f32 %v3321, 1.442695
    %v3326 = vpow.pop %v3325
    %v3327 = vmul.f32 %v3322, 1.442695
    %v3328 = vpow.pop %v3327
    %v3329 = vmul.f32 %v3323, 1.442695
    %v3330 = vpow.pop %v3329
    %v3331 = vmul.f32 %v3324, 1.442695
    %v3332 = vpow.pop %v3331
    %v3333 = vadd.f32 %v3326, 1.0
    %v3334 = vadd.f32 %v3328, 1.0
    %v3335 = vadd.f32 %v3330, 1.0
    %v3336 = vadd.f32 %v3332, 1.0
    %v3337 = vrcp.pop %v3333
    %v3338 = vmul.f32 %v3333, %v3337
    %v3339 = vsub.f32 1.0, %v3338
    %v3340 = vmul.f32 %v3337, %v3339
    %v3341 = vadd.f32 %v3337, %v3340
    %vm3342 = vweird.f32 %v3333
    %vm3343 = vweird.f32 %v3337
    %vm3344 = vmor %vm3342, %vm3343
    %v3345 = vsel %vm3344, %v3337, %v3341
    %v3346 = vand.u32 2147483647, %v3333
    %vm3347 = vcmp.eq.f32.partialorder %v3346, 8.507059e+37
    %v3348 = vand.u32 %v3333, 2147483648
    %v3349 = vor.u32 1.1754944e-38, %v3348
    %v3350 = vsel %vm3347, %v3349, %v3345
    %v3351 = vmul.f32 1.0, %v3350
    %v3352 = vrcp.pop %v3334
    %v3353 = vmul.f32 %v3334, %v3352
    %v3354 = vsub.f32 1.0, %v3353
    %v3355 = vmul.f32 %v3352, %v3354
    %v3356 = vadd.f32 %v3352, %v3355
    %vm3357 = vweird.f32 %v3334
    %vm3358 = vweird.f32 %v3352
    %vm3359 = vmor %vm3357, %vm3358
    %v3360 = vsel %vm3359, %v3352, %v3356
    %v3361 = vand.u32 2147483647, %v3334
    %vm3362 = vcmp.eq.f32.partialorder %v3361, 8.507059e+37
    %v3363 = vand.u32 %v3334, 2147483648
    %v3364 = vor.u32 1.1754944e-38, %v3363
    %v3365 = vsel %vm3362, %v3364, %v3360
    %v3366 = vmul.f32 1.0, %v3365
    %v3367 = vrcp.pop %v3335
    %v3368 = vmul.f32 %v3335, %v3367
    %v3369 = vsub.f32 1.0, %v3368
    %v3370 = vmul.f32 %v3367, %v3369
    %v3371 = vadd.f32 %v3367, %v3370
    %vm3372 = vweird.f32 %v3335
    %vm3373 = vweird.f32 %v3367
    %vm3374 = vmor %vm3372, %vm3373
    %v3375 = vsel %vm3374, %v3367, %v3371
    %v3376 = vand.u32 2147483647, %v3335
    %vm3377 = vcmp.eq.f32.partialorder %v3376, 8.507059e+37
    %v3378 = vand.u32 %v3335, 2147483648
    %v3379 = vor.u32 1.1754944e-38, %v3378
    %v3380 = vsel %vm3377, %v3379, %v3375
    %v3381 = vmul.f32 1.0, %v3380
    %v3382 = vrcp.pop %v3336
    %v3383 = vmul.f32 %v3336, %v3382
    %v3384 = vsub.f32 1.0, %v3383
    %v3385 = vmul.f32 %v3382, %v3384
    %v3386 = vadd.f32 %v3382, %v3385
    %vm3387 = vweird.f32 %v3336
    %vm3388 = vweird.f32 %v3382
    %vm3389 = vmor %vm3387, %vm3388
    %v3390 = vsel %vm3389, %v3382, %v3386
    %v3391 = vand.u32 2147483647, %v3336
    %vm3392 = vcmp.eq.f32.partialorder %v3391, 8.507059e+37
    %v3393 = vand.u32 %v3336, 2147483648
    %v3394 = vor.u32 1.1754944e-38, %v3393
    %v3395 = vsel %vm3392, %v3394, %v3390
    %v3396 = vmul.f32 1.0, %v3395
    %3397 = vmatpush.msra.mxu0 0.0
    %3398 = vmatpush.msra.mxu0 0.0
    %3399 = vmatpush.msra.mxu0 0.0
    %3400 = vmatpush.msra.mxu0 0.0
    %3401 = vmatpush.msra.mxu0 0.0
    %3402 = vmatpush.msra.mxu0 0.0
    %3403 = vmatpush.msra.mxu0 0.0
    %3404 = vmatpush.msra.mxu0 0.0
    %3405 = vmatpush.msra.mxu0 0.0
    %3406 = vmatpush.msra.mxu0 0.0
    %3407 = vmatpush.msra.mxu0 0.0
    %3408 = vmatpush.msra.mxu0 0.0
    %3409 = vmatpush.msra.mxu0 %v62
    %3410 = vmatpush.msra.mxu0 %v61
    %3411 = vmatpush.msra.mxu0 %v60
    %3412 = vmatpush.msra.mxu0 %v59
    %3413 = vmatmul.f32.gmra.mxu0 %v3236
    %v3414 = vpop.f32.mrf.mxu0
    %v3415 = vadd.f32 0.0, %v3414
    %3416 = vmatmul.f32.gmra.mxu0 %v3239
    %v3417 = vpop.f32.mrf.mxu0
    %v3418 = vadd.f32 0.0, %v3417
    %3419 = vmatmul.f32.gmra.mxu0 %v3242
    %v3420 = vpop.f32.mrf.mxu0
    %v3421 = vadd.f32 0.0, %v3420
    %3422 = vmatmul.f32.gmra.mxu0 %v3245
    %v3423 = vpop.f32.mrf.mxu0
    %v3424 = vadd.f32 0.0, %v3423
    %3425 = vdwg.mxu0
    %3426 = vmatpush.msra.mxu0 0.0
    %3427 = vmatpush.msra.mxu0 0.0
    %3428 = vmatpush.msra.mxu0 0.0
    %3429 = vmatpush.msra.mxu0 0.0
    %3430 = vmatpush.msra.mxu0 0.0
    %3431 = vmatpush.msra.mxu0 0.0
    %3432 = vmatpush.msra.mxu0 0.0
    %3433 = vmatpush.msra.mxu0 0.0
    %3434 = vmatpush.msra.mxu0 0.0
    %3435 = vmatpush.msra.mxu0 0.0
    %3436 = vmatpush.msra.mxu0 0.0
    %3437 = vmatpush.msra.mxu0 0.0
    %3438 = vmatpush.msra.mxu0 0.0
    %3439 = vmatpush.msra.mxu0 0.0
    %3440 = vmatpush.msra.mxu0 0.0
    %3441 = vmatpush.msra.mxu0 %v294
    %3442 = vmatmul.f32.gmra.mxu0 %v3277
    %v3443 = vpop.f32.mrf.mxu0
    %v3444 = vadd.f32 %v3415, %v3443
    %3445 = vmatmul.f32.gmra.mxu0 %v3280
    %v3446 = vpop.f32.mrf.mxu0
    %v3447 = vadd.f32 %v3418, %v3446
    %3448 = vmatmul.f32.gmra.mxu0 %v3283
    %v3449 = vpop.f32.mrf.mxu0
    %v3450 = vadd.f32 %v3421, %v3449
    %3451 = vmatmul.f32.gmra.mxu0 %v3286
    %v3452 = vpop.f32.mrf.mxu0
    %v3453 = vadd.f32 %v3424, %v3452
    %3454 = vdwg.mxu0
    %v3455 = vadd.f32 %v3444, %v326
    %v3456 = vadd.f32 %v3447, %v326
    %v3457 = vadd.f32 %v3450, %v326
    %v3458 = vadd.f32 %v3453, %v326
    %v3459 = vxor.u32 %v3455, 2147483648
    %v3460 = vxor.u32 %v3456, 2147483648
    %v3461 = vxor.u32 %v3457, 2147483648
    %v3462 = vxor.u32 %v3458, 2147483648
    %v3463 = vmul.f32 %v3459, 1.442695
    %v3464 = vpow.pop %v3463
    %v3465 = vmul.f32 %v3460, 1.442695
    %v3466 = vpow.pop %v3465
    %v3467 = vmul.f32 %v3461, 1.442695
    %v3468 = vpow.pop %v3467
    %v3469 = vmul.f32 %v3462, 1.442695
    %v3470 = vpow.pop %v3469
    %v3471 = vadd.f32 %v3464, 1.0
    %v3472 = vadd.f32 %v3466, 1.0
    %v3473 = vadd.f32 %v3468, 1.0
    %v3474 = vadd.f32 %v3470, 1.0
    %v3475 = vrcp.pop %v3471
    %v3476 = vmul.f32 %v3471, %v3475
    %v3477 = vsub.f32 1.0, %v3476
    %v3478 = vmul.f32 %v3475, %v3477
    %v3479 = vadd.f32 %v3475, %v3478
    %vm3480 = vweird.f32 %v3471
    %vm3481 = vweird.f32 %v3475
    %vm3482 = vmor %vm3480, %vm3481
    %v3483 = vsel %vm3482, %v3475, %v3479
    %v3484 = vand.u32 2147483647, %v3471
    %vm3485 = vcmp.eq.f32.partialorder %v3484, 8.507059e+37
    %v3486 = vand.u32 %v3471, 2147483648
    %v3487 = vor.u32 1.1754944e-38, %v3486
    %v3488 = vsel %vm3485, %v3487, %v3483
    %v3489 = vmul.f32 1.0, %v3488
    %v3490 = vrcp.pop %v3472
    %v3491 = vmul.f32 %v3472, %v3490
    %v3492 = vsub.f32 1.0, %v3491
    %v3493 = vmul.f32 %v3490, %v3492
    %v3494 = vadd.f32 %v3490, %v3493
    %vm3495 = vweird.f32 %v3472
    %vm3496 = vweird.f32 %v3490
    %vm3497 = vmor %vm3495, %vm3496
    %v3498 = vsel %vm3497, %v3490, %v3494
    %v3499 = vand.u32 2147483647, %v3472
    %vm3500 = vcmp.eq.f32.partialorder %v3499, 8.507059e+37
    %v3501 = vand.u32 %v3472, 2147483648
    %v3502 = vor.u32 1.1754944e-38, %v3501
    %v3503 = vsel %vm3500, %v3502, %v3498
    %v3504 = vmul.f32 1.0, %v3503
    %v3505 = vrcp.pop %v3473
    %v3506 = vmul.f32 %v3473, %v3505
    %v3507 = vsub.f32 1.0, %v3506
    %v3508 = vmul.f32 %v3505, %v3507
    %v3509 = vadd.f32 %v3505, %v3508
    %vm3510 = vweird.f32 %v3473
    %vm3511 = vweird.f32 %v3505
    %vm3512 = vmor %vm3510, %vm3511
    %v3513 = vsel %vm3512, %v3505, %v3509
    %v3514 = vand.u32 2147483647, %v3473
    %vm3515 = vcmp.eq.f32.partialorder %v3514, 8.507059e+37
    %v3516 = vand.u32 %v3473, 2147483648
    %v3517 = vor.u32 1.1754944e-38, %v3516
    %v3518 = vsel %vm3515, %v3517, %v3513
    %v3519 = vmul.f32 1.0, %v3518
    %v3520 = vrcp.pop %v3474
    %v3521 = vmul.f32 %v3474, %v3520
    %v3522 = vsub.f32 1.0, %v3521
    %v3523 = vmul.f32 %v3520, %v3522
    %v3524 = vadd.f32 %v3520, %v3523
    %vm3525 = vweird.f32 %v3474
    %vm3526 = vweird.f32 %v3520
    %vm3527 = vmor %vm3525, %vm3526
    %v3528 = vsel %vm3527, %v3520, %v3524
    %v3529 = vand.u32 2147483647, %v3474
    %vm3530 = vcmp.eq.f32.partialorder %v3529, 8.507059e+37
    %v3531 = vand.u32 %v3474, 2147483648
    %v3532 = vor.u32 1.1754944e-38, %v3531
    %v3533 = vsel %vm3530, %v3532, %v3528
    %v3534 = vmul.f32 1.0, %v3533
    %3535 = vmatpush.msra.mxu0 0.0
    %3536 = vmatpush.msra.mxu0 0.0
    %3537 = vmatpush.msra.mxu0 0.0
    %3538 = vmatpush.msra.mxu0 0.0
    %3539 = vmatpush.msra.mxu0 0.0
    %3540 = vmatpush.msra.mxu0 0.0
    %3541 = vmatpush.msra.mxu0 0.0
    %3542 = vmatpush.msra.mxu0 0.0
    %3543 = vmatpush.msra.mxu0 0.0
    %3544 = vmatpush.msra.mxu0 0.0
    %3545 = vmatpush.msra.mxu0 0.0
    %3546 = vmatpush.msra.mxu0 0.0
    %3547 = vmatpush.msra.mxu0 0.0
    %3548 = vmatpush.msra.mxu0 0.0
    %3549 = vmatpush.msra.mxu0 %v3227
    %3550 = vmatpush.msra.mxu0 %v3226
    %3551 = vmatmul.f32.gmra.mxu0 %v410
    %v3552 = vpop.f32.mrf.mxu0
    %v3553 = vadd.f32 0.0, %v3552
    %3554 = vmatmul.f32.gmra.mxu0 %v413
    %v3555 = vpop.f32.mrf.mxu0
    %v3556 = vadd.f32 0.0, %v3555
    %3557 = vdwg.mxu0
    %3558 = vmatpush.msra.mxu0 0.0
    %3559 = vmatpush.msra.mxu0 0.0
    %3560 = vmatpush.msra.mxu0 0.0
    %3561 = vmatpush.msra.mxu0 0.0
    %3562 = vmatpush.msra.mxu0 0.0
    %3563 = vmatpush.msra.mxu0 0.0
    %3564 = vmatpush.msra.mxu0 0.0
    %3565 = vmatpush.msra.mxu0 0.0
    %3566 = vmatpush.msra.mxu0 0.0
    %3567 = vmatpush.msra.mxu0 0.0
    %3568 = vmatpush.msra.mxu0 0.0
    %3569 = vmatpush.msra.mxu0 0.0
    %3570 = vmatpush.msra.mxu0 0.0
    %3571 = vmatpush.msra.mxu0 0.0
    %3572 = vmatpush.msra.mxu0 %v3229
    %3573 = vmatpush.msra.mxu0 %v3228
    %3574 = vmatmul.f32.gmra.mxu0 %v410
    %v3575 = vpop.f32.mrf.mxu0
    %v3576 = vadd.f32 0.0, %v3575
    %3577 = vmatmul.f32.gmra.mxu0 %v413
    %v3578 = vpop.f32.mrf.mxu0
    %v3579 = vadd.f32 0.0, %v3578
    %3580 = vdwg.mxu0
    %v3582 = vsel %vm93, %v3553, 0
    %v3585 = vsel %vm93, %v3556, 0
    %v3588 = vsel %vm93, %v3576, 0
    %v3591 = vsel %vm93, %v3579, 0
    %3593 = vmatpush.msra.mxu0 0.0
    %3594 = vmatpush.msra.mxu0 0.0
    %3595 = vmatpush.msra.mxu0 0.0
    %3596 = vmatpush.msra.mxu0 0.0
    %3597 = vmatpush.msra.mxu0 0.0
    %3598 = vmatpush.msra.mxu0 0.0
    %3599 = vmatpush.msra.mxu0 0.0
    %3600 = vmatpush.msra.mxu0 0.0
    %3601 = vmatpush.msra.mxu0 0.0
    %3602 = vmatpush.msra.mxu0 0.0
    %3603 = vmatpush.msra.mxu0 0.0
    %3604 = vmatpush.msra.mxu0 0.0
    %3605 = vmatpush.msra.mxu0 %v76
    %3606 = vmatpush.msra.mxu0 %v75
    %3607 = vmatpush.msra.mxu0 %v74
    %3608 = vmatpush.msra.mxu0 %v73
    %3609 = vmatmul.f32.gmra.mxu0 %v3582
    %v3610 = vpop.f32.mrf.mxu0
    %v3611 = vadd.f32 0.0, %v3610
    %3612 = vmatmul.f32.gmra.mxu0 %v3585
    %v3613 = vpop.f32.mrf.mxu0
    %v3614 = vadd.f32 0.0, %v3613
    %3615 = vmatmul.f32.gmra.mxu0 %v3588
    %v3616 = vpop.f32.mrf.mxu0
    %v3617 = vadd.f32 0.0, %v3616
    %3618 = vmatmul.f32.gmra.mxu0 %v3591
    %v3619 = vpop.f32.mrf.mxu0
    %v3620 = vadd.f32 0.0, %v3619
    %3621 = vdwg.mxu0
    %3622 = vmatpush.msra.mxu0 0.0
    %3623 = vmatpush.msra.mxu0 0.0
    %3624 = vmatpush.msra.mxu0 0.0
    %3625 = vmatpush.msra.mxu0 0.0
    %3626 = vmatpush.msra.mxu0 0.0
    %3627 = vmatpush.msra.mxu0 0.0
    %3628 = vmatpush.msra.mxu0 0.0
    %3629 = vmatpush.msra.mxu0 0.0
    %3630 = vmatpush.msra.mxu0 0.0
    %3631 = vmatpush.msra.mxu0 0.0
    %3632 = vmatpush.msra.mxu0 0.0
    %3633 = vmatpush.msra.mxu0 0.0
    %3634 = vmatpush.msra.mxu0 %v71
    %3635 = vmatpush.msra.mxu0 %v70
    %3636 = vmatpush.msra.mxu0 %v69
    %3637 = vmatpush.msra.mxu0 %v68
    %3638 = vmatmul.f32.gmra.mxu0 %v3236
    %v3639 = vpop.f32.mrf.mxu0
    %v3640 = vadd.f32 %v3611, %v3639
    %3641 = vmatmul.f32.gmra.mxu0 %v3239
    %v3642 = vpop.f32.mrf.mxu0
    %v3643 = vadd.f32 %v3614, %v3642
    %3644 = vmatmul.f32.gmra.mxu0 %v3242
    %v3645 = vpop.f32.mrf.mxu0
    %v3646 = vadd.f32 %v3617, %v3645
    %3647 = vmatmul.f32.gmra.mxu0 %v3245
    %v3648 = vpop.f32.mrf.mxu0
    %v3649 = vadd.f32 %v3620, %v3648
    %3650 = vdwg.mxu0
    %3651 = vmatpush.msra.mxu0 0.0
    %3652 = vmatpush.msra.mxu0 0.0
    %3653 = vmatpush.msra.mxu0 0.0
    %3654 = vmatpush.msra.mxu0 0.0
    %3655 = vmatpush.msra.mxu0 0.0
    %3656 = vmatpush.msra.mxu0 0.0
    %3657 = vmatpush.msra.mxu0 0.0
    %3658 = vmatpush.msra.mxu0 0.0
    %3659 = vmatpush.msra.mxu0 0.0
    %3660 = vmatpush.msra.mxu0 0.0
    %3661 = vmatpush.msra.mxu0 0.0
    %3662 = vmatpush.msra.mxu0 0.0
    %3663 = vmatpush.msra.mxu0 0.0
    %3664 = vmatpush.msra.mxu0 0.0
    %3665 = vmatpush.msra.mxu0 %v3556
    %3666 = vmatpush.msra.mxu0 %v3553
    %3667 = vmatmul.f32.gmra.mxu0 %v410
    %v3668 = vpop.f32.mrf.mxu0
    %v3669 = vadd.f32 0.0, %v3668
    %3670 = vmatmul.f32.gmra.mxu0 %v413
    %v3671 = vpop.f32.mrf.mxu0
    %v3672 = vadd.f32 0.0, %v3671
    %3673 = vdwg.mxu0
    %3674 = vmatpush.msra.mxu0 0.0
    %3675 = vmatpush.msra.mxu0 0.0
    %3676 = vmatpush.msra.mxu0 0.0
    %3677 = vmatpush.msra.mxu0 0.0
    %3678 = vmatpush.msra.mxu0 0.0
    %3679 = vmatpush.msra.mxu0 0.0
    %3680 = vmatpush.msra.mxu0 0.0
    %3681 = vmatpush.msra.mxu0 0.0
    %3682 = vmatpush.msra.mxu0 0.0
    %3683 = vmatpush.msra.mxu0 0.0
    %3684 = vmatpush.msra.mxu0 0.0
    %3685 = vmatpush.msra.mxu0 0.0
    %3686 = vmatpush.msra.mxu0 0.0
    %3687 = vmatpush.msra.mxu0 0.0
    %3688 = vmatpush.msra.mxu0 %v3579
    %3689 = vmatpush.msra.mxu0 %v3576
    %3690 = vmatmul.f32.gmra.mxu0 %v410
    %v3691 = vpop.f32.mrf.mxu0
    %v3692 = vadd.f32 0.0, %v3691
    %3693 = vmatmul.f32.gmra.mxu0 %v413
    %v3694 = vpop.f32.mrf.mxu0
    %v3695 = vadd.f32 0.0, %v3694
    %3696 = vdwg.mxu0
    %v3698 = vsel %vm93, %v3669, 0
    %v3701 = vsel %vm93, %v3672, 0
    %v3704 = vsel %vm93, %v3692, 0
    %v3707 = vsel %vm93, %v3695, 0
    %3709 = vmatpush.msra.mxu0 0.0
    %3710 = vmatpush.msra.mxu0 0.0
    %3711 = vmatpush.msra.mxu0 0.0
    %3712 = vmatpush.msra.mxu0 0.0
    %3713 = vmatpush.msra.mxu0 0.0
    %3714 = vmatpush.msra.mxu0 0.0
    %3715 = vmatpush.msra.mxu0 0.0
    %3716 = vmatpush.msra.mxu0 0.0
    %3717 = vmatpush.msra.mxu0 0.0
    %3718 = vmatpush.msra.mxu0 0.0
    %3719 = vmatpush.msra.mxu0 0.0
    %3720 = vmatpush.msra.mxu0 0.0
    %3721 = vmatpush.msra.mxu0 %v81
    %3722 = vmatpush.msra.mxu0 %v80
    %3723 = vmatpush.msra.mxu0 %v79
    %3724 = vmatpush.msra.mxu0 %v78
    %3725 = vmatmul.f32.gmra.mxu0 %v3698
    %v3726 = vpop.f32.mrf.mxu0
    %v3727 = vadd.f32 0.0, %v3726
    %3728 = vmatmul.f32.gmra.mxu0 %v3701
    %v3729 = vpop.f32.mrf.mxu0
    %v3730 = vadd.f32 0.0, %v3729
    %3731 = vmatmul.f32.gmra.mxu0 %v3704
    %v3732 = vpop.f32.mrf.mxu0
    %v3733 = vadd.f32 0.0, %v3732
    %3734 = vmatmul.f32.gmra.mxu0 %v3707
    %v3735 = vpop.f32.mrf.mxu0
    %v3736 = vadd.f32 0.0, %v3735
    %3737 = vdwg.mxu0
    %v3738 = vadd.f32 %v3640, %v3727
    %v3739 = vadd.f32 %v3643, %v3730
    %v3740 = vadd.f32 %v3646, %v3733
    %v3741 = vadd.f32 %v3649, %v3736
    %v3742 = vmul.f32 %v3351, %v3738
    %v3743 = vmul.f32 %v3366, %v3739
    %v3744 = vmul.f32 %v3381, %v3740
    %v3745 = vmul.f32 %v3396, %v3741
    %v3747 = vsel %vm93, %v3742, 0
    %v3750 = vsel %vm93, %v3743, 0
    %v3753 = vsel %vm93, %v3744, 0
    %v3756 = vsel %vm93, %v3745, 0
    %3758 = vmatpush.msra.mxu0 0.0
    %3759 = vmatpush.msra.mxu0 0.0
    %3760 = vmatpush.msra.mxu0 0.0
    %3761 = vmatpush.msra.mxu0 0.0
    %3762 = vmatpush.msra.mxu0 0.0
    %3763 = vmatpush.msra.mxu0 0.0
    %3764 = vmatpush.msra.mxu0 0.0
    %3765 = vmatpush.msra.mxu0 0.0
    %3766 = vmatpush.msra.mxu0 0.0
    %3767 = vmatpush.msra.mxu0 0.0
    %3768 = vmatpush.msra.mxu0 0.0
    %3769 = vmatpush.msra.mxu0 0.0
    %3770 = vmatpush.msra.mxu0 %v67
    %3771 = vmatpush.msra.mxu0 %v66
    %3772 = vmatpush.msra.mxu0 %v65
    %3773 = vmatpush.msra.mxu0 %v64
    %3774 = vmatmul.f32.gmra.mxu0 %v3747
    %v3775 = vpop.f32.mrf.mxu0
    %v3776 = vadd.f32 0.0, %v3775
    %3777 = vmatmul.f32.gmra.mxu0 %v3750
    %v3778 = vpop.f32.mrf.mxu0
    %v3779 = vadd.f32 0.0, %v3778
    %3780 = vmatmul.f32.gmra.mxu0 %v3753
    %v3781 = vpop.f32.mrf.mxu0
    %v3782 = vadd.f32 0.0, %v3781
    %3783 = vmatmul.f32.gmra.mxu0 %v3756
    %v3784 = vpop.f32.mrf.mxu0
    %v3785 = vadd.f32 0.0, %v3784
    %3786 = vdwg.mxu0
    %3787 = vmatpush.msra.mxu0 0.0
    %3788 = vmatpush.msra.mxu0 0.0
    %3789 = vmatpush.msra.mxu0 0.0
    %3790 = vmatpush.msra.mxu0 0.0
    %3791 = vmatpush.msra.mxu0 0.0
    %3792 = vmatpush.msra.mxu0 0.0
    %3793 = vmatpush.msra.mxu0 0.0
    %3794 = vmatpush.msra.mxu0 0.0
    %3795 = vmatpush.msra.mxu0 0.0
    %3796 = vmatpush.msra.mxu0 0.0
    %3797 = vmatpush.msra.mxu0 0.0
    %3798 = vmatpush.msra.mxu0 0.0
    %3799 = vmatpush.msra.mxu0 0.0
    %3800 = vmatpush.msra.mxu0 0.0
    %3801 = vmatpush.msra.mxu0 0.0
    %3802 = vmatpush.msra.mxu0 %v668
    %3803 = vmatmul.f32.gmra.mxu0 %v3277
    %v3804 = vpop.f32.mrf.mxu0
    %v3805 = vadd.f32 %v3776, %v3804
    %3806 = vmatmul.f32.gmra.mxu0 %v3280
    %v3807 = vpop.f32.mrf.mxu0
    %v3808 = vadd.f32 %v3779, %v3807
    %3809 = vmatmul.f32.gmra.mxu0 %v3283
    %v3810 = vpop.f32.mrf.mxu0
    %v3811 = vadd.f32 %v3782, %v3810
    %3812 = vmatmul.f32.gmra.mxu0 %v3286
    %v3813 = vpop.f32.mrf.mxu0
    %v3814 = vadd.f32 %v3785, %v3813
    %3815 = vdwg.mxu0
    %v3816 = vadd.f32 %v3805, %v700
    %v3817 = vadd.f32 %v3808, %v700
    %v3818 = vadd.f32 %v3811, %v700
    %v3819 = vadd.f32 %v3814, %v700
    %v3820 = vtanh.pop %v3816
    %v3821 = vtanh.pop %v3817
    %v3822 = vtanh.pop %v3818
    %v3823 = vtanh.pop %v3819
    %v3824 = vmul.f32 %v3489, %v3226
    %v3825 = vmul.f32 %v3504, %v3227
    %v3826 = vmul.f32 %v3519, %v3228
    %v3827 = vmul.f32 %v3534, %v3229
    %v3828 = vsub.f32 1.0, %v3489
    %v3829 = vsub.f32 1.0, %v3504
    %v3830 = vsub.f32 1.0, %v3519
    %v3831 = vsub.f32 1.0, %v3534
    %v3832 = vmul.f32 %v3828, %v3820
    %v3833 = vmul.f32 %v3829, %v3821
    %v3834 = vmul.f32 %v3830, %v3822
    %v3835 = vmul.f32 %v3831, %v3823
    %v3836 = vadd.f32 %v3824, %v3832
    %v3837 = vadd.f32 %v3825, %v3833
    %v3838 = vadd.f32 %v3826, %v3834
    %v3839 = vadd.f32 %v3827, %v3835
    %3840 = vst.msk [vmem:[#allocation2] sm:$0xff] %vm93, %v3836
    %3841 = vst.msk [vmem:[#allocation2 + $0x8] sm:$0xff] %vm93, %v3837
    %3842 = vst.msk [vmem:[#allocation2 + $0x10] sm:$0xff] %vm93, %v3838
    %3843 = vst.msk [vmem:[#allocation2 + $0x18] sm:$0xff] %vm93, %v3839
    %s3844 = scalar_lea.vmem [#allocation3], 160
    %3845 = vst.msk [vmem:[%s3844] sm:$0xff] %vm93, %v3836
    %3846 = vst.msk [vmem:[%s3844 + $0x8] sm:$0xff] %vm93, %v3837
    %3847 = vst.msk [vmem:[%s3844 + $0x10] sm:$0xff] %vm93, %v3838
    %3848 = vst.msk [vmem:[%s3844 + $0x18] sm:$0xff] %vm93, %v3839
    %v3849 = vld [vmem:[#allocation2] sm:$0xff]
    %v3850 = vld [vmem:[#allocation2 + $0x8] sm:$0xff]
    %v3851 = vld [vmem:[#allocation2 + $0x10] sm:$0xff]
    %v3852 = vld [vmem:[#allocation2 + $0x18] sm:$0xff]
    %s3853 = scalar_lea.vmem %s0, 192
    %v3854 = vld [vmem:[%s3853] sm:$0xff]
    %v3855 = vld [vmem:[%s3853 + $0x8] sm:$0xff]
    %v3856 = vld [vmem:[%s3853 + $0x10] sm:$0xff]
    %v3857 = vld [vmem:[%s3853 + $0x18] sm:$0xff]
    %v3859 = vsel %vm93, %v3849, 0
    %v3862 = vsel %vm93, %v3850, 0
    %v3865 = vsel %vm93, %v3851, 0
    %v3868 = vsel %vm93, %v3852, 0
    %3870 = vmatpush.msra.mxu0 0.0
    %3871 = vmatpush.msra.mxu0 0.0
    %3872 = vmatpush.msra.mxu0 0.0
    %3873 = vmatpush.msra.mxu0 0.0
    %3874 = vmatpush.msra.mxu0 0.0
    %3875 = vmatpush.msra.mxu0 0.0
    %3876 = vmatpush.msra.mxu0 0.0
    %3877 = vmatpush.msra.mxu0 0.0
    %3878 = vmatpush.msra.mxu0 0.0
    %3879 = vmatpush.msra.mxu0 0.0
    %3880 = vmatpush.msra.mxu0 0.0
    %3881 = vmatpush.msra.mxu0 0.0
    %3882 = vmatpush.msra.mxu0 %v57
    %3883 = vmatpush.msra.mxu0 %v56
    %3884 = vmatpush.msra.mxu0 %v55
    %3885 = vmatpush.msra.mxu0 %v54
    %3886 = vmatmul.f32.gmra.mxu0 %v3859
    %v3887 = vpop.f32.mrf.mxu0
    %v3888 = vadd.f32 0.0, %v3887
    %3889 = vmatmul.f32.gmra.mxu0 %v3862
    %v3890 = vpop.f32.mrf.mxu0
    %v3891 = vadd.f32 0.0, %v3890
    %3892 = vmatmul.f32.gmra.mxu0 %v3865
    %v3893 = vpop.f32.mrf.mxu0
    %v3894 = vadd.f32 0.0, %v3893
    %3895 = vmatmul.f32.gmra.mxu0 %v3868
    %v3896 = vpop.f32.mrf.mxu0
    %v3897 = vadd.f32 0.0, %v3896
    %3898 = vdwg.mxu0
    %v3900 = vsel %vm135, %v3854, 0
    %v3903 = vsel %vm135, %v3855, 0
    %v3906 = vsel %vm135, %v3856, 0
    %v3909 = vsel %vm135, %v3857, 0
    %3911 = vmatpush.msra.mxu0 0.0
    %3912 = vmatpush.msra.mxu0 0.0
    %3913 = vmatpush.msra.mxu0 0.0
    %3914 = vmatpush.msra.mxu0 0.0
    %3915 = vmatpush.msra.mxu0 0.0
    %3916 = vmatpush.msra.mxu0 0.0
    %3917 = vmatpush.msra.mxu0 0.0
    %3918 = vmatpush.msra.mxu0 0.0
    %3919 = vmatpush.msra.mxu0 0.0
    %3920 = vmatpush.msra.mxu0 0.0
    %3921 = vmatpush.msra.mxu0 0.0
    %3922 = vmatpush.msra.mxu0 0.0
    %3923 = vmatpush.msra.mxu0 0.0
    %3924 = vmatpush.msra.mxu0 0.0
    %3925 = vmatpush.msra.mxu0 0.0
    %3926 = vmatpush.msra.mxu0 %v150
    %3927 = vmatmul.f32.gmra.mxu0 %v3900
    %v3928 = vpop.f32.mrf.mxu0
    %v3929 = vadd.f32 %v3888, %v3928
    %3930 = vmatmul.f32.gmra.mxu0 %v3903
    %v3931 = vpop.f32.mrf.mxu0
    %v3932 = vadd.f32 %v3891, %v3931
    %3933 = vmatmul.f32.gmra.mxu0 %v3906
    %v3934 = vpop.f32.mrf.mxu0
    %v3935 = vadd.f32 %v3894, %v3934
    %3936 = vmatmul.f32.gmra.mxu0 %v3909
    %v3937 = vpop.f32.mrf.mxu0
    %v3938 = vadd.f32 %v3897, %v3937
    %3939 = vdwg.mxu0
    %v3940 = vadd.f32 %v3929, %v182
    %v3941 = vadd.f32 %v3932, %v182
    %v3942 = vadd.f32 %v3935, %v182
    %v3943 = vadd.f32 %v3938, %v182
    %v3944 = vxor.u32 %v3940, 2147483648
    %v3945 = vxor.u32 %v3941, 2147483648
    %v3946 = vxor.u32 %v3942, 2147483648
    %v3947 = vxor.u32 %v3943, 2147483648
    %v3948 = vmul.f32 %v3944, 1.442695
    %v3949 = vpow.pop %v3948
    %v3950 = vmul.f32 %v3945, 1.442695
    %v3951 = vpow.pop %v3950
    %v3952 = vmul.f32 %v3946, 1.442695
    %v3953 = vpow.pop %v3952
    %v3954 = vmul.f32 %v3947, 1.442695
    %v3955 = vpow.pop %v3954
    %v3956 = vadd.f32 %v3949, 1.0
    %v3957 = vadd.f32 %v3951, 1.0
    %v3958 = vadd.f32 %v3953, 1.0
    %v3959 = vadd.f32 %v3955, 1.0
    %v3960 = vrcp.pop %v3956
    %v3961 = vmul.f32 %v3956, %v3960
    %v3962 = vsub.f32 1.0, %v3961
    %v3963 = vmul.f32 %v3960, %v3962
    %v3964 = vadd.f32 %v3960, %v3963
    %vm3965 = vweird.f32 %v3956
    %vm3966 = vweird.f32 %v3960
    %vm3967 = vmor %vm3965, %vm3966
    %v3968 = vsel %vm3967, %v3960, %v3964
    %v3969 = vand.u32 2147483647, %v3956
    %vm3970 = vcmp.eq.f32.partialorder %v3969, 8.507059e+37
    %v3971 = vand.u32 %v3956, 2147483648
    %v3972 = vor.u32 1.1754944e-38, %v3971
    %v3973 = vsel %vm3970, %v3972, %v3968
    %v3974 = vmul.f32 1.0, %v3973
    %v3975 = vrcp.pop %v3957
    %v3976 = vmul.f32 %v3957, %v3975
    %v3977 = vsub.f32 1.0, %v3976
    %v3978 = vmul.f32 %v3975, %v3977
    %v3979 = vadd.f32 %v3975, %v3978
    %vm3980 = vweird.f32 %v3957
    %vm3981 = vweird.f32 %v3975
    %vm3982 = vmor %vm3980, %vm3981
    %v3983 = vsel %vm3982, %v3975, %v3979
    %v3984 = vand.u32 2147483647, %v3957
    %vm3985 = vcmp.eq.f32.partialorder %v3984, 8.507059e+37
    %v3986 = vand.u32 %v3957, 2147483648
    %v3987 = vor.u32 1.1754944e-38, %v3986
    %v3988 = vsel %vm3985, %v3987, %v3983
    %v3989 = vmul.f32 1.0, %v3988
    %v3990 = vrcp.pop %v3958
    %v3991 = vmul.f32 %v3958, %v3990
    %v3992 = vsub.f32 1.0, %v3991
    %v3993 = vmul.f32 %v3990, %v3992
    %v3994 = vadd.f32 %v3990, %v3993
    %vm3995 = vweird.f32 %v3958
    %vm3996 = vweird.f32 %v3990
    %vm3997 = vmor %vm3995, %vm3996
    %v3998 = vsel %vm3997, %v3990, %v3994
    %v3999 = vand.u32 2147483647, %v3958
    %vm4000 = vcmp.eq.f32.partialorder %v3999, 8.507059e+37
    %v4001 = vand.u32 %v3958, 2147483648
    %v4002 = vor.u32 1.1754944e-38, %v4001
    %v4003 = vsel %vm4000, %v4002, %v3998
    %v4004 = vmul.f32 1.0, %v4003
    %v4005 = vrcp.pop %v3959
    %v4006 = vmul.f32 %v3959, %v4005
    %v4007 = vsub.f32 1.0, %v4006
    %v4008 = vmul.f32 %v4005, %v4007
    %v4009 = vadd.f32 %v4005, %v4008
    %vm4010 = vweird.f32 %v3959
    %vm4011 = vweird.f32 %v4005
    %vm4012 = vmor %vm4010, %vm4011
    %v4013 = vsel %vm4012, %v4005, %v4009
    %v4014 = vand.u32 2147483647, %v3959
    %vm4015 = vcmp.eq.f32.partialorder %v4014, 8.507059e+37
    %v4016 = vand.u32 %v3959, 2147483648
    %v4017 = vor.u32 1.1754944e-38, %v4016
    %v4018 = vsel %vm4015, %v4017, %v4013
    %v4019 = vmul.f32 1.0, %v4018
    %4020 = vmatpush.msra.mxu0 0.0
    %4021 = vmatpush.msra.mxu0 0.0
    %4022 = vmatpush.msra.mxu0 0.0
    %4023 = vmatpush.msra.mxu0 0.0
    %4024 = vmatpush.msra.mxu0 0.0
    %4025 = vmatpush.msra.mxu0 0.0
    %4026 = vmatpush.msra.mxu0 0.0
    %4027 = vmatpush.msra.mxu0 0.0
    %4028 = vmatpush.msra.mxu0 0.0
    %4029 = vmatpush.msra.mxu0 0.0
    %4030 = vmatpush.msra.mxu0 0.0
    %4031 = vmatpush.msra.mxu0 0.0
    %4032 = vmatpush.msra.mxu0 %v62
    %4033 = vmatpush.msra.mxu0 %v61
    %4034 = vmatpush.msra.mxu0 %v60
    %4035 = vmatpush.msra.mxu0 %v59
    %4036 = vmatmul.f32.gmra.mxu0 %v3859
    %v4037 = vpop.f32.mrf.mxu0
    %v4038 = vadd.f32 0.0, %v4037
    %4039 = vmatmul.f32.gmra.mxu0 %v3862
    %v4040 = vpop.f32.mrf.mxu0
    %v4041 = vadd.f32 0.0, %v4040
    %4042 = vmatmul.f32.gmra.mxu0 %v3865
    %v4043 = vpop.f32.mrf.mxu0
    %v4044 = vadd.f32 0.0, %v4043
    %4045 = vmatmul.f32.gmra.mxu0 %v3868
    %v4046 = vpop.f32.mrf.mxu0
    %v4047 = vadd.f32 0.0, %v4046
    %4048 = vdwg.mxu0
    %4049 = vmatpush.msra.mxu0 0.0
    %4050 = vmatpush.msra.mxu0 0.0
    %4051 = vmatpush.msra.mxu0 0.0
    %4052 = vmatpush.msra.mxu0 0.0
    %4053 = vmatpush.msra.mxu0 0.0
    %4054 = vmatpush.msra.mxu0 0.0
    %4055 = vmatpush.msra.mxu0 0.0
    %4056 = vmatpush.msra.mxu0 0.0
    %4057 = vmatpush.msra.mxu0 0.0
    %4058 = vmatpush.msra.mxu0 0.0
    %4059 = vmatpush.msra.mxu0 0.0
    %4060 = vmatpush.msra.mxu0 0.0
    %4061 = vmatpush.msra.mxu0 0.0
    %4062 = vmatpush.msra.mxu0 0.0
    %4063 = vmatpush.msra.mxu0 0.0
    %4064 = vmatpush.msra.mxu0 %v294
    %4065 = vmatmul.f32.gmra.mxu0 %v3900
    %v4066 = vpop.f32.mrf.mxu0
    %v4067 = vadd.f32 %v4038, %v4066
    %4068 = vmatmul.f32.gmra.mxu0 %v3903
    %v4069 = vpop.f32.mrf.mxu0
    %v4070 = vadd.f32 %v4041, %v4069
    %4071 = vmatmul.f32.gmra.mxu0 %v3906
    %v4072 = vpop.f32.mrf.mxu0
    %v4073 = vadd.f32 %v4044, %v4072
    %4074 = vmatmul.f32.gmra.mxu0 %v3909
    %v4075 = vpop.f32.mrf.mxu0
    %v4076 = vadd.f32 %v4047, %v4075
    %4077 = vdwg.mxu0
    %v4078 = vadd.f32 %v4067, %v326
    %v4079 = vadd.f32 %v4070, %v326
    %v4080 = vadd.f32 %v4073, %v326
    %v4081 = vadd.f32 %v4076, %v326
    %v4082 = vxor.u32 %v4078, 2147483648
    %v4083 = vxor.u32 %v4079, 2147483648
    %v4084 = vxor.u32 %v4080, 2147483648
    %v4085 = vxor.u32 %v4081, 2147483648
    %v4086 = vmul.f32 %v4082, 1.442695
    %v4087 = vpow.pop %v4086
    %v4088 = vmul.f32 %v4083, 1.442695
    %v4089 = vpow.pop %v4088
    %v4090 = vmul.f32 %v4084, 1.442695
    %v4091 = vpow.pop %v4090
    %v4092 = vmul.f32 %v4085, 1.442695
    %v4093 = vpow.pop %v4092
    %v4094 = vadd.f32 %v4087, 1.0
    %v4095 = vadd.f32 %v4089, 1.0
    %v4096 = vadd.f32 %v4091, 1.0
    %v4097 = vadd.f32 %v4093, 1.0
    %v4098 = vrcp.pop %v4094
    %v4099 = vmul.f32 %v4094, %v4098
    %v4100 = vsub.f32 1.0, %v4099
    %v4101 = vmul.f32 %v4098, %v4100
    %v4102 = vadd.f32 %v4098, %v4101
    %vm4103 = vweird.f32 %v4094
    %vm4104 = vweird.f32 %v4098
    %vm4105 = vmor %vm4103, %vm4104
    %v4106 = vsel %vm4105, %v4098, %v4102
    %v4107 = vand.u32 2147483647, %v4094
    %vm4108 = vcmp.eq.f32.partialorder %v4107, 8.507059e+37
    %v4109 = vand.u32 %v4094, 2147483648
    %v4110 = vor.u32 1.1754944e-38, %v4109
    %v4111 = vsel %vm4108, %v4110, %v4106
    %v4112 = vmul.f32 1.0, %v4111
    %v4113 = vrcp.pop %v4095
    %v4114 = vmul.f32 %v4095, %v4113
    %v4115 = vsub.f32 1.0, %v4114
    %v4116 = vmul.f32 %v4113, %v4115
    %v4117 = vadd.f32 %v4113, %v4116
    %vm4118 = vweird.f32 %v4095
    %vm4119 = vweird.f32 %v4113
    %vm4120 = vmor %vm4118, %vm4119
    %v4121 = vsel %vm4120, %v4113, %v4117
    %v4122 = vand.u32 2147483647, %v4095
    %vm4123 = vcmp.eq.f32.partialorder %v4122, 8.507059e+37
    %v4124 = vand.u32 %v4095, 2147483648
    %v4125 = vor.u32 1.1754944e-38, %v4124
    %v4126 = vsel %vm4123, %v4125, %v4121
    %v4127 = vmul.f32 1.0, %v4126
    %v4128 = vrcp.pop %v4096
    %v4129 = vmul.f32 %v4096, %v4128
    %v4130 = vsub.f32 1.0, %v4129
    %v4131 = vmul.f32 %v4128, %v4130
    %v4132 = vadd.f32 %v4128, %v4131
    %vm4133 = vweird.f32 %v4096
    %vm4134 = vweird.f32 %v4128
    %vm4135 = vmor %vm4133, %vm4134
    %v4136 = vsel %vm4135, %v4128, %v4132
    %v4137 = vand.u32 2147483647, %v4096
    %vm4138 = vcmp.eq.f32.partialorder %v4137, 8.507059e+37
    %v4139 = vand.u32 %v4096, 2147483648
    %v4140 = vor.u32 1.1754944e-38, %v4139
    %v4141 = vsel %vm4138, %v4140, %v4136
    %v4142 = vmul.f32 1.0, %v4141
    %v4143 = vrcp.pop %v4097
    %v4144 = vmul.f32 %v4097, %v4143
    %v4145 = vsub.f32 1.0, %v4144
    %v4146 = vmul.f32 %v4143, %v4145
    %v4147 = vadd.f32 %v4143, %v4146
    %vm4148 = vweird.f32 %v4097
    %vm4149 = vweird.f32 %v4143
    %vm4150 = vmor %vm4148, %vm4149
    %v4151 = vsel %vm4150, %v4143, %v4147
    %v4152 = vand.u32 2147483647, %v4097
    %vm4153 = vcmp.eq.f32.partialorder %v4152, 8.507059e+37
    %v4154 = vand.u32 %v4097, 2147483648
    %v4155 = vor.u32 1.1754944e-38, %v4154
    %v4156 = vsel %vm4153, %v4155, %v4151
    %v4157 = vmul.f32 1.0, %v4156
    %4158 = vmatpush.msra.mxu0 0.0
    %4159 = vmatpush.msra.mxu0 0.0
    %4160 = vmatpush.msra.mxu0 0.0
    %4161 = vmatpush.msra.mxu0 0.0
    %4162 = vmatpush.msra.mxu0 0.0
    %4163 = vmatpush.msra.mxu0 0.0
    %4164 = vmatpush.msra.mxu0 0.0
    %4165 = vmatpush.msra.mxu0 0.0
    %4166 = vmatpush.msra.mxu0 0.0
    %4167 = vmatpush.msra.mxu0 0.0
    %4168 = vmatpush.msra.mxu0 0.0
    %4169 = vmatpush.msra.mxu0 0.0
    %4170 = vmatpush.msra.mxu0 0.0
    %4171 = vmatpush.msra.mxu0 0.0
    %4172 = vmatpush.msra.mxu0 %v3850
    %4173 = vmatpush.msra.mxu0 %v3849
    %4174 = vmatmul.f32.gmra.mxu0 %v410
    %v4175 = vpop.f32.mrf.mxu0
    %v4176 = vadd.f32 0.0, %v4175
    %4177 = vmatmul.f32.gmra.mxu0 %v413
    %v4178 = vpop.f32.mrf.mxu0
    %v4179 = vadd.f32 0.0, %v4178
    %4180 = vdwg.mxu0
    %4181 = vmatpush.msra.mxu0 0.0
    %4182 = vmatpush.msra.mxu0 0.0
    %4183 = vmatpush.msra.mxu0 0.0
    %4184 = vmatpush.msra.mxu0 0.0
    %4185 = vmatpush.msra.mxu0 0.0
    %4186 = vmatpush.msra.mxu0 0.0
    %4187 = vmatpush.msra.mxu0 0.0
    %4188 = vmatpush.msra.mxu0 0.0
    %4189 = vmatpush.msra.mxu0 0.0
    %4190 = vmatpush.msra.mxu0 0.0
    %4191 = vmatpush.msra.mxu0 0.0
    %4192 = vmatpush.msra.mxu0 0.0
    %4193 = vmatpush.msra.mxu0 0.0
    %4194 = vmatpush.msra.mxu0 0.0
    %4195 = vmatpush.msra.mxu0 %v3852
    %4196 = vmatpush.msra.mxu0 %v3851
    %4197 = vmatmul.f32.gmra.mxu0 %v410
    %v4198 = vpop.f32.mrf.mxu0
    %v4199 = vadd.f32 0.0, %v4198
    %4200 = vmatmul.f32.gmra.mxu0 %v413
    %v4201 = vpop.f32.mrf.mxu0
    %v4202 = vadd.f32 0.0, %v4201
    %4203 = vdwg.mxu0
    %v4205 = vsel %vm93, %v4176, 0
    %v4208 = vsel %vm93, %v4179, 0
    %v4211 = vsel %vm93, %v4199, 0
    %v4214 = vsel %vm93, %v4202, 0
    %4216 = vmatpush.msra.mxu0 0.0
    %4217 = vmatpush.msra.mxu0 0.0
    %4218 = vmatpush.msra.mxu0 0.0
    %4219 = vmatpush.msra.mxu0 0.0
    %4220 = vmatpush.msra.mxu0 0.0
    %4221 = vmatpush.msra.mxu0 0.0
    %4222 = vmatpush.msra.mxu0 0.0
    %4223 = vmatpush.msra.mxu0 0.0
    %4224 = vmatpush.msra.mxu0 0.0
    %4225 = vmatpush.msra.mxu0 0.0
    %4226 = vmatpush.msra.mxu0 0.0
    %4227 = vmatpush.msra.mxu0 0.0
    %4228 = vmatpush.msra.mxu0 %v76
    %4229 = vmatpush.msra.mxu0 %v75
    %4230 = vmatpush.msra.mxu0 %v74
    %4231 = vmatpush.msra.mxu0 %v73
    %4232 = vmatmul.f32.gmra.mxu0 %v4205
    %v4233 = vpop.f32.mrf.mxu0
    %v4234 = vadd.f32 0.0, %v4233
    %4235 = vmatmul.f32.gmra.mxu0 %v4208
    %v4236 = vpop.f32.mrf.mxu0
    %v4237 = vadd.f32 0.0, %v4236
    %4238 = vmatmul.f32.gmra.mxu0 %v4211
    %v4239 = vpop.f32.mrf.mxu0
    %v4240 = vadd.f32 0.0, %v4239
    %4241 = vmatmul.f32.gmra.mxu0 %v4214
    %v4242 = vpop.f32.mrf.mxu0
    %v4243 = vadd.f32 0.0, %v4242
    %4244 = vdwg.mxu0
    %4245 = vmatpush.msra.mxu0 0.0
    %4246 = vmatpush.msra.mxu0 0.0
    %4247 = vmatpush.msra.mxu0 0.0
    %4248 = vmatpush.msra.mxu0 0.0
    %4249 = vmatpush.msra.mxu0 0.0
    %4250 = vmatpush.msra.mxu0 0.0
    %4251 = vmatpush.msra.mxu0 0.0
    %4252 = vmatpush.msra.mxu0 0.0
    %4253 = vmatpush.msra.mxu0 0.0
    %4254 = vmatpush.msra.mxu0 0.0
    %4255 = vmatpush.msra.mxu0 0.0
    %4256 = vmatpush.msra.mxu0 0.0
    %4257 = vmatpush.msra.mxu0 %v71
    %4258 = vmatpush.msra.mxu0 %v70
    %4259 = vmatpush.msra.mxu0 %v69
    %4260 = vmatpush.msra.mxu0 %v68
    %4261 = vmatmul.f32.gmra.mxu0 %v3859
    %v4262 = vpop.f32.mrf.mxu0
    %v4263 = vadd.f32 %v4234, %v4262
    %4264 = vmatmul.f32.gmra.mxu0 %v3862
    %v4265 = vpop.f32.mrf.mxu0
    %v4266 = vadd.f32 %v4237, %v4265
    %4267 = vmatmul.f32.gmra.mxu0 %v3865
    %v4268 = vpop.f32.mrf.mxu0
    %v4269 = vadd.f32 %v4240, %v4268
    %4270 = vmatmul.f32.gmra.mxu0 %v3868
    %v4271 = vpop.f32.mrf.mxu0
    %v4272 = vadd.f32 %v4243, %v4271
    %4273 = vdwg.mxu0
    %4274 = vmatpush.msra.mxu0 0.0
    %4275 = vmatpush.msra.mxu0 0.0
    %4276 = vmatpush.msra.mxu0 0.0
    %4277 = vmatpush.msra.mxu0 0.0
    %4278 = vmatpush.msra.mxu0 0.0
    %4279 = vmatpush.msra.mxu0 0.0
    %4280 = vmatpush.msra.mxu0 0.0
    %4281 = vmatpush.msra.mxu0 0.0
    %4282 = vmatpush.msra.mxu0 0.0
    %4283 = vmatpush.msra.mxu0 0.0
    %4284 = vmatpush.msra.mxu0 0.0
    %4285 = vmatpush.msra.mxu0 0.0
    %4286 = vmatpush.msra.mxu0 0.0
    %4287 = vmatpush.msra.mxu0 0.0
    %4288 = vmatpush.msra.mxu0 %v4179
    %4289 = vmatpush.msra.mxu0 %v4176
    %4290 = vmatmul.f32.gmra.mxu0 %v410
    %v4291 = vpop.f32.mrf.mxu0
    %v4292 = vadd.f32 0.0, %v4291
    %4293 = vmatmul.f32.gmra.mxu0 %v413
    %v4294 = vpop.f32.mrf.mxu0
    %v4295 = vadd.f32 0.0, %v4294
    %4296 = vdwg.mxu0
    %4297 = vmatpush.msra.mxu0 0.0
    %4298 = vmatpush.msra.mxu0 0.0
    %4299 = vmatpush.msra.mxu0 0.0
    %4300 = vmatpush.msra.mxu0 0.0
    %4301 = vmatpush.msra.mxu0 0.0
    %4302 = vmatpush.msra.mxu0 0.0
    %4303 = vmatpush.msra.mxu0 0.0
    %4304 = vmatpush.msra.mxu0 0.0
    %4305 = vmatpush.msra.mxu0 0.0
    %4306 = vmatpush.msra.mxu0 0.0
    %4307 = vmatpush.msra.mxu0 0.0
    %4308 = vmatpush.msra.mxu0 0.0
    %4309 = vmatpush.msra.mxu0 0.0
    %4310 = vmatpush.msra.mxu0 0.0
    %4311 = vmatpush.msra.mxu0 %v4202
    %4312 = vmatpush.msra.mxu0 %v4199
    %4313 = vmatmul.f32.gmra.mxu0 %v410
    %v4314 = vpop.f32.mrf.mxu0
    %v4315 = vadd.f32 0.0, %v4314
    %4316 = vmatmul.f32.gmra.mxu0 %v413
    %v4317 = vpop.f32.mrf.mxu0
    %v4318 = vadd.f32 0.0, %v4317
    %4319 = vdwg.mxu0
    %v4321 = vsel %vm93, %v4292, 0
    %v4324 = vsel %vm93, %v4295, 0
    %v4327 = vsel %vm93, %v4315, 0
    %v4330 = vsel %vm93, %v4318, 0
    %4332 = vmatpush.msra.mxu0 0.0
    %4333 = vmatpush.msra.mxu0 0.0
    %4334 = vmatpush.msra.mxu0 0.0
    %4335 = vmatpush.msra.mxu0 0.0
    %4336 = vmatpush.msra.mxu0 0.0
    %4337 = vmatpush.msra.mxu0 0.0
    %4338 = vmatpush.msra.mxu0 0.0
    %4339 = vmatpush.msra.mxu0 0.0
    %4340 = vmatpush.msra.mxu0 0.0
    %4341 = vmatpush.msra.mxu0 0.0
    %4342 = vmatpush.msra.mxu0 0.0
    %4343 = vmatpush.msra.mxu0 0.0
    %4344 = vmatpush.msra.mxu0 %v81
    %4345 = vmatpush.msra.mxu0 %v80
    %4346 = vmatpush.msra.mxu0 %v79
    %4347 = vmatpush.msra.mxu0 %v78
    %4348 = vmatmul.f32.gmra.mxu0 %v4321
    %v4349 = vpop.f32.mrf.mxu0
    %v4350 = vadd.f32 0.0, %v4349
    %4351 = vmatmul.f32.gmra.mxu0 %v4324
    %v4352 = vpop.f32.mrf.mxu0
    %v4353 = vadd.f32 0.0, %v4352
    %4354 = vmatmul.f32.gmra.mxu0 %v4327
    %v4355 = vpop.f32.mrf.mxu0
    %v4356 = vadd.f32 0.0, %v4355
    %4357 = vmatmul.f32.gmra.mxu0 %v4330
    %v4358 = vpop.f32.mrf.mxu0
    %v4359 = vadd.f32 0.0, %v4358
    %4360 = vdwg.mxu0
    %v4361 = vadd.f32 %v4263, %v4350
    %v4362 = vadd.f32 %v4266, %v4353
    %v4363 = vadd.f32 %v4269, %v4356
    %v4364 = vadd.f32 %v4272, %v4359
    %v4365 = vmul.f32 %v3974, %v4361
    %v4366 = vmul.f32 %v3989, %v4362
    %v4367 = vmul.f32 %v4004, %v4363
    %v4368 = vmul.f32 %v4019, %v4364
    %v4370 = vsel %vm93, %v4365, 0
    %v4373 = vsel %vm93, %v4366, 0
    %v4376 = vsel %vm93, %v4367, 0
    %v4379 = vsel %vm93, %v4368, 0
    %4381 = vmatpush.msra.mxu0 0.0
    %4382 = vmatpush.msra.mxu0 0.0
    %4383 = vmatpush.msra.mxu0 0.0
    %4384 = vmatpush.msra.mxu0 0.0
    %4385 = vmatpush.msra.mxu0 0.0
    %4386 = vmatpush.msra.mxu0 0.0
    %4387 = vmatpush.msra.mxu0 0.0
    %4388 = vmatpush.msra.mxu0 0.0
    %4389 = vmatpush.msra.mxu0 0.0
    %4390 = vmatpush.msra.mxu0 0.0
    %4391 = vmatpush.msra.mxu0 0.0
    %4392 = vmatpush.msra.mxu0 0.0
    %4393 = vmatpush.msra.mxu0 %v67
    %4394 = vmatpush.msra.mxu0 %v66
    %4395 = vmatpush.msra.mxu0 %v65
    %4396 = vmatpush.msra.mxu0 %v64
    %4397 = vmatmul.f32.gmra.mxu0 %v4370
    %v4398 = vpop.f32.mrf.mxu0
    %v4399 = vadd.f32 0.0, %v4398
    %4400 = vmatmul.f32.gmra.mxu0 %v4373
    %v4401 = vpop.f32.mrf.mxu0
    %v4402 = vadd.f32 0.0, %v4401
    %4403 = vmatmul.f32.gmra.mxu0 %v4376
    %v4404 = vpop.f32.mrf.mxu0
    %v4405 = vadd.f32 0.0, %v4404
    %4406 = vmatmul.f32.gmra.mxu0 %v4379
    %v4407 = vpop.f32.mrf.mxu0
    %v4408 = vadd.f32 0.0, %v4407
    %4409 = vdwg.mxu0
    %4410 = vmatpush.msra.mxu0 0.0
    %4411 = vmatpush.msra.mxu0 0.0
    %4412 = vmatpush.msra.mxu0 0.0
    %4413 = vmatpush.msra.mxu0 0.0
    %4414 = vmatpush.msra.mxu0 0.0
    %4415 = vmatpush.msra.mxu0 0.0
    %4416 = vmatpush.msra.mxu0 0.0
    %4417 = vmatpush.msra.mxu0 0.0
    %4418 = vmatpush.msra.mxu0 0.0
    %4419 = vmatpush.msra.mxu0 0.0
    %4420 = vmatpush.msra.mxu0 0.0
    %4421 = vmatpush.msra.mxu0 0.0
    %4422 = vmatpush.msra.mxu0 0.0
    %4423 = vmatpush.msra.mxu0 0.0
    %4424 = vmatpush.msra.mxu0 0.0
    %4425 = vmatpush.msra.mxu0 %v668
    %4426 = vmatmul.f32.gmra.mxu0 %v3900
    %v4427 = vpop.f32.mrf.mxu0
    %v4428 = vadd.f32 %v4399, %v4427
    %4429 = vmatmul.f32.gmra.mxu0 %v3903
    %v4430 = vpop.f32.mrf.mxu0
    %v4431 = vadd.f32 %v4402, %v4430
    %4432 = vmatmul.f32.gmra.mxu0 %v3906
    %v4433 = vpop.f32.mrf.mxu0
    %v4434 = vadd.f32 %v4405, %v4433
    %4435 = vmatmul.f32.gmra.mxu0 %v3909
    %v4436 = vpop.f32.mrf.mxu0
    %v4437 = vadd.f32 %v4408, %v4436
    %4438 = vdwg.mxu0
    %v4439 = vadd.f32 %v4428, %v700
    %v4440 = vadd.f32 %v4431, %v700
    %v4441 = vadd.f32 %v4434, %v700
    %v4442 = vadd.f32 %v4437, %v700
    %v4443 = vtanh.pop %v4439
    %v4444 = vtanh.pop %v4440
    %v4445 = vtanh.pop %v4441
    %v4446 = vtanh.pop %v4442
    %v4447 = vmul.f32 %v4112, %v3849
    %v4448 = vmul.f32 %v4127, %v3850
    %v4449 = vmul.f32 %v4142, %v3851
    %v4450 = vmul.f32 %v4157, %v3852
    %v4451 = vsub.f32 1.0, %v4112
    %v4452 = vsub.f32 1.0, %v4127
    %v4453 = vsub.f32 1.0, %v4142
    %v4454 = vsub.f32 1.0, %v4157
    %v4455 = vmul.f32 %v4451, %v4443
    %v4456 = vmul.f32 %v4452, %v4444
    %v4457 = vmul.f32 %v4453, %v4445
    %v4458 = vmul.f32 %v4454, %v4446
    %v4459 = vadd.f32 %v4447, %v4455
    %v4460 = vadd.f32 %v4448, %v4456
    %v4461 = vadd.f32 %v4449, %v4457
    %v4462 = vadd.f32 %v4450, %v4458
    %4463 = vst.msk [vmem:[#allocation2] sm:$0xff] %vm93, %v4459
    %4464 = vst.msk [vmem:[#allocation2 + $0x8] sm:$0xff] %vm93, %v4460
    %4465 = vst.msk [vmem:[#allocation2 + $0x10] sm:$0xff] %vm93, %v4461
    %4466 = vst.msk [vmem:[#allocation2 + $0x18] sm:$0xff] %vm93, %v4462
    %s4467 = scalar_lea.vmem [#allocation3], 192
    %4468 = vst.msk [vmem:[%s4467] sm:$0xff] %vm93, %v4459
    %4469 = vst.msk [vmem:[%s4467 + $0x8] sm:$0xff] %vm93, %v4460
    %4470 = vst.msk [vmem:[%s4467 + $0x10] sm:$0xff] %vm93, %v4461
    %4471 = vst.msk [vmem:[%s4467 + $0x18] sm:$0xff] %vm93, %v4462
    %v4472 = vld [vmem:[#allocation2] sm:$0xff]
    %v4473 = vld [vmem:[#allocation2 + $0x8] sm:$0xff]
    %v4474 = vld [vmem:[#allocation2 + $0x10] sm:$0xff]
    %v4475 = vld [vmem:[#allocation2 + $0x18] sm:$0xff]
    %s4476 = scalar_lea.vmem %s0, 224
    %v4477 = vld [vmem:[%s4476] sm:$0xff]
    %v4478 = vld [vmem:[%s4476 + $0x8] sm:$0xff]
    %v4479 = vld [vmem:[%s4476 + $0x10] sm:$0xff]
    %v4480 = vld [vmem:[%s4476 + $0x18] sm:$0xff]
    %v4482 = vsel %vm93, %v4472, 0
    %v4485 = vsel %vm93, %v4473, 0
    %v4488 = vsel %vm93, %v4474, 0
    %v4491 = vsel %vm93, %v4475, 0
    %4493 = vmatpush.msra.mxu0 0.0
    %4494 = vmatpush.msra.mxu0 0.0
    %4495 = vmatpush.msra.mxu0 0.0
    %4496 = vmatpush.msra.mxu0 0.0
    %4497 = vmatpush.msra.mxu0 0.0
    %4498 = vmatpush.msra.mxu0 0.0
    %4499 = vmatpush.msra.mxu0 0.0
    %4500 = vmatpush.msra.mxu0 0.0
    %4501 = vmatpush.msra.mxu0 0.0
    %4502 = vmatpush.msra.mxu0 0.0
    %4503 = vmatpush.msra.mxu0 0.0
    %4504 = vmatpush.msra.mxu0 0.0
    %4505 = vmatpush.msra.mxu0 %v57
    %4506 = vmatpush.msra.mxu0 %v56
    %4507 = vmatpush.msra.mxu0 %v55
    %4508 = vmatpush.msra.mxu0 %v54
    %4509 = vmatmul.f32.gmra.mxu0 %v4482
    %v4510 = vpop.f32.mrf.mxu0
    %v4511 = vadd.f32 0.0, %v4510
    %4512 = vmatmul.f32.gmra.mxu0 %v4485
    %v4513 = vpop.f32.mrf.mxu0
    %v4514 = vadd.f32 0.0, %v4513
    %4515 = vmatmul.f32.gmra.mxu0 %v4488
    %v4516 = vpop.f32.mrf.mxu0
    %v4517 = vadd.f32 0.0, %v4516
    %4518 = vmatmul.f32.gmra.mxu0 %v4491
    %v4519 = vpop.f32.mrf.mxu0
    %v4520 = vadd.f32 0.0, %v4519
    %4521 = vdwg.mxu0
    %v4523 = vsel %vm135, %v4477, 0
    %v4526 = vsel %vm135, %v4478, 0
    %v4529 = vsel %vm135, %v4479, 0
    %v4532 = vsel %vm135, %v4480, 0
    %4534 = vmatpush.msra.mxu0 0.0
    %4535 = vmatpush.msra.mxu0 0.0
    %4536 = vmatpush.msra.mxu0 0.0
    %4537 = vmatpush.msra.mxu0 0.0
    %4538 = vmatpush.msra.mxu0 0.0
    %4539 = vmatpush.msra.mxu0 0.0
    %4540 = vmatpush.msra.mxu0 0.0
    %4541 = vmatpush.msra.mxu0 0.0
    %4542 = vmatpush.msra.mxu0 0.0
    %4543 = vmatpush.msra.mxu0 0.0
    %4544 = vmatpush.msra.mxu0 0.0
    %4545 = vmatpush.msra.mxu0 0.0
    %4546 = vmatpush.msra.mxu0 0.0
    %4547 = vmatpush.msra.mxu0 0.0
    %4548 = vmatpush.msra.mxu0 0.0
    %4549 = vmatpush.msra.mxu0 %v150
    %4550 = vmatmul.f32.gmra.mxu0 %v4523
    %v4551 = vpop.f32.mrf.mxu0
    %v4552 = vadd.f32 %v4511, %v4551
    %4553 = vmatmul.f32.gmra.mxu0 %v4526
    %v4554 = vpop.f32.mrf.mxu0
    %v4555 = vadd.f32 %v4514, %v4554
    %4556 = vmatmul.f32.gmra.mxu0 %v4529
    %v4557 = vpop.f32.mrf.mxu0
    %v4558 = vadd.f32 %v4517, %v4557
    %4559 = vmatmul.f32.gmra.mxu0 %v4532
    %v4560 = vpop.f32.mrf.mxu0
    %v4561 = vadd.f32 %v4520, %v4560
    %4562 = vdwg.mxu0
    %v4563 = vadd.f32 %v4552, %v182
    %v4564 = vadd.f32 %v4555, %v182
    %v4565 = vadd.f32 %v4558, %v182
    %v4566 = vadd.f32 %v4561, %v182
    %v4567 = vxor.u32 %v4563, 2147483648
    %v4568 = vxor.u32 %v4564, 2147483648
    %v4569 = vxor.u32 %v4565, 2147483648
    %v4570 = vxor.u32 %v4566, 2147483648
    %v4571 = vmul.f32 %v4567, 1.442695
    %v4572 = vpow.pop %v4571
    %v4573 = vmul.f32 %v4568, 1.442695
    %v4574 = vpow.pop %v4573
    %v4575 = vmul.f32 %v4569, 1.442695
    %v4576 = vpow.pop %v4575
    %v4577 = vmul.f32 %v4570, 1.442695
    %v4578 = vpow.pop %v4577
    %v4579 = vadd.f32 %v4572, 1.0
    %v4580 = vadd.f32 %v4574, 1.0
    %v4581 = vadd.f32 %v4576, 1.0
    %v4582 = vadd.f32 %v4578, 1.0
    %v4583 = vrcp.pop %v4579
    %v4584 = vmul.f32 %v4579, %v4583
    %v4585 = vsub.f32 1.0, %v4584
    %v4586 = vmul.f32 %v4583, %v4585
    %v4587 = vadd.f32 %v4583, %v4586
    %vm4588 = vweird.f32 %v4579
    %vm4589 = vweird.f32 %v4583
    %vm4590 = vmor %vm4588, %vm4589
    %v4591 = vsel %vm4590, %v4583, %v4587
    %v4592 = vand.u32 2147483647, %v4579
    %vm4593 = vcmp.eq.f32.partialorder %v4592, 8.507059e+37
    %v4594 = vand.u32 %v4579, 2147483648
    %v4595 = vor.u32 1.1754944e-38, %v4594
    %v4596 = vsel %vm4593, %v4595, %v4591
    %v4597 = vmul.f32 1.0, %v4596
    %v4598 = vrcp.pop %v4580
    %v4599 = vmul.f32 %v4580, %v4598
    %v4600 = vsub.f32 1.0, %v4599
    %v4601 = vmul.f32 %v4598, %v4600
    %v4602 = vadd.f32 %v4598, %v4601
    %vm4603 = vweird.f32 %v4580
    %vm4604 = vweird.f32 %v4598
    %vm4605 = vmor %vm4603, %vm4604
    %v4606 = vsel %vm4605, %v4598, %v4602
    %v4607 = vand.u32 2147483647, %v4580
    %vm4608 = vcmp.eq.f32.partialorder %v4607, 8.507059e+37
    %v4609 = vand.u32 %v4580, 2147483648
    %v4610 = vor.u32 1.1754944e-38, %v4609
    %v4611 = vsel %vm4608, %v4610, %v4606
    %v4612 = vmul.f32 1.0, %v4611
    %v4613 = vrcp.pop %v4581
    %v4614 = vmul.f32 %v4581, %v4613
    %v4615 = vsub.f32 1.0, %v4614
    %v4616 = vmul.f32 %v4613, %v4615
    %v4617 = vadd.f32 %v4613, %v4616
    %vm4618 = vweird.f32 %v4581
    %vm4619 = vweird.f32 %v4613
    %vm4620 = vmor %vm4618, %vm4619
    %v4621 = vsel %vm4620, %v4613, %v4617
    %v4622 = vand.u32 2147483647, %v4581
    %vm4623 = vcmp.eq.f32.partialorder %v4622, 8.507059e+37
    %v4624 = vand.u32 %v4581, 2147483648
    %v4625 = vor.u32 1.1754944e-38, %v4624
    %v4626 = vsel %vm4623, %v4625, %v4621
    %v4627 = vmul.f32 1.0, %v4626
    %v4628 = vrcp.pop %v4582
    %v4629 = vmul.f32 %v4582, %v4628
    %v4630 = vsub.f32 1.0, %v4629
    %v4631 = vmul.f32 %v4628, %v4630
    %v4632 = vadd.f32 %v4628, %v4631
    %vm4633 = vweird.f32 %v4582
    %vm4634 = vweird.f32 %v4628
    %vm4635 = vmor %vm4633, %vm4634
    %v4636 = vsel %vm4635, %v4628, %v4632
    %v4637 = vand.u32 2147483647, %v4582
    %vm4638 = vcmp.eq.f32.partialorder %v4637, 8.507059e+37
    %v4639 = vand.u32 %v4582, 2147483648
    %v4640 = vor.u32 1.1754944e-38, %v4639
    %v4641 = vsel %vm4638, %v4640, %v4636
    %v4642 = vmul.f32 1.0, %v4641
    %4643 = vmatpush.msra.mxu0 0.0
    %4644 = vmatpush.msra.mxu0 0.0
    %4645 = vmatpush.msra.mxu0 0.0
    %4646 = vmatpush.msra.mxu0 0.0
    %4647 = vmatpush.msra.mxu0 0.0
    %4648 = vmatpush.msra.mxu0 0.0
    %4649 = vmatpush.msra.mxu0 0.0
    %4650 = vmatpush.msra.mxu0 0.0
    %4651 = vmatpush.msra.mxu0 0.0
    %4652 = vmatpush.msra.mxu0 0.0
    %4653 = vmatpush.msra.mxu0 0.0
    %4654 = vmatpush.msra.mxu0 0.0
    %4655 = vmatpush.msra.mxu0 %v62
    %4656 = vmatpush.msra.mxu0 %v61
    %4657 = vmatpush.msra.mxu0 %v60
    %4658 = vmatpush.msra.mxu0 %v59
    %4659 = vmatmul.f32.gmra.mxu0 %v4482
    %v4660 = vpop.f32.mrf.mxu0
    %v4661 = vadd.f32 0.0, %v4660
    %4662 = vmatmul.f32.gmra.mxu0 %v4485
    %v4663 = vpop.f32.mrf.mxu0
    %v4664 = vadd.f32 0.0, %v4663
    %4665 = vmatmul.f32.gmra.mxu0 %v4488
    %v4666 = vpop.f32.mrf.mxu0
    %v4667 = vadd.f32 0.0, %v4666
    %4668 = vmatmul.f32.gmra.mxu0 %v4491
    %v4669 = vpop.f32.mrf.mxu0
    %v4670 = vadd.f32 0.0, %v4669
    %4671 = vdwg.mxu0
    %4672 = vmatpush.msra.mxu0 0.0
    %4673 = vmatpush.msra.mxu0 0.0
    %4674 = vmatpush.msra.mxu0 0.0
    %4675 = vmatpush.msra.mxu0 0.0
    %4676 = vmatpush.msra.mxu0 0.0
    %4677 = vmatpush.msra.mxu0 0.0
    %4678 = vmatpush.msra.mxu0 0.0
    %4679 = vmatpush.msra.mxu0 0.0
    %4680 = vmatpush.msra.mxu0 0.0
    %4681 = vmatpush.msra.mxu0 0.0
    %4682 = vmatpush.msra.mxu0 0.0
    %4683 = vmatpush.msra.mxu0 0.0
    %4684 = vmatpush.msra.mxu0 0.0
    %4685 = vmatpush.msra.mxu0 0.0
    %4686 = vmatpush.msra.mxu0 0.0
    %4687 = vmatpush.msra.mxu0 %v294
    %4688 = vmatmul.f32.gmra.mxu0 %v4523
    %v4689 = vpop.f32.mrf.mxu0
    %v4690 = vadd.f32 %v4661, %v4689
    %4691 = vmatmul.f32.gmra.mxu0 %v4526
    %v4692 = vpop.f32.mrf.mxu0
    %v4693 = vadd.f32 %v4664, %v4692
    %4694 = vmatmul.f32.gmra.mxu0 %v4529
    %v4695 = vpop.f32.mrf.mxu0
    %v4696 = vadd.f32 %v4667, %v4695
    %4697 = vmatmul.f32.gmra.mxu0 %v4532
    %v4698 = vpop.f32.mrf.mxu0
    %v4699 = vadd.f32 %v4670, %v4698
    %4700 = vdwg.mxu0
    %v4701 = vadd.f32 %v4690, %v326
    %v4702 = vadd.f32 %v4693, %v326
    %v4703 = vadd.f32 %v4696, %v326
    %v4704 = vadd.f32 %v4699, %v326
    %v4705 = vxor.u32 %v4701, 2147483648
    %v4706 = vxor.u32 %v4702, 2147483648
    %v4707 = vxor.u32 %v4703, 2147483648
    %v4708 = vxor.u32 %v4704, 2147483648
    %v4709 = vmul.f32 %v4705, 1.442695
    %v4710 = vpow.pop %v4709
    %v4711 = vmul.f32 %v4706, 1.442695
    %v4712 = vpow.pop %v4711
    %v4713 = vmul.f32 %v4707, 1.442695
    %v4714 = vpow.pop %v4713
    %v4715 = vmul.f32 %v4708, 1.442695
    %v4716 = vpow.pop %v4715
    %v4717 = vadd.f32 %v4710, 1.0
    %v4718 = vadd.f32 %v4712, 1.0
    %v4719 = vadd.f32 %v4714, 1.0
    %v4720 = vadd.f32 %v4716, 1.0
    %v4721 = vrcp.pop %v4717
    %v4722 = vmul.f32 %v4717, %v4721
    %v4723 = vsub.f32 1.0, %v4722
    %v4724 = vmul.f32 %v4721, %v4723
    %v4725 = vadd.f32 %v4721, %v4724
    %vm4726 = vweird.f32 %v4717
    %vm4727 = vweird.f32 %v4721
    %vm4728 = vmor %vm4726, %vm4727
    %v4729 = vsel %vm4728, %v4721, %v4725
    %v4730 = vand.u32 2147483647, %v4717
    %vm4731 = vcmp.eq.f32.partialorder %v4730, 8.507059e+37
    %v4732 = vand.u32 %v4717, 2147483648
    %v4733 = vor.u32 1.1754944e-38, %v4732
    %v4734 = vsel %vm4731, %v4733, %v4729
    %v4735 = vmul.f32 1.0, %v4734
    %v4736 = vrcp.pop %v4718
    %v4737 = vmul.f32 %v4718, %v4736
    %v4738 = vsub.f32 1.0, %v4737
    %v4739 = vmul.f32 %v4736, %v4738
    %v4740 = vadd.f32 %v4736, %v4739
    %vm4741 = vweird.f32 %v4718
    %vm4742 = vweird.f32 %v4736
    %vm4743 = vmor %vm4741, %vm4742
    %v4744 = vsel %vm4743, %v4736, %v4740
    %v4745 = vand.u32 2147483647, %v4718
    %vm4746 = vcmp.eq.f32.partialorder %v4745, 8.507059e+37
    %v4747 = vand.u32 %v4718, 2147483648
    %v4748 = vor.u32 1.1754944e-38, %v4747
    %v4749 = vsel %vm4746, %v4748, %v4744
    %v4750 = vmul.f32 1.0, %v4749
    %v4751 = vrcp.pop %v4719
    %v4752 = vmul.f32 %v4719, %v4751
    %v4753 = vsub.f32 1.0, %v4752
    %v4754 = vmul.f32 %v4751, %v4753
    %v4755 = vadd.f32 %v4751, %v4754
    %vm4756 = vweird.f32 %v4719
    %vm4757 = vweird.f32 %v4751
    %vm4758 = vmor %vm4756, %vm4757
    %v4759 = vsel %vm4758, %v4751, %v4755
    %v4760 = vand.u32 2147483647, %v4719
    %vm4761 = vcmp.eq.f32.partialorder %v4760, 8.507059e+37
    %v4762 = vand.u32 %v4719, 2147483648
    %v4763 = vor.u32 1.1754944e-38, %v4762
    %v4764 = vsel %vm4761, %v4763, %v4759
    %v4765 = vmul.f32 1.0, %v4764
    %v4766 = vrcp.pop %v4720
    %v4767 = vmul.f32 %v4720, %v4766
    %v4768 = vsub.f32 1.0, %v4767
    %v4769 = vmul.f32 %v4766, %v4768
    %v4770 = vadd.f32 %v4766, %v4769
    %vm4771 = vweird.f32 %v4720
    %vm4772 = vweird.f32 %v4766
    %vm4773 = vmor %vm4771, %vm4772
    %v4774 = vsel %vm4773, %v4766, %v4770
    %v4775 = vand.u32 2147483647, %v4720
    %vm4776 = vcmp.eq.f32.partialorder %v4775, 8.507059e+37
    %v4777 = vand.u32 %v4720, 2147483648
    %v4778 = vor.u32 1.1754944e-38, %v4777
    %v4779 = vsel %vm4776, %v4778, %v4774
    %v4780 = vmul.f32 1.0, %v4779
    %4781 = vmatpush.msra.mxu0 0.0
    %4782 = vmatpush.msra.mxu0 0.0
    %4783 = vmatpush.msra.mxu0 0.0
    %4784 = vmatpush.msra.mxu0 0.0
    %4785 = vmatpush.msra.mxu0 0.0
    %4786 = vmatpush.msra.mxu0 0.0
    %4787 = vmatpush.msra.mxu0 0.0
    %4788 = vmatpush.msra.mxu0 0.0
    %4789 = vmatpush.msra.mxu0 0.0
    %4790 = vmatpush.msra.mxu0 0.0
    %4791 = vmatpush.msra.mxu0 0.0
    %4792 = vmatpush.msra.mxu0 0.0
    %4793 = vmatpush.msra.mxu0 0.0
    %4794 = vmatpush.msra.mxu0 0.0
    %4795 = vmatpush.msra.mxu0 %v4473
    %4796 = vmatpush.msra.mxu0 %v4472
    %4797 = vmatmul.f32.gmra.mxu0 %v410
    %v4798 = vpop.f32.mrf.mxu0
    %v4799 = vadd.f32 0.0, %v4798
    %4800 = vmatmul.f32.gmra.mxu0 %v413
    %v4801 = vpop.f32.mrf.mxu0
    %v4802 = vadd.f32 0.0, %v4801
    %4803 = vdwg.mxu0
    %4804 = vmatpush.msra.mxu0 0.0
    %4805 = vmatpush.msra.mxu0 0.0
    %4806 = vmatpush.msra.mxu0 0.0
    %4807 = vmatpush.msra.mxu0 0.0
    %4808 = vmatpush.msra.mxu0 0.0
    %4809 = vmatpush.msra.mxu0 0.0
    %4810 = vmatpush.msra.mxu0 0.0
    %4811 = vmatpush.msra.mxu0 0.0
    %4812 = vmatpush.msra.mxu0 0.0
    %4813 = vmatpush.msra.mxu0 0.0
    %4814 = vmatpush.msra.mxu0 0.0
    %4815 = vmatpush.msra.mxu0 0.0
    %4816 = vmatpush.msra.mxu0 0.0
    %4817 = vmatpush.msra.mxu0 0.0
    %4818 = vmatpush.msra.mxu0 %v4475
    %4819 = vmatpush.msra.mxu0 %v4474
    %4820 = vmatmul.f32.gmra.mxu0 %v410
    %v4821 = vpop.f32.mrf.mxu0
    %v4822 = vadd.f32 0.0, %v4821
    %4823 = vmatmul.f32.gmra.mxu0 %v413
    %v4824 = vpop.f32.mrf.mxu0
    %v4825 = vadd.f32 0.0, %v4824
    %4826 = vdwg.mxu0
    %v4828 = vsel %vm93, %v4799, 0
    %v4831 = vsel %vm93, %v4802, 0
    %v4834 = vsel %vm93, %v4822, 0
    %v4837 = vsel %vm93, %v4825, 0
    %4839 = vmatpush.msra.mxu0 0.0
    %4840 = vmatpush.msra.mxu0 0.0
    %4841 = vmatpush.msra.mxu0 0.0
    %4842 = vmatpush.msra.mxu0 0.0
    %4843 = vmatpush.msra.mxu0 0.0
    %4844 = vmatpush.msra.mxu0 0.0
    %4845 = vmatpush.msra.mxu0 0.0
    %4846 = vmatpush.msra.mxu0 0.0
    %4847 = vmatpush.msra.mxu0 0.0
    %4848 = vmatpush.msra.mxu0 0.0
    %4849 = vmatpush.msra.mxu0 0.0
    %4850 = vmatpush.msra.mxu0 0.0
    %4851 = vmatpush.msra.mxu0 %v76
    %4852 = vmatpush.msra.mxu0 %v75
    %4853 = vmatpush.msra.mxu0 %v74
    %4854 = vmatpush.msra.mxu0 %v73
    %4855 = vmatmul.f32.gmra.mxu0 %v4828
    %v4856 = vpop.f32.mrf.mxu0
    %v4857 = vadd.f32 0.0, %v4856
    %4858 = vmatmul.f32.gmra.mxu0 %v4831
    %v4859 = vpop.f32.mrf.mxu0
    %v4860 = vadd.f32 0.0, %v4859
    %4861 = vmatmul.f32.gmra.mxu0 %v4834
    %v4862 = vpop.f32.mrf.mxu0
    %v4863 = vadd.f32 0.0, %v4862
    %4864 = vmatmul.f32.gmra.mxu0 %v4837
    %v4865 = vpop.f32.mrf.mxu0
    %v4866 = vadd.f32 0.0, %v4865
    %4867 = vdwg.mxu0
    %4868 = vmatpush.msra.mxu0 0.0
    %4869 = vmatpush.msra.mxu0 0.0
    %4870 = vmatpush.msra.mxu0 0.0
    %4871 = vmatpush.msra.mxu0 0.0
    %4872 = vmatpush.msra.mxu0 0.0
    %4873 = vmatpush.msra.mxu0 0.0
    %4874 = vmatpush.msra.mxu0 0.0
    %4875 = vmatpush.msra.mxu0 0.0
    %4876 = vmatpush.msra.mxu0 0.0
    %4877 = vmatpush.msra.mxu0 0.0
    %4878 = vmatpush.msra.mxu0 0.0
    %4879 = vmatpush.msra.mxu0 0.0
    %4880 = vmatpush.msra.mxu0 %v71
    %4881 = vmatpush.msra.mxu0 %v70
    %4882 = vmatpush.msra.mxu0 %v69
    %4883 = vmatpush.msra.mxu0 %v68
    %4884 = vmatmul.f32.gmra.mxu0 %v4482
    %v4885 = vpop.f32.mrf.mxu0
    %v4886 = vadd.f32 %v4857, %v4885
    %4887 = vmatmul.f32.gmra.mxu0 %v4485
    %v4888 = vpop.f32.mrf.mxu0
    %v4889 = vadd.f32 %v4860, %v4888
    %4890 = vmatmul.f32.gmra.mxu0 %v4488
    %v4891 = vpop.f32.mrf.mxu0
    %v4892 = vadd.f32 %v4863, %v4891
    %4893 = vmatmul.f32.gmra.mxu0 %v4491
    %v4894 = vpop.f32.mrf.mxu0
    %v4895 = vadd.f32 %v4866, %v4894
    %4896 = vdwg.mxu0
    %4897 = vmatpush.msra.mxu0 0.0
    %4898 = vmatpush.msra.mxu0 0.0
    %4899 = vmatpush.msra.mxu0 0.0
    %4900 = vmatpush.msra.mxu0 0.0
    %4901 = vmatpush.msra.mxu0 0.0
    %4902 = vmatpush.msra.mxu0 0.0
    %4903 = vmatpush.msra.mxu0 0.0
    %4904 = vmatpush.msra.mxu0 0.0
    %4905 = vmatpush.msra.mxu0 0.0
    %4906 = vmatpush.msra.mxu0 0.0
    %4907 = vmatpush.msra.mxu0 0.0
    %4908 = vmatpush.msra.mxu0 0.0
    %4909 = vmatpush.msra.mxu0 0.0
    %4910 = vmatpush.msra.mxu0 0.0
    %4911 = vmatpush.msra.mxu0 %v4802
    %4912 = vmatpush.msra.mxu0 %v4799
    %4913 = vmatmul.f32.gmra.mxu0 %v410
    %v4914 = vpop.f32.mrf.mxu0
    %v4915 = vadd.f32 0.0, %v4914
    %4916 = vmatmul.f32.gmra.mxu0 %v413
    %v4917 = vpop.f32.mrf.mxu0
    %v4918 = vadd.f32 0.0, %v4917
    %4919 = vdwg.mxu0
    %4920 = vmatpush.msra.mxu0 0.0
    %4921 = vmatpush.msra.mxu0 0.0
    %4922 = vmatpush.msra.mxu0 0.0
    %4923 = vmatpush.msra.mxu0 0.0
    %4924 = vmatpush.msra.mxu0 0.0
    %4925 = vmatpush.msra.mxu0 0.0
    %4926 = vmatpush.msra.mxu0 0.0
    %4927 = vmatpush.msra.mxu0 0.0
    %4928 = vmatpush.msra.mxu0 0.0
    %4929 = vmatpush.msra.mxu0 0.0
    %4930 = vmatpush.msra.mxu0 0.0
    %4931 = vmatpush.msra.mxu0 0.0
    %4932 = vmatpush.msra.mxu0 0.0
    %4933 = vmatpush.msra.mxu0 0.0
    %4934 = vmatpush.msra.mxu0 %v4825
    %4935 = vmatpush.msra.mxu0 %v4822
    %4936 = vmatmul.f32.gmra.mxu0 %v410
    %v4937 = vpop.f32.mrf.mxu0
    %v4938 = vadd.f32 0.0, %v4937
    %4939 = vmatmul.f32.gmra.mxu0 %v413
    %v4940 = vpop.f32.mrf.mxu0
    %v4941 = vadd.f32 0.0, %v4940
    %4942 = vdwg.mxu0
    %v4944 = vsel %vm93, %v4915, 0
    %v4947 = vsel %vm93, %v4918, 0
    %v4950 = vsel %vm93, %v4938, 0
    %v4953 = vsel %vm93, %v4941, 0
    %4955 = vmatpush.msra.mxu0 0.0
    %4956 = vmatpush.msra.mxu0 0.0
    %4957 = vmatpush.msra.mxu0 0.0
    %4958 = vmatpush.msra.mxu0 0.0
    %4959 = vmatpush.msra.mxu0 0.0
    %4960 = vmatpush.msra.mxu0 0.0
    %4961 = vmatpush.msra.mxu0 0.0
    %4962 = vmatpush.msra.mxu0 0.0
    %4963 = vmatpush.msra.mxu0 0.0
    %4964 = vmatpush.msra.mxu0 0.0
    %4965 = vmatpush.msra.mxu0 0.0
    %4966 = vmatpush.msra.mxu0 0.0
    %4967 = vmatpush.msra.mxu0 %v81
    %4968 = vmatpush.msra.mxu0 %v80
    %4969 = vmatpush.msra.mxu0 %v79
    %4970 = vmatpush.msra.mxu0 %v78
    %4971 = vmatmul.f32.gmra.mxu0 %v4944
    %v4972 = vpop.f32.mrf.mxu0
    %v4973 = vadd.f32 0.0, %v4972
    %4974 = vmatmul.f32.gmra.mxu0 %v4947
    %v4975 = vpop.f32.mrf.mxu0
    %v4976 = vadd.f32 0.0, %v4975
    %4977 = vmatmul.f32.gmra.mxu0 %v4950
    %v4978 = vpop.f32.mrf.mxu0
    %v4979 = vadd.f32 0.0, %v4978
    %4980 = vmatmul.f32.gmra.mxu0 %v4953
    %v4981 = vpop.f32.mrf.mxu0
    %v4982 = vadd.f32 0.0, %v4981
    %4983 = vdwg.mxu0
    %v4984 = vadd.f32 %v4886, %v4973
    %v4985 = vadd.f32 %v4889, %v4976
    %v4986 = vadd.f32 %v4892, %v4979
    %v4987 = vadd.f32 %v4895, %v4982
    %v4988 = vmul.f32 %v4597, %v4984
    %v4989 = vmul.f32 %v4612, %v4985
    %v4990 = vmul.f32 %v4627, %v4986
    %v4991 = vmul.f32 %v4642, %v4987
    %v4993 = vsel %vm93, %v4988, 0
    %v4996 = vsel %vm93, %v4989, 0
    %v4999 = vsel %vm93, %v4990, 0
    %v5002 = vsel %vm93, %v4991, 0
    %5004 = vmatpush.msra.mxu0 0.0
    %5005 = vmatpush.msra.mxu0 0.0
    %5006 = vmatpush.msra.mxu0 0.0
    %5007 = vmatpush.msra.mxu0 0.0
    %5008 = vmatpush.msra.mxu0 0.0
    %5009 = vmatpush.msra.mxu0 0.0
    %5010 = vmatpush.msra.mxu0 0.0
    %5011 = vmatpush.msra.mxu0 0.0
    %5012 = vmatpush.msra.mxu0 0.0
    %5013 = vmatpush.msra.mxu0 0.0
    %5014 = vmatpush.msra.mxu0 0.0
    %5015 = vmatpush.msra.mxu0 0.0
    %5016 = vmatpush.msra.mxu0 %v67
    %5017 = vmatpush.msra.mxu0 %v66
    %5018 = vmatpush.msra.mxu0 %v65
    %5019 = vmatpush.msra.mxu0 %v64
    %5020 = vmatmul.f32.gmra.mxu0 %v4993
    %v5021 = vpop.f32.mrf.mxu0
    %v5022 = vadd.f32 0.0, %v5021
    %5023 = vmatmul.f32.gmra.mxu0 %v4996
    %v5024 = vpop.f32.mrf.mxu0
    %v5025 = vadd.f32 0.0, %v5024
    %5026 = vmatmul.f32.gmra.mxu0 %v4999
    %v5027 = vpop.f32.mrf.mxu0
    %v5028 = vadd.f32 0.0, %v5027
    %5029 = vmatmul.f32.gmra.mxu0 %v5002
    %v5030 = vpop.f32.mrf.mxu0
    %v5031 = vadd.f32 0.0, %v5030
    %5032 = vdwg.mxu0
    %5033 = vmatpush.msra.mxu0 0.0
    %5034 = vmatpush.msra.mxu0 0.0
    %5035 = vmatpush.msra.mxu0 0.0
    %5036 = vmatpush.msra.mxu0 0.0
    %5037 = vmatpush.msra.mxu0 0.0
    %5038 = vmatpush.msra.mxu0 0.0
    %5039 = vmatpush.msra.mxu0 0.0
    %5040 = vmatpush.msra.mxu0 0.0
    %5041 = vmatpush.msra.mxu0 0.0
    %5042 = vmatpush.msra.mxu0 0.0
    %5043 = vmatpush.msra.mxu0 0.0
    %5044 = vmatpush.msra.mxu0 0.0
    %5045 = vmatpush.msra.mxu0 0.0
    %5046 = vmatpush.msra.mxu0 0.0
    %5047 = vmatpush.msra.mxu0 0.0
    %5048 = vmatpush.msra.mxu0 %v668
    %5049 = vmatmul.f32.gmra.mxu0 %v4523
    %v5050 = vpop.f32.mrf.mxu0
    %v5051 = vadd.f32 %v5022, %v5050
    %5052 = vmatmul.f32.gmra.mxu0 %v4526
    %v5053 = vpop.f32.mrf.mxu0
    %v5054 = vadd.f32 %v5025, %v5053
    %5055 = vmatmul.f32.gmra.mxu0 %v4529
    %v5056 = vpop.f32.mrf.mxu0
    %v5057 = vadd.f32 %v5028, %v5056
    %5058 = vmatmul.f32.gmra.mxu0 %v4532
    %v5059 = vpop.f32.mrf.mxu0
    %v5060 = vadd.f32 %v5031, %v5059
    %5061 = vdwg.mxu0
    %v5062 = vadd.f32 %v5051, %v700
    %v5063 = vadd.f32 %v5054, %v700
    %v5064 = vadd.f32 %v5057, %v700
    %v5065 = vadd.f32 %v5060, %v700
    %v5066 = vtanh.pop %v5062
    %v5067 = vtanh.pop %v5063
    %v5068 = vtanh.pop %v5064
    %v5069 = vtanh.pop %v5065
    %v5070 = vmul.f32 %v4735, %v4472
    %v5071 = vmul.f32 %v4750, %v4473
    %v5072 = vmul.f32 %v4765, %v4474
    %v5073 = vmul.f32 %v4780, %v4475
    %v5074 = vsub.f32 1.0, %v4735
    %v5075 = vsub.f32 1.0, %v4750
    %v5076 = vsub.f32 1.0, %v4765
    %v5077 = vsub.f32 1.0, %v4780
    %v5078 = vmul.f32 %v5074, %v5066
    %v5079 = vmul.f32 %v5075, %v5067
    %v5080 = vmul.f32 %v5076, %v5068
    %v5081 = vmul.f32 %v5077, %v5069
    %v5082 = vadd.f32 %v5070, %v5078
    %v5083 = vadd.f32 %v5071, %v5079
    %v5084 = vadd.f32 %v5072, %v5080
    %v5085 = vadd.f32 %v5073, %v5081
    %5086 = vst.msk [vmem:[#allocation2] sm:$0xff] %vm93, %v5082
    %5087 = vst.msk [vmem:[#allocation2 + $0x8] sm:$0xff] %vm93, %v5083
    %5088 = vst.msk [vmem:[#allocation2 + $0x10] sm:$0xff] %vm93, %v5084
    %5089 = vst.msk [vmem:[#allocation2 + $0x18] sm:$0xff] %vm93, %v5085
    %s5090 = scalar_lea.vmem [#allocation3], 224
    %5091 = vst.msk [vmem:[%s5090] sm:$0xff] %vm93, %v5082
    %5092 = vst.msk [vmem:[%s5090 + $0x8] sm:$0xff] %vm93, %v5083
    %5093 = vst.msk [vmem:[%s5090 + $0x10] sm:$0xff] %vm93, %v5084
    %5094 = vst.msk [vmem:[%s5090 + $0x18] sm:$0xff] %vm93, %v5085
    // Predicated region
    $region54: #{tpu_custom_call.1} parent=1 // pred_check
      _
    $region55: #{tpu_custom_call.1} parent=1 // pred_check_branch
      %5096 = sbr.rel (0) target = $region57
    $region56: #{tpu_custom_call.1} parent=1 // pred_region
      %5098 = vsyncadd [#allocation4], 0
      %s5099 = sshll.u32 [#allocation3], 4
      %s5100 = int_to_ptr.vmem [resolvable:$true] %s5099
      %s5101 = sshll.u32 %s12, 4
      %s5102 = int_to_ptr.hbm [resolvable:$true] %s5101
      %5107 = dma.vmem_to_hbm [thread:$0]  %s5100, 4096, %s5102, [#allocation4], 128, 128, 8
    $region57: #{tpu_custom_call.1} parent=1 // pred_fallthru
      _
    // Predicated region
    $region58: #{tpu_custom_call.1} parent=1 // pred_check
      _
    $region59: #{tpu_custom_call.1} parent=1 // pred_check_branch
      %5109 = sbr.rel (0) target = $region61
    $region60: #{tpu_custom_call.1} parent=1 // pred_region
      %5111 = dma.done [#allocation4], 4096
    $region61: #{tpu_custom_call.1} parent=1 // pred_fallthru
      _
    %5112 = vsyncpa [#allocation4], 1

</llo_original>
